<compile_context>
chip_gen: v6e
topology: v6e:2x2x1
jax: 0.10.0
libtpu: 0.0.40
codegen_flags: <defaults>
</compile_context>

<pallas_src>
import functools

import jax
import jax.numpy as jnp
import numpy as np
from jax.experimental import pallas as pl
from jax.experimental.pallas import tpu as pltpu

BN_EPS = 1e-5
SELU_ALPHA = 1.6732632423543772
SELU_SCALE = 1.0507009873554805


def _vmem_limit_bytes():
    # Generation-aware scoped-VMEM budget: ~75% of physical, capped at 100 MiB
    # (v5e/v6e: 128 MiB physical -> ~96 MiB; v7x: 64 MiB -> 48 MiB).
    default = 32 * 1024 * 1024
    try:
        info = pltpu.get_tpu_info()
        cap = getattr(info, 'vmem_capacity_bytes', None)
        if not cap:
            return default
        return max(default, min(int(cap) * 3 // 4, 100 * 1024 * 1024))
    except Exception:
        return default


def _pick_block_images(N, Hp):
    # Whole batch per grid step while small (maximizes the MXU M dim and
    # amortizes the ~0.35us per-step overhead); for large batches, the largest
    # divisor of N whose flattened row count is sublane-tileable (%8==0) and
    # stays <= 1024 rows per block.
    if N * Hp <= 1024:
        return N
    best = N
    for cand in range(1, N):
        if N % cand == 0 and (cand * Hp) % 8 == 0 and cand * Hp <= 1024:
            best = cand
    return best


# ----------------------------------------------------------------------------
# Weight lowering: fold the horizontal taps (and W zero-padding) into banded
# matrices and concatenate the three vertical taps along the output dim:
#   band[:, kh*WC + wo*Cout + co][wi*Cin + ci] = W[co, ci, kh, wi - wo + 1]
# TODO(synk): this banded form does ~W/3x extra MXU MACs and O(W^2*Cin*Cout)
# weight bytes; switch to per-tap (H*W,Cin)x(Cin,Cout) matmuls (or tile W into
# 128-lane strips) once W*Cin or channels grow beyond a few hundred.
# ----------------------------------------------------------------------------
def _banded_weights(w_oihw, W, dtype):
    Cout, Cin, KH, KW = w_oihw.shape
    wk = jnp.transpose(w_oihw, (2, 3, 1, 0))                 # (KH, KW, Cin, Cout)
    dx = jnp.arange(KW)[:, None, None]
    wi = jnp.arange(W)[None, :, None]
    wo = jnp.arange(W)[None, None, :]
    sel = (wi == wo + dx - 1).astype(w_oihw.dtype)           # (KW, W, W) band mask
    band = jnp.einsum('xiw,kxco->kicwo', sel, wk)            # (KH, W, Cin, W, Cout)
    band = band.reshape(KH, W * Cin, W * Cout)
    band = jnp.transpose(band, (1, 0, 2)).reshape(W * Cin, KH * W * Cout)
    return band.astype(dtype)


def _channel_reduce_matrix(W, Cout):
    # 0/1 matrix R with R[i, j] = (i % Cout == j % Cout): (1, W*Cout) @ R sums
    # the W lane groups per channel and broadcasts the per-channel total back
    # to the lane-dense layout, all in one tiny MXU matmul.
    idx = jnp.arange(W * Cout) % Cout
    return (idx[:, None] == idx[None, :]).astype(jnp.float32)


def _row_mask(B, Hp, WC):
    # 1.0 on valid image rows, 0.0 on the zero halo rows, replicated per image
    # in the block; keeps the zero-halo invariant with a single full store.
    H = Hp - 2
    col = jnp.zeros((Hp, 1), jnp.float32).at[1:H + 1].set(1.0)
    return jnp.tile(col, (B, WC))                            # (B*Hp, WC)


# ----------------------------------------------------------------------------
# Fused per-stage kernel.  grid = (phase, image_block):
#   phase 0: conv + accumulate per-channel sum/sumsq into VMEM scratch
#   phase 1 (block 0): per-channel reduce -> folded BN scale/shift
#   phase 1: conv (recomputed) + BN affine + [residual] + activation + store
# ----------------------------------------------------------------------------
def _stage_kernel(x_ref, w_ref, red_ref, mask_ref, gamma_ref, beta_ref, *rest,
                  activation, has_res, emit_pre, inv_count):
    idx = 0
    res_ref = None
    if has_res:
        res_ref = rest[idx]; idx += 1
    out_ref = rest[idx]; idx += 1
    pre_ref = None
    if emit_pre:
        pre_ref = rest[idx]; idx += 1
    stats_ref, scale_ref, shift_ref = rest[idx], rest[idx + 1], rest[idx + 2]

    phase = pl.program_id(0)
    blk = pl.program_id(1)
    WC = red_ref.shape[0]

    def conv():
        # One MXU matmul against the concatenated 3-tap banded weights, then
        # combine the vertical taps with row-shifted adds of the 128-aligned
        # column groups.  Halo rows produce garbage that is masked later.
        yf = jnp.dot(x_ref[...], w_ref[...],
                     preferred_element_type=jnp.float32)     # (T, 3*WC) f32
        T = yf.shape[0]
        z = jnp.zeros((1, WC), jnp.float32)
        up = jnp.concatenate([z, yf[:T - 1, 0:WC]], axis=0)          # tap kh=0
        mid = yf[:, WC:2 * WC]                                        # tap kh=1
        dn = jnp.concatenate([yf[1:, 2 * WC:3 * WC], z], axis=0)      # tap kh=2
        return up + mid + dn                                 # (T, WC) f32

    @pl.when((phase == 0) & (blk == 0))
    def _init():
        stats_ref[...] = jnp.zeros_like(stats_ref)

    @pl.when(phase == 0)
    def _accumulate_stats():
        y = conv() * mask_ref[...]                           # zero halo rows
        s = jnp.sum(y, axis=0, keepdims=True)                # (1, WC)
        q = jnp.sum(y * y, axis=0, keepdims=True)
        stats_ref[...] += jnp.concatenate([s, q], axis=0)    # (2, WC)

    @pl.when((phase == 1) & (blk == 0))
    def _finalize_stats():
        tot = jnp.dot(stats_ref[...], red_ref[...],
                      preferred_element_type=jnp.float32)    # per-channel, lane layout
        mean = tot[0:1, :] * inv_count
        # Biased batch variance (PyTorch training-mode BN normalization).
        # TODO(synk): E[x^2]-E[x]^2 in f32 cancels for very large N*H*W;
        # switch to a shifted/Welford accumulation before scaling up.
        var = jnp.maximum(tot[1:2, :] * inv_count - mean * mean, 0.0)
        scale = gamma_ref[...] * jax.lax.rsqrt(var + BN_EPS)
        scale_ref[...] = scale
        shift_ref[...] = beta_ref[...] - mean * scale

    @pl.when(phase == 1)
    def _apply():
        y = conv()
        # Folded BN affine.  Conv bias dropped on purpose: it is exactly
        # cancelled by the batch-mean subtraction of training-mode BN.
        y = y * scale_ref[...] + shift_ref[...]
        if has_res:
            y = y + res_ref[...].astype(jnp.float32)
        if emit_pre:
            pre_ref[...] = (y * mask_ref[...]).astype(pre_ref.dtype)
        if activation == 'relu':
            a = jnp.maximum(y, 0.0)
        else:  # 'selu'
            a = SELU_SCALE * jnp.where(
                y > 0.0, y, SELU_ALPHA * (jnp.exp(jnp.minimum(y, 0.0)) - 1.0))
        # Single full-width store; halo rows forced back to zero so the next
        # stage can consume the slab directly.
        out_ref[...] = (a * mask_ref[...]).astype(out_ref.dtype)


def _stage(x_slab, band, red, mask, gamma_l, beta_l, *, res=None,
           emit_pre=False, activation='relu', count=1, hp=1, block_images=1,
           out_dtype=jnp.float32, pre_dtype=jnp.float32,
           vmem_limit=32 * 1024 * 1024):
    TN, K = x_slab.shape                 # TN = N*Hp
    WC = band.shape[1] // 3
    N = TN // hp
    B = block_images
    NB = N // B
    T = B * hp
    has_res = res is not None

    in_specs = [
        pl.BlockSpec((T, K), lambda p, b: (b, 0)),           # activations (both phases)
        pl.BlockSpec((K, 3 * WC), lambda p, b: (0, 0)),       # concatenated band
        pl.BlockSpec((WC, WC), lambda p, b: (0, 0)),          # channel-reduce matrix
        pl.BlockSpec((T, WC), lambda p, b: (0, 0)),           # row-validity mask
        pl.BlockSpec((1, WC), lambda p, b: (0, 0)),           # gamma (lane layout)
        pl.BlockSpec((1, WC), lambda p, b: (0, 0)),           # beta  (lane layout)
    ]
    operands = [x_slab, band, red, mask, gamma_l, beta_l]
    if has_res:
        # b*p: only block 0 is (needlessly but harmlessly) fetched in phase 0.
        in_specs.append(pl.BlockSpec((T, WC), lambda p, b: (b * p, 0)))
        operands.append(res)

    out_shapes = [jax.ShapeDtypeStruct((TN, WC), out_dtype)]
    out_specs = [pl.BlockSpec((T, WC), lambda p, b: (b * p, 0))]
    if emit_pre:
        out_shapes.append(jax.ShapeDtypeStruct((TN, WC), pre_dtype))
        out_specs.append(pl.BlockSpec((T, WC), lambda p, b: (b * p, 0)))

    flops = int(2 * 2 * TN * K * 3 * WC)          # conv matmul, both phases
    transc = int(TN * WC) if activation == 'selu' else 0
    bytes_acc = int(2 * x_slab.size * x_slab.dtype.itemsize
                    + band.size * band.dtype.itemsize
                    + red.size * red.dtype.itemsize
                    + mask.size * mask.dtype.itemsize
                    + (res.size * res.dtype.itemsize if has_res else 0)
                    + sum(int(np.prod(s.shape)) * jnp.dtype(s.dtype).itemsize
                          for s in out_shapes))

    kernel = functools.partial(_stage_kernel, activation=activation,
                               has_res=has_res, emit_pre=emit_pre,
                               inv_count=1.0 / float(count))

    outs = pl.pallas_call(
        kernel,
        out_shape=tuple(out_shapes),
        grid=(2, NB),                    # (phase, image block); phase 0 = stats
        in_specs=in_specs,
        out_specs=tuple(out_specs),
        scratch_shapes=[pltpu.VMEM((2, WC), jnp.float32),    # sum / sumsq
                        pltpu.VMEM((1, WC), jnp.float32),    # folded BN scale
                        pltpu.VMEM((1, WC), jnp.float32)],   # folded BN shift
        compiler_params=pltpu.CompilerParams(
            # Phase axis and the cross-block stats accumulation are serial.
            # TODO(synk): split the block axis across v7x's two TensorCores
            # with per-core partial stats + a final cross-core reduce.
            dimension_semantics=("arbitrary", "arbitrary"),
            vmem_limit_bytes=vmem_limit),
        cost_estimate=pl.CostEstimate(flops=flops, transcendentals=transc,
                                      bytes_accessed=bytes_acc),
    )(*operands)
    return outs if emit_pre else outs[0]


# ----------------------------------------------------------------------------
# Full ResBlock forward (NCHW in / NCHW out; same semantics as the PyTorch
# module called in training mode right after construction).
# ----------------------------------------------------------------------------
def resblock_forward(x_nchw, params, activation='relu', io_dtype=jnp.float32):
    if activation not in ('relu', 'selu'):
        raise AttributeError('Support activation function: relu or selu')
    N, Cin, H, W = x_nchw.shape
    Cout = params['w1'].shape[0]
    Hp = H + 2
    WC = W * Cout
    count = N * H * W
    vmem_limit = _vmem_limit_bytes()
    B = _pick_block_images(N, Hp)

    # One-time host prep: NCHW -> flattened lane-dense slab (N*Hp, W*Cin) with
    # zero halo rows between images; stages then chain slabs with no host glue.
    x = jnp.transpose(x_nchw, (0, 2, 3, 1)).reshape(N, H, W * Cin)
    x = jnp.pad(x, ((0, 0), (1, 1), (0, 0))).reshape(N * Hp, W * Cin)
    x = x.astype(io_dtype)

    band1 = _banded_weights(params['w1'], W, io_dtype)
    band2 = _banded_weights(params['w2'], W, io_dtype)
    band3 = _banded_weights(params['w3'], W, io_dtype)
    red = _channel_reduce_matrix(W, Cout)
    mask = _row_mask(B, Hp, WC)
    # NOTE: conv biases (params['b*']) are intentionally unused: with
    # training-mode BatchNorm the per-channel bias is exactly cancelled by the
    # batch-mean subtraction, so it never affects the forward output.

    def lane(v):  # per-channel (Cout,) -> lane-dense (1, W*Cout) f32
        return jnp.tile(v.astype(jnp.float32), (W,)).reshape(1, WC)

    common = dict(activation=activation, count=count, hp=Hp,
                  block_images=B, vmem_limit=vmem_limit)

    # stage 1: out_ = bn1(conv1(x)); a1 = act(out_)    (pre1 = residual, io_dtype)
    a1, pre1 = _stage(x, band1, red, mask, lane(params['g1']), lane(params['be1']),
                      emit_pre=True, out_dtype=io_dtype, pre_dtype=io_dtype,
                      **common)
    # stage 2: a2 = act(bn2(conv2(a1)))
    a2 = _stage(a1, band2, red, mask, lane(params['g2']), lane(params['be2']),
                out_dtype=io_dtype, **common)
    # stage 3: out = act(bn3(conv3(a2)) + out_)
    out = _stage(a2, band3, red, mask, lane(params['g3']), lane(params['be3']),
                 res=pre1, out_dtype=jnp.float32, **common)

    # (N*Hp, W*Cout) padded slab -> drop halo rows -> NCHW
    out = out.reshape(N, Hp, W, Cout)[:, 1:H + 1]
    return jnp.transpose(out, (0, 3, 1, 2))


# ----------------------------------------------------------------------------
# Deterministic parameter init (shapes from ResBlock.__init__; BN gamma=1, beta=0).
# ----------------------------------------------------------------------------
def init_params(key, in_channel, out_channel):
    ks = jax.random.split(key, 6)
    return {
        'w1': 0.1 * jax.random.normal(ks[0], (out_channel, in_channel, 3, 3), jnp.float32),
        'b1': 0.01 * jax.random.normal(ks[1], (out_channel,), jnp.float32),
        'w2': 0.1 * jax.random.normal(ks[2], (out_channel, out_channel, 3, 3), jnp.float32),
        'b2': 0.01 * jax.random.normal(ks[3], (out_channel,), jnp.float32),
        'w3': 0.1 * jax.random.normal(ks[4], (out_channel, out_channel, 3, 3), jnp.float32),
        'b3': 0.01 * jax.random.normal(ks[5], (out_channel,), jnp.float32),
        'g1': jnp.ones((out_channel,), jnp.float32), 'be1': jnp.zeros((out_channel,), jnp.float32),
        'g2': jnp.ones((out_channel,), jnp.float32), 'be2': jnp.zeros((out_channel,), jnp.float32),
        'g3': jnp.ones((out_channel,), jnp.float32), 'be3': jnp.zeros((out_channel,), jnp.float32),
    }


# Pure-JAX reference (f32, bias included) for the correctness check.
def _reference(x_nchw, p, activation):
    def conv(x, w, b):
        y = jax.lax.conv_general_dilated(
            x, w, window_strides=(1, 1), padding=((1, 1), (1, 1)),
            dimension_numbers=('NCHW', 'OIHW', 'NCHW'))
        return y + b[None, :, None, None]

    def bn(x, g, bb):
        mean = jnp.mean(x, axis=(0, 2, 3), keepdims=True)
        var = jnp.mean(jnp.square(x - mean), axis=(0, 2, 3), keepdims=True)
        return (x - mean) * jax.lax.rsqrt(var + BN_EPS) * g[None, :, None, None] \
            + bb[None, :, None, None]

    act = (lambda v: jnp.maximum(v, 0.0)) if activation == 'relu' else jax.nn.selu
    out_ = bn(conv(x_nchw, p['w1'], p['b1']), p['g1'], p['be1'])
    o = act(out_)
    o = bn(conv(o, p['w2'], p['b2']), p['g2'], p['be2'])
    o = act(o)
    o = bn(conv(o, p['w3'], p['b3']), p['g3'], p['be3'])
    o = o + out_
    return act(o)


if __name__ == "__main__":
    key = jax.random.PRNGKey(0)
    kx, kp = jax.random.split(key)

    in_channel, out_channel = 4, 8
    N, H, W = 2, 16, 16
    x = jax.random.normal(kx, (N, in_channel, H, W), dtype=jnp.float32)  # NCHW
    params = init_params(kp, in_channel, out_channel)

    # f32 path (exact parity with the module's numerics), relu.
    fwd_f32 = jax.jit(functools.partial(resblock_forward, activation='relu',
                                        io_dtype=jnp.float32))
    out = jax.block_until_ready(fwd_f32(x, params))
    assert out.shape == (N, out_channel, H, W)
    ref = _reference(x, params, 'relu')
    if not np.allclose(np.asarray(out), np.asarray(ref), atol=1e-2, rtol=1e-2):
        raise AssertionError("Pallas ResBlock (f32/relu) mismatches JAX reference")

    # bf16 MXU-operand fast path (v6e/v7x), selu; f32 accumulation + f32 BN/act,
    # bf16 intermediate slabs and residual.  Loose tolerance (bf16 rounding).
    fwd_bf16 = jax.jit(functools.partial(resblock_forward, activation='selu',
                                         io_dtype=jnp.bfloat16))
    out_bf16 = jax.block_until_ready(fwd_bf16(x, params))
    ref_selu = _reference(x, params, 'selu')
    if not np.allclose(np.asarray(out_bf16), np.asarray(ref_selu),
                       atol=1.5e-1, rtol=1.5e-1):
        raise AssertionError("Pallas ResBlock (bf16/selu) mismatches JAX reference")

    print("KERNEL_OK")
</pallas_src>

<mosaic_0001>
module attributes {stable_mosaic.version = 11 : i64} {
  func.func @_stage_kernel(%arg0: i32, %arg1: i32, %arg2: memref<36x64xf32, #tpu.memory_space<vmem>>, %arg3: memref<64x384xf32, #tpu.memory_space<vmem>>, %arg4: memref<128x128xf32, #tpu.memory_space<vmem>>, %arg5: memref<36x128xf32, #tpu.memory_space<vmem>>, %arg6: memref<1x128xf32, #tpu.memory_space<vmem>>, %arg7: memref<1x128xf32, #tpu.memory_space<vmem>>, %arg8: memref<36x128xf32, #tpu.memory_space<vmem>>, %arg9: memref<36x128xf32, #tpu.memory_space<vmem>>, %arg10: memref<2x128xf32, #tpu.memory_space<vmem>>, %arg11: memref<1x128xf32, #tpu.memory_space<vmem>>, %arg12: memref<1x128xf32, #tpu.memory_space<vmem>>) attributes {dimension_semantics = [#tpu.dimension_semantics<arbitrary>, #tpu.dimension_semantics<arbitrary>], iteration_bounds = array<i64: 2, 1>, scalar_prefetch = 0 : i64, scratch_operands = 3 : i64, tpu.core_type = #tpu.core_type<tc>, window_params = [{transform_indices = @transform_0, window_bounds = array<i64: 36, 64>}, {pipeline_mode = #tpu.pipeline_mode<synchronous>, transform_indices = @transform_1, window_bounds = array<i64: 64, 384>}, {pipeline_mode = #tpu.pipeline_mode<synchronous>, transform_indices = @transform_2, window_bounds = array<i64: 128, 128>}, {pipeline_mode = #tpu.pipeline_mode<synchronous>, transform_indices = @transform_3, window_bounds = array<i64: 36, 128>}, {pipeline_mode = #tpu.pipeline_mode<synchronous>, transform_indices = @transform_4, window_bounds = array<i64: 1, 128>}, {pipeline_mode = #tpu.pipeline_mode<synchronous>, transform_indices = @transform_5, window_bounds = array<i64: 1, 128>}, {transform_indices = @transform_6, window_bounds = array<i64: 36, 128>}, {transform_indices = @transform_7, window_bounds = array<i64: 36, 128>}]} {
    %c0_i32 = arith.constant 0 : i32
    %0 = arith.cmpi eq, %arg0, %c0_i32 : i32
    %c0_i32_0 = arith.constant 0 : i32
    %1 = arith.cmpi eq, %arg1, %c0_i32_0 : i32
    %2 = arith.andi %0, %1 : i1
    %3 = arith.extui %2 : i1 to i32
    %c0_i32_1 = arith.constant 0 : i32
    %4 = arith.cmpi ne, %3, %c0_i32_1 : i32
    scf.if %4 {
      %cst = arith.constant 0.000000e+00 : f32
      %16 = vector.broadcast %cst : f32 to vector<2x128xf32>
      %c0 = arith.constant 0 : index
      %c0_8 = arith.constant 0 : index
      %17 = vector.load %arg10[%c0, %c0_8] : memref<2x128xf32, #tpu.memory_space<vmem>>, vector<2x128xf32>
      tpu.vector_store %arg10[%c0, %c0_8], %16 {strides = array<i32>} : memref<2x128xf32, #tpu.memory_space<vmem>>, vector<2x128xf32>,
    } else {
    }
    %c0_i32_2 = arith.constant 0 : i32
    %5 = arith.cmpi eq, %arg0, %c0_i32_2 : i32
    %6 = arith.extui %5 : i1 to i32
    %c0_i32_3 = arith.constant 0 : i32
    %7 = arith.cmpi ne, %6, %c0_i32_3 : i32
    scf.if %7 {
      %c0 = arith.constant 0 : index
      %c0_8 = arith.constant 0 : index
      %16 = vector.load %arg2[%c0, %c0_8] : memref<36x64xf32, #tpu.memory_space<vmem>>, vector<36x64xf32>
      %c0_9 = arith.constant 0 : index
      %c0_10 = arith.constant 0 : index
      %17 = vector.load %arg3[%c0_9, %c0_10] : memref<64x384xf32, #tpu.memory_space<vmem>>, vector<64x384xf32>
      %cst = arith.constant dense<0.000000e+00> : vector<36x384xf32>
      %18 = tpu.matmul %16, %17, %cst {dimension_numbers = #tpu.dot_dimension_numbers<[1], [0], [0], [1], [0, 0, 1, 1], [], []>} : vector<36x64xf32>, vector<64x384xf32>, vector<36x384xf32> -> vector<36x384xf32>
      %cst_11 = arith.constant 0.000000e+00 : f32
      %19 = vector.broadcast %cst_11 : f32 to vector<1x128xf32>
      %20 = vector.extract_strided_slice %18 {offsets = [0, 0], sizes = [35, 128], strides = [1, 1]} : vector<36x384xf32> to vector<35x128xf32>
      %21 = tpu.concatenate %19, %20 in 0 : vector<1x128xf32>, vector<35x128xf32> -> vector<36x128xf32>
      %22 = vector.extract_strided_slice %18 {offsets = [0, 128], sizes = [36, 128], strides = [1, 1]} : vector<36x384xf32> to vector<36x128xf32>
      %23 = vector.extract_strided_slice %18 {offsets = [1, 256], sizes = [35, 128], strides = [1, 1]} : vector<36x384xf32> to vector<35x128xf32>
      %24 = tpu.concatenate %23, %19 in 0 : vector<35x128xf32>, vector<1x128xf32> -> vector<36x128xf32>
      %25 = arith.addf %21, %22 : vector<36x128xf32>
      %26 = arith.addf %25, %24 : vector<36x128xf32>
      %c0_12 = arith.constant 0 : index
      %c0_13 = arith.constant 0 : index
      %27 = vector.load %arg5[%c0_12, %c0_13] : memref<36x128xf32, #tpu.memory_space<vmem>>, vector<36x128xf32>
      %28 = arith.mulf %26, %27 : vector<36x128xf32>
      %cst_14 = arith.constant dense<0.000000e+00> : vector<128xf32>
      %29 = vector.multi_reduction <add>, %28, %cst_14 [0] : vector<36x128xf32> to vector<128xf32>
      %30 = vector.shape_cast %29 : vector<128xf32> to vector<1x128xf32>
      %31 = arith.mulf %28, %28 : vector<36x128xf32>
      %cst_15 = arith.constant dense<0.000000e+00> : vector<128xf32>
      %32 = vector.multi_reduction <add>, %31, %cst_15 [0] : vector<36x128xf32> to vector<128xf32>
      %33 = vector.shape_cast %32 : vector<128xf32> to vector<1x128xf32>
      %c0_16 = arith.constant 0 : index
      %c0_17 = arith.constant 0 : index
      %34 = vector.load %arg10[%c0_16, %c0_17] : memref<2x128xf32, #tpu.memory_space<vmem>>, vector<2x128xf32>
      %35 = tpu.concatenate %30, %33 in 0 : vector<1x128xf32>, vector<1x128xf32> -> vector<2x128xf32>
      %36 = arith.addf %34, %35 : vector<2x128xf32>
      %c0_18 = arith.constant 0 : index
      %c0_19 = arith.constant 0 : index
      %37 = vector.load %arg10[%c0_18, %c0_19] : memref<2x128xf32, #tpu.memory_space<vmem>>, vector<2x128xf32>
      tpu.vector_store %arg10[%c0_18, %c0_19], %36 {strides = array<i32>} : memref<2x128xf32, #tpu.memory_space<vmem>>, vector<2x128xf32>,
    } else {
    }
    %c1_i32 = arith.constant 1 : i32
    %8 = arith.cmpi eq, %arg0, %c1_i32 : i32
    %c0_i32_4 = arith.constant 0 : i32
    %9 = arith.cmpi eq, %arg1, %c0_i32_4 : i32
    %10 = arith.andi %8, %9 : i1
    %11 = arith.extui %10 : i1 to i32
    %c0_i32_5 = arith.constant 0 : i32
    %12 = arith.cmpi ne, %11, %c0_i32_5 : i32
    scf.if %12 {
      %c0 = arith.constant 0 : index
      %c0_8 = arith.constant 0 : index
      %16 = vector.load %arg10[%c0, %c0_8] : memref<2x128xf32, #tpu.memory_space<vmem>>, vector<2x128xf32>
      %c0_9 = arith.constant 0 : index
      %c0_10 = arith.constant 0 : index
      %17 = vector.load %arg4[%c0_9, %c0_10] : memref<128x128xf32, #tpu.memory_space<vmem>>, vector<128x128xf32>
      %cst = arith.constant dense<0.000000e+00> : vector<2x128xf32>
      %18 = tpu.matmul %16, %17, %cst {dimension_numbers = #tpu.dot_dimension_numbers<[1], [0], [0], [1], [0, 0, 1, 1], [], []>} : vector<2x128xf32>, vector<128x128xf32>, vector<2x128xf32> -> vector<2x128xf32>
      %19 = vector.extract_strided_slice %18 {offsets = [0, 0], sizes = [1, 128], strides = [1, 1]} : vector<2x128xf32> to vector<1x128xf32>
      %cst_11 = arith.constant 0.001953125 : f32
      %20 = vector.broadcast %cst_11 : f32 to vector<1x128xf32>
      %21 = arith.mulf %19, %20 : vector<1x128xf32>
      %22 = vector.extract_strided_slice %18 {offsets = [1, 0], sizes = [1, 128], strides = [1, 1]} : vector<2x128xf32> to vector<1x128xf32>
      %cst_12 = arith.constant 0.001953125 : f32
      %23 = vector.broadcast %cst_12 : f32 to vector<1x128xf32>
      %24 = arith.mulf %22, %23 : vector<1x128xf32>
      %25 = arith.mulf %21, %21 : vector<1x128xf32>
      %26 = arith.subf %24, %25 : vector<1x128xf32>
      %cst_13 = arith.constant 0.000000e+00 : f32
      %27 = vector.broadcast %cst_13 : f32 to vector<1x128xf32>
      %28 = arith.maximumf %26, %27 : vector<1x128xf32>
      %c0_14 = arith.constant 0 : index
      %c0_15 = arith.constant 0 : index
      %29 = vector.load %arg6[%c0_14, %c0_15] : memref<1x128xf32, #tpu.memory_space<vmem>>, vector<1x128xf32>
      %cst_16 = arith.constant 9.99999974E-6 : f32
      %30 = vector.broadcast %cst_16 : f32 to vector<1x128xf32>
      %31 = arith.addf %28, %30 : vector<1x128xf32>
      %32 = math.rsqrt %31 : vector<1x128xf32>
      %33 = arith.mulf %29, %32 : vector<1x128xf32>
      %c0_17 = arith.constant 0 : index
      %c0_18 = arith.constant 0 : index
      %34 = vector.load %arg11[%c0_17, %c0_18] : memref<1x128xf32, #tpu.memory_space<vmem>>, vector<1x128xf32>
      tpu.vector_store %arg11[%c0_17, %c0_18], %33 {strides = array<i32>} : memref<1x128xf32, #tpu.memory_space<vmem>>, vector<1x128xf32>,
      %c0_19 = arith.constant 0 : index
      %c0_20 = arith.constant 0 : index
      %35 = vector.load %arg7[%c0_19, %c0_20] : memref<1x128xf32, #tpu.memory_space<vmem>>, vector<1x128xf32>
      %36 = arith.mulf %21, %33 : vector<1x128xf32>
      %37 = arith.subf %35, %36 : vector<1x128xf32>
      %c0_21 = arith.constant 0 : index
      %c0_22 = arith.constant 0 : index
      %38 = vector.load %arg12[%c0_21, %c0_22] : memref<1x128xf32, #tpu.memory_space<vmem>>, vector<1x128xf32>
      tpu.vector_store %arg12[%c0_21, %c0_22], %37 {strides = array<i32>} : memref<1x128xf32, #tpu.memory_space<vmem>>, vector<1x128xf32>,
    } else {
    }
    %c1_i32_6 = arith.constant 1 : i32
    %13 = arith.cmpi eq, %arg0, %c1_i32_6 : i32
    %14 = arith.extui %13 : i1 to i32
    %c0_i32_7 = arith.constant 0 : i32
    %15 = arith.cmpi ne, %14, %c0_i32_7 : i32
    scf.if %15 {
      %c0 = arith.constant 0 : index
      %c0_8 = arith.constant 0 : index
      %16 = vector.load %arg2[%c0, %c0_8] : memref<36x64xf32, #tpu.memory_space<vmem>>, vector<36x64xf32>
      %c0_9 = arith.constant 0 : index
      %c0_10 = arith.constant 0 : index
      %17 = vector.load %arg3[%c0_9, %c0_10] : memref<64x384xf32, #tpu.memory_space<vmem>>, vector<64x384xf32>
      %cst = arith.constant dense<0.000000e+00> : vector<36x384xf32>
      %18 = tpu.matmul %16, %17, %cst {dimension_numbers = #tpu.dot_dimension_numbers<[1], [0], [0], [1], [0, 0, 1, 1], [], []>} : vector<36x64xf32>, vector<64x384xf32>, vector<36x384xf32> -> vector<36x384xf32>
      %cst_11 = arith.constant 0.000000e+00 : f32
      %19 = vector.broadcast %cst_11 : f32 to vector<1x128xf32>
      %20 = vector.extract_strided_slice %18 {offsets = [0, 0], sizes = [35, 128], strides = [1, 1]} : vector<36x384xf32> to vector<35x128xf32>
      %21 = tpu.concatenate %19, %20 in 0 : vector<1x128xf32>, vector<35x128xf32> -> vector<36x128xf32>
      %22 = vector.extract_strided_slice %18 {offsets = [0, 128], sizes = [36, 128], strides = [1, 1]} : vector<36x384xf32> to vector<36x128xf32>
      %23 = vector.extract_strided_slice %18 {offsets = [1, 256], sizes = [35, 128], strides = [1, 1]} : vector<36x384xf32> to vector<35x128xf32>
      %24 = tpu.concatenate %23, %19 in 0 : vector<35x128xf32>, vector<1x128xf32> -> vector<36x128xf32>
      %25 = arith.addf %21, %22 : vector<36x128xf32>
      %26 = arith.addf %25, %24 : vector<36x128xf32>
      %c0_12 = arith.constant 0 : index
      %c0_13 = arith.constant 0 : index
      %27 = vector.load %arg11[%c0_12, %c0_13] : memref<1x128xf32, #tpu.memory_space<vmem>>, vector<1x128xf32>
      %28 = vector.broadcast %27 : vector<1x128xf32> to vector<36x128xf32>
      %29 = arith.mulf %26, %28 : vector<36x128xf32>
      %c0_14 = arith.constant 0 : index
      %c0_15 = arith.constant 0 : index
      %30 = vector.load %arg12[%c0_14, %c0_15] : memref<1x128xf32, #tpu.memory_space<vmem>>, vector<1x128xf32>
      %31 = vector.broadcast %30 : vector<1x128xf32> to vector<36x128xf32>
      %32 = arith.addf %29, %31 : vector<36x128xf32>
      %c0_16 = arith.constant 0 : index
      %c0_17 = arith.constant 0 : index
      %33 = vector.load %arg5[%c0_16, %c0_17] : memref<36x128xf32, #tpu.memory_space<vmem>>, vector<36x128xf32>
      %34 = arith.mulf %32, %33 : vector<36x128xf32>
      %c0_18 = arith.constant 0 : index
      %c0_19 = arith.constant 0 : index
      %35 = vector.load %arg9[%c0_18, %c0_19] : memref<36x128xf32, #tpu.memory_space<vmem>>, vector<36x128xf32>
      tpu.vector_store %arg9[%c0_18, %c0_19], %34 {strides = array<i32>} : memref<36x128xf32, #tpu.memory_space<vmem>>, vector<36x128xf32>,
      %cst_20 = arith.constant 0.000000e+00 : f32
      %36 = vector.broadcast %cst_20 : f32 to vector<36x128xf32>
      %37 = arith.maximumf %32, %36 : vector<36x128xf32>
      %c0_21 = arith.constant 0 : index
      %c0_22 = arith.constant 0 : index
      %38 = vector.load %arg5[%c0_21, %c0_22] : memref<36x128xf32, #tpu.memory_space<vmem>>, vector<36x128xf32>
      %39 = arith.mulf %37, %38 : vector<36x128xf32>
      %c0_23 = arith.constant 0 : index
      %c0_24 = arith.constant 0 : index
      %40 = vector.load %arg8[%c0_23, %c0_24] : memref<36x128xf32, #tpu.memory_space<vmem>>, vector<36x128xf32>
      tpu.vector_store %arg8[%c0_23, %c0_24], %39 {strides = array<i32>} : memref<36x128xf32, #tpu.memory_space<vmem>>, vector<36x128xf32>,
    } else {
    }
    return
  }
  func.func @transform_0(%arg0: i32, %arg1: i32) -> (i32, i32) {
    %c0_i32 = arith.constant 0 : i32
    %c0_i32_0 = arith.constant 0 : i32
    return %arg1, %c0_i32 : i32, i32
  }
  func.func @transform_1(%arg0: i32, %arg1: i32) -> (i32, i32) {
    %c0_i32 = arith.constant 0 : i32
    %c0_i32_0 = arith.constant 0 : i32
    %c0_i32_1 = arith.constant 0 : i32
    return %c0_i32, %c0_i32_0 : i32, i32
  }
  func.func @transform_2(%arg0: i32, %arg1: i32) -> (i32, i32) {
    %c0_i32 = arith.constant 0 : i32
    %c0_i32_0 = arith.constant 0 : i32
    %c0_i32_1 = arith.constant 0 : i32
    return %c0_i32, %c0_i32_0 : i32, i32
  }
  func.func @transform_3(%arg0: i32, %arg1: i32) -> (i32, i32) {
    %c0_i32 = arith.constant 0 : i32
    %c0_i32_0 = arith.constant 0 : i32
    %c0_i32_1 = arith.constant 0 : i32
    return %c0_i32, %c0_i32_0 : i32, i32
  }
  func.func @transform_4(%arg0: i32, %arg1: i32) -> (i32, i32) {
    %c0_i32 = arith.constant 0 : i32
    %c0_i32_0 = arith.constant 0 : i32
    %c0_i32_1 = arith.constant 0 : i32
    return %c0_i32, %c0_i32_0 : i32, i32
  }
  func.func @transform_5(%arg0: i32, %arg1: i32) -> (i32, i32) {
    %c0_i32 = arith.constant 0 : i32
    %c0_i32_0 = arith.constant 0 : i32
    %c0_i32_1 = arith.constant 0 : i32
    return %c0_i32, %c0_i32_0 : i32, i32
  }
  func.func @transform_6(%arg0: i32, %arg1: i32) -> (i32, i32) {
    %0 = arith.muli %arg1, %arg0 : i32
    %c0_i32 = arith.constant 0 : i32
    %c0_i32_0 = arith.constant 0 : i32
    return %0, %c0_i32 : i32, i32
  }
  func.func @transform_7(%arg0: i32, %arg1: i32) -> (i32, i32) {
    %0 = arith.muli %arg1, %arg0 : i32
    %c0_i32 = arith.constant 0 : i32
    %c0_i32_0 = arith.constant 0 : i32
    return %0, %c0_i32 : i32, i32
  }
}

module attributes {stable_mosaic.version = 11 : i64} {
  func.func @_stage_kernel(%arg0: i32, %arg1: i32, %arg2: memref<36x128xf32, #tpu.memory_space<vmem>>, %arg3: memref<128x384xf32, #tpu.memory_space<vmem>>, %arg4: memref<128x128xf32, #tpu.memory_space<vmem>>, %arg5: memref<36x128xf32, #tpu.memory_space<vmem>>, %arg6: memref<1x128xf32, #tpu.memory_space<vmem>>, %arg7: memref<1x128xf32, #tpu.memory_space<vmem>>, %arg8: memref<36x128xf32, #tpu.memory_space<vmem>>, %arg9: memref<2x128xf32, #tpu.memory_space<vmem>>, %arg10: memref<1x128xf32, #tpu.memory_space<vmem>>, %arg11: memref<1x128xf32, #tpu.memory_space<vmem>>) attributes {dimension_semantics = [#tpu.dimension_semantics<arbitrary>, #tpu.dimension_semantics<arbitrary>], iteration_bounds = array<i64: 2, 1>, scalar_prefetch = 0 : i64, scratch_operands = 3 : i64, tpu.core_type = #tpu.core_type<tc>, window_params = [{transform_indices = @transform_0, window_bounds = array<i64: 36, 128>}, {pipeline_mode = #tpu.pipeline_mode<synchronous>, transform_indices = @transform_1, window_bounds = array<i64: 128, 384>}, {pipeline_mode = #tpu.pipeline_mode<synchronous>, transform_indices = @transform_2, window_bounds = array<i64: 128, 128>}, {pipeline_mode = #tpu.pipeline_mode<synchronous>, transform_indices = @transform_3, window_bounds = array<i64: 36, 128>}, {pipeline_mode = #tpu.pipeline_mode<synchronous>, transform_indices = @transform_4, window_bounds = array<i64: 1, 128>}, {pipeline_mode = #tpu.pipeline_mode<synchronous>, transform_indices = @transform_5, window_bounds = array<i64: 1, 128>}, {transform_indices = @transform_6, window_bounds = array<i64: 36, 128>}]} {
    %c0_i32 = arith.constant 0 : i32
    %0 = arith.cmpi eq, %arg0, %c0_i32 : i32
    %c0_i32_0 = arith.constant 0 : i32
    %1 = arith.cmpi eq, %arg1, %c0_i32_0 : i32
    %2 = arith.andi %0, %1 : i1
    %3 = arith.extui %2 : i1 to i32
    %c0_i32_1 = arith.constant 0 : i32
    %4 = arith.cmpi ne, %3, %c0_i32_1 : i32
    scf.if %4 {
      %cst = arith.constant 0.000000e+00 : f32
      %16 = vector.broadcast %cst : f32 to vector<2x128xf32>
      %c0 = arith.constant 0 : index
      %c0_8 = arith.constant 0 : index
      %17 = vector.load %arg9[%c0, %c0_8] : memref<2x128xf32, #tpu.memory_space<vmem>>, vector<2x128xf32>
      tpu.vector_store %arg9[%c0, %c0_8], %16 {strides = array<i32>} : memref<2x128xf32, #tpu.memory_space<vmem>>, vector<2x128xf32>,
    } else {
    }
    %c0_i32_2 = arith.constant 0 : i32
    %5 = arith.cmpi eq, %arg0, %c0_i32_2 : i32
    %6 = arith.extui %5 : i1 to i32
    %c0_i32_3 = arith.constant 0 : i32
    %7 = arith.cmpi ne, %6, %c0_i32_3 : i32
    scf.if %7 {
      %c0 = arith.constant 0 : index
      %c0_8 = arith.constant 0 : index
      %16 = vector.load %arg2[%c0, %c0_8] : memref<36x128xf32, #tpu.memory_space<vmem>>, vector<36x128xf32>
      %c0_9 = arith.constant 0 : index
      %c0_10 = arith.constant 0 : index
      %17 = vector.load %arg3[%c0_9, %c0_10] : memref<128x384xf32, #tpu.memory_space<vmem>>, vector<128x384xf32>
      %cst = arith.constant dense<0.000000e+00> : vector<36x384xf32>
      %18 = tpu.matmul %16, %17, %cst {dimension_numbers = #tpu.dot_dimension_numbers<[1], [0], [0], [1], [0, 0, 1, 1], [], []>} : vector<36x128xf32>, vector<128x384xf32>, vector<36x384xf32> -> vector<36x384xf32>
      %cst_11 = arith.constant 0.000000e+00 : f32
      %19 = vector.broadcast %cst_11 : f32 to vector<1x128xf32>
      %20 = vector.extract_strided_slice %18 {offsets = [0, 0], sizes = [35, 128], strides = [1, 1]} : vector<36x384xf32> to vector<35x128xf32>
      %21 = tpu.concatenate %19, %20 in 0 : vector<1x128xf32>, vector<35x128xf32> -> vector<36x128xf32>
      %22 = vector.extract_strided_slice %18 {offsets = [0, 128], sizes = [36, 128], strides = [1, 1]} : vector<36x384xf32> to vector<36x128xf32>
      %23 = vector.extract_strided_slice %18 {offsets = [1, 256], sizes = [35, 128], strides = [1, 1]} : vector<36x384xf32> to vector<35x128xf32>
      %24 = tpu.concatenate %23, %19 in 0 : vector<35x128xf32>, vector<1x128xf32> -> vector<36x128xf32>
      %25 = arith.addf %21, %22 : vector<36x128xf32>
      %26 = arith.addf %25, %24 : vector<36x128xf32>
      %c0_12 = arith.constant 0 : index
      %c0_13 = arith.constant 0 : index
      %27 = vector.load %arg5[%c0_12, %c0_13] : memref<36x128xf32, #tpu.memory_space<vmem>>, vector<36x128xf32>
      %28 = arith.mulf %26, %27 : vector<36x128xf32>
      %cst_14 = arith.constant dense<0.000000e+00> : vector<128xf32>
      %29 = vector.multi_reduction <add>, %28, %cst_14 [0] : vector<36x128xf32> to vector<128xf32>
      %30 = vector.shape_cast %29 : vector<128xf32> to vector<1x128xf32>
      %31 = arith.mulf %28, %28 : vector<36x128xf32>
      %cst_15 = arith.constant dense<0.000000e+00> : vector<128xf32>
      %32 = vector.multi_reduction <add>, %31, %cst_15 [0] : vector<36x128xf32> to vector<128xf32>
      %33 = vector.shape_cast %32 : vector<128xf32> to vector<1x128xf32>
      %c0_16 = arith.constant 0 : index
      %c0_17 = arith.constant 0 : index
      %34 = vector.load %arg9[%c0_16, %c0_17] : memref<2x128xf32, #tpu.memory_space<vmem>>, vector<2x128xf32>
      %35 = tpu.concatenate %30, %33 in 0 : vector<1x128xf32>, vector<1x128xf32> -> vector<2x128xf32>
      %36 = arith.addf %34, %35 : vector<2x128xf32>
      %c0_18 = arith.constant 0 : index
      %c0_19 = arith.constant 0 : index
      %37 = vector.load %arg9[%c0_18, %c0_19] : memref<2x128xf32, #tpu.memory_space<vmem>>, vector<2x128xf32>
      tpu.vector_store %arg9[%c0_18, %c0_19], %36 {strides = array<i32>} : memref<2x128xf32, #tpu.memory_space<vmem>>, vector<2x128xf32>,
    } else {
    }
    %c1_i32 = arith.constant 1 : i32
    %8 = arith.cmpi eq, %arg0, %c1_i32 : i32
    %c0_i32_4 = arith.constant 0 : i32
    %9 = arith.cmpi eq, %arg1, %c0_i32_4 : i32
    %10 = arith.andi %8, %9 : i1
    %11 = arith.extui %10 : i1 to i32
    %c0_i32_5 = arith.constant 0 : i32
    %12 = arith.cmpi ne, %11, %c0_i32_5 : i32
    scf.if %12 {
      %c0 = arith.constant 0 : index
      %c0_8 = arith.constant 0 : index
      %16 = vector.load %arg9[%c0, %c0_8] : memref<2x128xf32, #tpu.memory_space<vmem>>, vector<2x128xf32>
      %c0_9 = arith.constant 0 : index
      %c0_10 = arith.constant 0 : index
      %17 = vector.load %arg4[%c0_9, %c0_10] : memref<128x128xf32, #tpu.memory_space<vmem>>, vector<128x128xf32>
      %cst = arith.constant dense<0.000000e+00> : vector<2x128xf32>
      %18 = tpu.matmul %16, %17, %cst {dimension_numbers = #tpu.dot_dimension_numbers<[1], [0], [0], [1], [0, 0, 1, 1], [], []>} : vector<2x128xf32>, vector<128x128xf32>, vector<2x128xf32> -> vector<2x128xf32>
      %19 = vector.extract_strided_slice %18 {offsets = [0, 0], sizes = [1, 128], strides = [1, 1]} : vector<2x128xf32> to vector<1x128xf32>
      %cst_11 = arith.constant 0.001953125 : f32
      %20 = vector.broadcast %cst_11 : f32 to vector<1x128xf32>
      %21 = arith.mulf %19, %20 : vector<1x128xf32>
      %22 = vector.extract_strided_slice %18 {offsets = [1, 0], sizes = [1, 128], strides = [1, 1]} : vector<2x128xf32> to vector<1x128xf32>
      %cst_12 = arith.constant 0.001953125 : f32
      %23 = vector.broadcast %cst_12 : f32 to vector<1x128xf32>
      %24 = arith.mulf %22, %23 : vector<1x128xf32>
      %25 = arith.mulf %21, %21 : vector<1x128xf32>
      %26 = arith.subf %24, %25 : vector<1x128xf32>
      %cst_13 = arith.constant 0.000000e+00 : f32
      %27 = vector.broadcast %cst_13 : f32 to vector<1x128xf32>
      %28 = arith.maximumf %26, %27 : vector<1x128xf32>
      %c0_14 = arith.constant 0 : index
      %c0_15 = arith.constant 0 : index
      %29 = vector.load %arg6[%c0_14, %c0_15] : memref<1x128xf32, #tpu.memory_space<vmem>>, vector<1x128xf32>
      %cst_16 = arith.constant 9.99999974E-6 : f32
      %30 = vector.broadcast %cst_16 : f32 to vector<1x128xf32>
      %31 = arith.addf %28, %30 : vector<1x128xf32>
      %32 = math.rsqrt %31 : vector<1x128xf32>
      %33 = arith.mulf %29, %32 : vector<1x128xf32>
      %c0_17 = arith.constant 0 : index
      %c0_18 = arith.constant 0 : index
      %34 = vector.load %arg10[%c0_17, %c0_18] : memref<1x128xf32, #tpu.memory_space<vmem>>, vector<1x128xf32>
      tpu.vector_store %arg10[%c0_17, %c0_18], %33 {strides = array<i32>} : memref<1x128xf32, #tpu.memory_space<vmem>>, vector<1x128xf32>,
      %c0_19 = arith.constant 0 : index
      %c0_20 = arith.constant 0 : index
      %35 = vector.load %arg7[%c0_19, %c0_20] : memref<1x128xf32, #tpu.memory_space<vmem>>, vector<1x128xf32>
      %36 = arith.mulf %21, %33 : vector<1x128xf32>
      %37 = arith.subf %35, %36 : vector<1x128xf32>
      %c0_21 = arith.constant 0 : index
      %c0_22 = arith.constant 0 : index
      %38 = vector.load %arg11[%c0_21, %c0_22] : memref<1x128xf32, #tpu.memory_space<vmem>>, vector<1x128xf32>
      tpu.vector_store %arg11[%c0_21, %c0_22], %37 {strides = array<i32>} : memref<1x128xf32, #tpu.memory_space<vmem>>, vector<1x128xf32>,
    } else {
    }
    %c1_i32_6 = arith.constant 1 : i32
    %13 = arith.cmpi eq, %arg0, %c1_i32_6 : i32
    %14 = arith.extui %13 : i1 to i32
    %c0_i32_7 = arith.constant 0 : i32
    %15 = arith.cmpi ne, %14, %c0_i32_7 : i32
    scf.if %15 {
      %c0 = arith.constant 0 : index
      %c0_8 = arith.constant 0 : index
      %16 = vector.load %arg2[%c0, %c0_8] : memref<36x128xf32, #tpu.memory_space<vmem>>, vector<36x128xf32>
      %c0_9 = arith.constant 0 : index
      %c0_10 = arith.constant 0 : index
      %17 = vector.load %arg3[%c0_9, %c0_10] : memref<128x384xf32, #tpu.memory_space<vmem>>, vector<128x384xf32>
      %cst = arith.constant dense<0.000000e+00> : vector<36x384xf32>
      %18 = tpu.matmul %16, %17, %cst {dimension_numbers = #tpu.dot_dimension_numbers<[1], [0], [0], [1], [0, 0, 1, 1], [], []>} : vector<36x128xf32>, vector<128x384xf32>, vector<36x384xf32> -> vector<36x384xf32>
      %cst_11 = arith.constant 0.000000e+00 : f32
      %19 = vector.broadcast %cst_11 : f32 to vector<1x128xf32>
      %20 = vector.extract_strided_slice %18 {offsets = [0, 0], sizes = [35, 128], strides = [1, 1]} : vector<36x384xf32> to vector<35x128xf32>
      %21 = tpu.concatenate %19, %20 in 0 : vector<1x128xf32>, vector<35x128xf32> -> vector<36x128xf32>
      %22 = vector.extract_strided_slice %18 {offsets = [0, 128], sizes = [36, 128], strides = [1, 1]} : vector<36x384xf32> to vector<36x128xf32>
      %23 = vector.extract_strided_slice %18 {offsets = [1, 256], sizes = [35, 128], strides = [1, 1]} : vector<36x384xf32> to vector<35x128xf32>
      %24 = tpu.concatenate %23, %19 in 0 : vector<35x128xf32>, vector<1x128xf32> -> vector<36x128xf32>
      %25 = arith.addf %21, %22 : vector<36x128xf32>
      %26 = arith.addf %25, %24 : vector<36x128xf32>
      %c0_12 = arith.constant 0 : index
      %c0_13 = arith.constant 0 : index
      %27 = vector.load %arg10[%c0_12, %c0_13] : memref<1x128xf32, #tpu.memory_space<vmem>>, vector<1x128xf32>
      %28 = vector.broadcast %27 : vector<1x128xf32> to vector<36x128xf32>
      %29 = arith.mulf %26, %28 : vector<36x128xf32>
      %c0_14 = arith.constant 0 : index
      %c0_15 = arith.constant 0 : index
      %30 = vector.load %arg11[%c0_14, %c0_15] : memref<1x128xf32, #tpu.memory_space<vmem>>, vector<1x128xf32>
      %31 = vector.broadcast %30 : vector<1x128xf32> to vector<36x128xf32>
      %32 = arith.addf %29, %31 : vector<36x128xf32>
      %cst_16 = arith.constant 0.000000e+00 : f32
      %33 = vector.broadcast %cst_16 : f32 to vector<36x128xf32>
      %34 = arith.maximumf %32, %33 : vector<36x128xf32>
      %c0_17 = arith.constant 0 : index
      %c0_18 = arith.constant 0 : index
      %35 = vector.load %arg5[%c0_17, %c0_18] : memref<36x128xf32, #tpu.memory_space<vmem>>, vector<36x128xf32>
      %36 = arith.mulf %34, %35 : vector<36x128xf32>
      %c0_19 = arith.constant 0 : index
      %c0_20 = arith.constant 0 : index
      %37 = vector.load %arg8[%c0_19, %c0_20] : memref<36x128xf32, #tpu.memory_space<vmem>>, vector<36x128xf32>
      tpu.vector_store %arg8[%c0_19, %c0_20], %36 {strides = array<i32>} : memref<36x128xf32, #tpu.memory_space<vmem>>, vector<36x128xf32>,
    } else {
    }
    return
  }
  func.func @transform_0(%arg0: i32, %arg1: i32) -> (i32, i32) {
    %c0_i32 = arith.constant 0 : i32
    %c0_i32_0 = arith.constant 0 : i32
    return %arg1, %c0_i32 : i32, i32
  }
  func.func @transform_1(%arg0: i32, %arg1: i32) -> (i32, i32) {
    %c0_i32 = arith.constant 0 : i32
    %c0_i32_0 = arith.constant 0 : i32
    %c0_i32_1 = arith.constant 0 : i32
    return %c0_i32, %c0_i32_0 : i32, i32
  }
  func.func @transform_2(%arg0: i32, %arg1: i32) -> (i32, i32) {
    %c0_i32 = arith.constant 0 : i32
    %c0_i32_0 = arith.constant 0 : i32
    %c0_i32_1 = arith.constant 0 : i32
    return %c0_i32, %c0_i32_0 : i32, i32
  }
  func.func @transform_3(%arg0: i32, %arg1: i32) -> (i32, i32) {
    %c0_i32 = arith.constant 0 : i32
    %c0_i32_0 = arith.constant 0 : i32
    %c0_i32_1 = arith.constant 0 : i32
    return %c0_i32, %c0_i32_0 : i32, i32
  }
  func.func @transform_4(%arg0: i32, %arg1: i32) -> (i32, i32) {
    %c0_i32 = arith.constant 0 : i32
    %c0_i32_0 = arith.constant 0 : i32
    %c0_i32_1 = arith.constant 0 : i32
    return %c0_i32, %c0_i32_0 : i32, i32
  }
  func.func @transform_5(%arg0: i32, %arg1: i32) -> (i32, i32) {
    %c0_i32 = arith.constant 0 : i32
    %c0_i32_0 = arith.constant 0 : i32
    %c0_i32_1 = arith.constant 0 : i32
    return %c0_i32, %c0_i32_0 : i32, i32
  }
  func.func @transform_6(%arg0: i32, %arg1: i32) -> (i32, i32) {
    %0 = arith.muli %arg1, %arg0 : i32
    %c0_i32 = arith.constant 0 : i32
    %c0_i32_0 = arith.constant 0 : i32
    return %0, %c0_i32 : i32, i32
  }
}

module attributes {stable_mosaic.version = 11 : i64} {
  func.func @_stage_kernel(%arg0: i32, %arg1: i32, %arg2: memref<36x128xf32, #tpu.memory_space<vmem>>, %arg3: memref<128x384xf32, #tpu.memory_space<vmem>>, %arg4: memref<128x128xf32, #tpu.memory_space<vmem>>, %arg5: memref<36x128xf32, #tpu.memory_space<vmem>>, %arg6: memref<1x128xf32, #tpu.memory_space<vmem>>, %arg7: memref<1x128xf32, #tpu.memory_space<vmem>>, %arg8: memref<36x128xf32, #tpu.memory_space<vmem>>, %arg9: memref<36x128xf32, #tpu.memory_space<vmem>>, %arg10: memref<2x128xf32, #tpu.memory_space<vmem>>, %arg11: memref<1x128xf32, #tpu.memory_space<vmem>>, %arg12: memref<1x128xf32, #tpu.memory_space<vmem>>) attributes {dimension_semantics = [#tpu.dimension_semantics<arbitrary>, #tpu.dimension_semantics<arbitrary>], iteration_bounds = array<i64: 2, 1>, scalar_prefetch = 0 : i64, scratch_operands = 3 : i64, tpu.core_type = #tpu.core_type<tc>, window_params = [{transform_indices = @transform_0, window_bounds = array<i64: 36, 128>}, {pipeline_mode = #tpu.pipeline_mode<synchronous>, transform_indices = @transform_1, window_bounds = array<i64: 128, 384>}, {pipeline_mode = #tpu.pipeline_mode<synchronous>, transform_indices = @transform_2, window_bounds = array<i64: 128, 128>}, {pipeline_mode = #tpu.pipeline_mode<synchronous>, transform_indices = @transform_3, window_bounds = array<i64: 36, 128>}, {pipeline_mode = #tpu.pipeline_mode<synchronous>, transform_indices = @transform_4, window_bounds = array<i64: 1, 128>}, {pipeline_mode = #tpu.pipeline_mode<synchronous>, transform_indices = @transform_5, window_bounds = array<i64: 1, 128>}, {transform_indices = @transform_6, window_bounds = array<i64: 36, 128>}, {transform_indices = @transform_7, window_bounds = array<i64: 36, 128>}]} {
    %c0_i32 = arith.constant 0 : i32
    %0 = arith.cmpi eq, %arg0, %c0_i32 : i32
    %c0_i32_0 = arith.constant 0 : i32
    %1 = arith.cmpi eq, %arg1, %c0_i32_0 : i32
    %2 = arith.andi %0, %1 : i1
    %3 = arith.extui %2 : i1 to i32
    %c0_i32_1 = arith.constant 0 : i32
    %4 = arith.cmpi ne, %3, %c0_i32_1 : i32
    scf.if %4 {
      %cst = arith.constant 0.000000e+00 : f32
      %16 = vector.broadcast %cst : f32 to vector<2x128xf32>
      %c0 = arith.constant 0 : index
      %c0_8 = arith.constant 0 : index
      %17 = vector.load %arg10[%c0, %c0_8] : memref<2x128xf32, #tpu.memory_space<vmem>>, vector<2x128xf32>
      tpu.vector_store %arg10[%c0, %c0_8], %16 {strides = array<i32>} : memref<2x128xf32, #tpu.memory_space<vmem>>, vector<2x128xf32>,
    } else {
    }
    %c0_i32_2 = arith.constant 0 : i32
    %5 = arith.cmpi eq, %arg0, %c0_i32_2 : i32
    %6 = arith.extui %5 : i1 to i32
    %c0_i32_3 = arith.constant 0 : i32
    %7 = arith.cmpi ne, %6, %c0_i32_3 : i32
    scf.if %7 {
      %c0 = arith.constant 0 : index
      %c0_8 = arith.constant 0 : index
      %16 = vector.load %arg2[%c0, %c0_8] : memref<36x128xf32, #tpu.memory_space<vmem>>, vector<36x128xf32>
      %c0_9 = arith.constant 0 : index
      %c0_10 = arith.constant 0 : index
      %17 = vector.load %arg3[%c0_9, %c0_10] : memref<128x384xf32, #tpu.memory_space<vmem>>, vector<128x384xf32>
      %cst = arith.constant dense<0.000000e+00> : vector<36x384xf32>
      %18 = tpu.matmul %16, %17, %cst {dimension_numbers = #tpu.dot_dimension_numbers<[1], [0], [0], [1], [0, 0, 1, 1], [], []>} : vector<36x128xf32>, vector<128x384xf32>, vector<36x384xf32> -> vector<36x384xf32>
      %cst_11 = arith.constant 0.000000e+00 : f32
      %19 = vector.broadcast %cst_11 : f32 to vector<1x128xf32>
      %20 = vector.extract_strided_slice %18 {offsets = [0, 0], sizes = [35, 128], strides = [1, 1]} : vector<36x384xf32> to vector<35x128xf32>
      %21 = tpu.concatenate %19, %20 in 0 : vector<1x128xf32>, vector<35x128xf32> -> vector<36x128xf32>
      %22 = vector.extract_strided_slice %18 {offsets = [0, 128], sizes = [36, 128], strides = [1, 1]} : vector<36x384xf32> to vector<36x128xf32>
      %23 = vector.extract_strided_slice %18 {offsets = [1, 256], sizes = [35, 128], strides = [1, 1]} : vector<36x384xf32> to vector<35x128xf32>
      %24 = tpu.concatenate %23, %19 in 0 : vector<35x128xf32>, vector<1x128xf32> -> vector<36x128xf32>
      %25 = arith.addf %21, %22 : vector<36x128xf32>
      %26 = arith.addf %25, %24 : vector<36x128xf32>
      %c0_12 = arith.constant 0 : index
      %c0_13 = arith.constant 0 : index
      %27 = vector.load %arg5[%c0_12, %c0_13] : memref<36x128xf32, #tpu.memory_space<vmem>>, vector<36x128xf32>
      %28 = arith.mulf %26, %27 : vector<36x128xf32>
      %cst_14 = arith.constant dense<0.000000e+00> : vector<128xf32>
      %29 = vector.multi_reduction <add>, %28, %cst_14 [0] : vector<36x128xf32> to vector<128xf32>
      %30 = vector.shape_cast %29 : vector<128xf32> to vector<1x128xf32>
      %31 = arith.mulf %28, %28 : vector<36x128xf32>
      %cst_15 = arith.constant dense<0.000000e+00> : vector<128xf32>
      %32 = vector.multi_reduction <add>, %31, %cst_15 [0] : vector<36x128xf32> to vector<128xf32>
      %33 = vector.shape_cast %32 : vector<128xf32> to vector<1x128xf32>
      %c0_16 = arith.constant 0 : index
      %c0_17 = arith.constant 0 : index
      %34 = vector.load %arg10[%c0_16, %c0_17] : memref<2x128xf32, #tpu.memory_space<vmem>>, vector<2x128xf32>
      %35 = tpu.concatenate %30, %33 in 0 : vector<1x128xf32>, vector<1x128xf32> -> vector<2x128xf32>
      %36 = arith.addf %34, %35 : vector<2x128xf32>
      %c0_18 = arith.constant 0 : index
      %c0_19 = arith.constant 0 : index
      %37 = vector.load %arg10[%c0_18, %c0_19] : memref<2x128xf32, #tpu.memory_space<vmem>>, vector<2x128xf32>
      tpu.vector_store %arg10[%c0_18, %c0_19], %36 {strides = array<i32>} : memref<2x128xf32, #tpu.memory_space<vmem>>, vector<2x128xf32>,
    } else {
    }
    %c1_i32 = arith.constant 1 : i32
    %8 = arith.cmpi eq, %arg0, %c1_i32 : i32
    %c0_i32_4 = arith.constant 0 : i32
    %9 = arith.cmpi eq, %arg1, %c0_i32_4 : i32
    %10 = arith.andi %8, %9 : i1
    %11 = arith.extui %10 : i1 to i32
    %c0_i32_5 = arith.constant 0 : i32
    %12 = arith.cmpi ne, %11, %c0_i32_5 : i32
    scf.if %12 {
      %c0 = arith.constant 0 : index
      %c0_8 = arith.constant 0 : index
      %16 = vector.load %arg10[%c0, %c0_8] : memref<2x128xf32, #tpu.memory_space<vmem>>, vector<2x128xf32>
      %c0_9 = arith.constant 0 : index
      %c0_10 = arith.constant 0 : index
      %17 = vector.load %arg4[%c0_9, %c0_10] : memref<128x128xf32, #tpu.memory_space<vmem>>, vector<128x128xf32>
      %cst = arith.constant dense<0.000000e+00> : vector<2x128xf32>
      %18 = tpu.matmul %16, %17, %cst {dimension_numbers = #tpu.dot_dimension_numbers<[1], [0], [0], [1], [0, 0, 1, 1], [], []>} : vector<2x128xf32>, vector<128x128xf32>, vector<2x128xf32> -> vector<2x128xf32>
      %19 = vector.extract_strided_slice %18 {offsets = [0, 0], sizes = [1, 128], strides = [1, 1]} : vector<2x128xf32> to vector<1x128xf32>
      %cst_11 = arith.constant 0.001953125 : f32
      %20 = vector.broadcast %cst_11 : f32 to vector<1x128xf32>
      %21 = arith.mulf %19, %20 : vector<1x128xf32>
      %22 = vector.extract_strided_slice %18 {offsets = [1, 0], sizes = [1, 128], strides = [1, 1]} : vector<2x128xf32> to vector<1x128xf32>
      %cst_12 = arith.constant 0.001953125 : f32
      %23 = vector.broadcast %cst_12 : f32 to vector<1x128xf32>
      %24 = arith.mulf %22, %23 : vector<1x128xf32>
      %25 = arith.mulf %21, %21 : vector<1x128xf32>
      %26 = arith.subf %24, %25 : vector<1x128xf32>
      %cst_13 = arith.constant 0.000000e+00 : f32
      %27 = vector.broadcast %cst_13 : f32 to vector<1x128xf32>
      %28 = arith.maximumf %26, %27 : vector<1x128xf32>
      %c0_14 = arith.constant 0 : index
      %c0_15 = arith.constant 0 : index
      %29 = vector.load %arg6[%c0_14, %c0_15] : memref<1x128xf32, #tpu.memory_space<vmem>>, vector<1x128xf32>
      %cst_16 = arith.constant 9.99999974E-6 : f32
      %30 = vector.broadcast %cst_16 : f32 to vector<1x128xf32>
      %31 = arith.addf %28, %30 : vector<1x128xf32>
      %32 = math.rsqrt %31 : vector<1x128xf32>
      %33 = arith.mulf %29, %32 : vector<1x128xf32>
      %c0_17 = arith.constant 0 : index
      %c0_18 = arith.constant 0 : index
      %34 = vector.load %arg11[%c0_17, %c0_18] : memref<1x128xf32, #tpu.memory_space<vmem>>, vector<1x128xf32>
      tpu.vector_store %arg11[%c0_17, %c0_18], %33 {strides = array<i32>} : memref<1x128xf32, #tpu.memory_space<vmem>>, vector<1x128xf32>,
      %c0_19 = arith.constant 0 : index
      %c0_20 = arith.constant 0 : index
      %35 = vector.load %arg7[%c0_19, %c0_20] : memref<1x128xf32, #tpu.memory_space<vmem>>, vector<1x128xf32>
      %36 = arith.mulf %21, %33 : vector<1x128xf32>
      %37 = arith.subf %35, %36 : vector<1x128xf32>
      %c0_21 = arith.constant 0 : index
      %c0_22 = arith.constant 0 : index
      %38 = vector.load %arg12[%c0_21, %c0_22] : memref<1x128xf32, #tpu.memory_space<vmem>>, vector<1x128xf32>
      tpu.vector_store %arg12[%c0_21, %c0_22], %37 {strides = array<i32>} : memref<1x128xf32, #tpu.memory_space<vmem>>, vector<1x128xf32>,
    } else {
    }
    %c1_i32_6 = arith.constant 1 : i32
    %13 = arith.cmpi eq, %arg0, %c1_i32_6 : i32
    %14 = arith.extui %13 : i1 to i32
    %c0_i32_7 = arith.constant 0 : i32
    %15 = arith.cmpi ne, %14, %c0_i32_7 : i32
    scf.if %15 {
      %c0 = arith.constant 0 : index
      %c0_8 = arith.constant 0 : index
      %16 = vector.load %arg2[%c0, %c0_8] : memref<36x128xf32, #tpu.memory_space<vmem>>, vector<36x128xf32>
      %c0_9 = arith.constant 0 : index
      %c0_10 = arith.constant 0 : index
      %17 = vector.load %arg3[%c0_9, %c0_10] : memref<128x384xf32, #tpu.memory_space<vmem>>, vector<128x384xf32>
      %cst = arith.constant dense<0.000000e+00> : vector<36x384xf32>
      %18 = tpu.matmul %16, %17, %cst {dimension_numbers = #tpu.dot_dimension_numbers<[1], [0], [0], [1], [0, 0, 1, 1], [], []>} : vector<36x128xf32>, vector<128x384xf32>, vector<36x384xf32> -> vector<36x384xf32>
      %cst_11 = arith.constant 0.000000e+00 : f32
      %19 = vector.broadcast %cst_11 : f32 to vector<1x128xf32>
      %20 = vector.extract_strided_slice %18 {offsets = [0, 0], sizes = [35, 128], strides = [1, 1]} : vector<36x384xf32> to vector<35x128xf32>
      %21 = tpu.concatenate %19, %20 in 0 : vector<1x128xf32>, vector<35x128xf32> -> vector<36x128xf32>
      %22 = vector.extract_strided_slice %18 {offsets = [0, 128], sizes = [36, 128], strides = [1, 1]} : vector<36x384xf32> to vector<36x128xf32>
      %23 = vector.extract_strided_slice %18 {offsets = [1, 256], sizes = [35, 128], strides = [1, 1]} : vector<36x384xf32> to vector<35x128xf32>
      %24 = tpu.concatenate %23, %19 in 0 : vector<35x128xf32>, vector<1x128xf32> -> vector<36x128xf32>
      %25 = arith.addf %21, %22 : vector<36x128xf32>
      %26 = arith.addf %25, %24 : vector<36x128xf32>
      %c0_12 = arith.constant 0 : index
      %c0_13 = arith.constant 0 : index
      %27 = vector.load %arg11[%c0_12, %c0_13] : memref<1x128xf32, #tpu.memory_space<vmem>>, vector<1x128xf32>
      %28 = vector.broadcast %27 : vector<1x128xf32> to vector<36x128xf32>
      %29 = arith.mulf %26, %28 : vector<36x128xf32>
      %c0_14 = arith.constant 0 : index
      %c0_15 = arith.constant 0 : index
      %30 = vector.load %arg12[%c0_14, %c0_15] : memref<1x128xf32, #tpu.memory_space<vmem>>, vector<1x128xf32>
      %31 = vector.broadcast %30 : vector<1x128xf32> to vector<36x128xf32>
      %32 = arith.addf %29, %31 : vector<36x128xf32>
      %c0_16 = arith.constant 0 : index
      %c0_17 = arith.constant 0 : index
      %33 = vector.load %arg8[%c0_16, %c0_17] : memref<36x128xf32, #tpu.memory_space<vmem>>, vector<36x128xf32>
      %34 = arith.addf %32, %33 : vector<36x128xf32>
      %cst_18 = arith.constant 0.000000e+00 : f32
      %35 = vector.broadcast %cst_18 : f32 to vector<36x128xf32>
      %36 = arith.maximumf %34, %35 : vector<36x128xf32>
      %c0_19 = arith.constant 0 : index
      %c0_20 = arith.constant 0 : index
      %37 = vector.load %arg5[%c0_19, %c0_20] : memref<36x128xf32, #tpu.memory_space<vmem>>, vector<36x128xf32>
      %38 = arith.mulf %36, %37 : vector<36x128xf32>
      %c0_21 = arith.constant 0 : index
      %c0_22 = arith.constant 0 : index
      %39 = vector.load %arg9[%c0_21, %c0_22] : memref<36x128xf32, #tpu.memory_space<vmem>>, vector<36x128xf32>
      tpu.vector_store %arg9[%c0_21, %c0_22], %38 {strides = array<i32>} : memref<36x128xf32, #tpu.memory_space<vmem>>, vector<36x128xf32>,
    } else {
    }
    return
  }
  func.func @transform_0(%arg0: i32, %arg1: i32) -> (i32, i32) {
    %c0_i32 = arith.constant 0 : i32
    %c0_i32_0 = arith.constant 0 : i32
    return %arg1, %c0_i32 : i32, i32
  }
  func.func @transform_1(%arg0: i32, %arg1: i32) -> (i32, i32) {
    %c0_i32 = arith.constant 0 : i32
    %c0_i32_0 = arith.constant 0 : i32
    %c0_i32_1 = arith.constant 0 : i32
    return %c0_i32, %c0_i32_0 : i32, i32
  }
  func.func @transform_2(%arg0: i32, %arg1: i32) -> (i32, i32) {
    %c0_i32 = arith.constant 0 : i32
    %c0_i32_0 = arith.constant 0 : i32
    %c0_i32_1 = arith.constant 0 : i32
    return %c0_i32, %c0_i32_0 : i32, i32
  }
  func.func @transform_3(%arg0: i32, %arg1: i32) -> (i32, i32) {
    %c0_i32 = arith.constant 0 : i32
    %c0_i32_0 = arith.constant 0 : i32
    %c0_i32_1 = arith.constant 0 : i32
    return %c0_i32, %c0_i32_0 : i32, i32
  }
  func.func @transform_4(%arg0: i32, %arg1: i32) -> (i32, i32) {
    %c0_i32 = arith.constant 0 : i32
    %c0_i32_0 = arith.constant 0 : i32
    %c0_i32_1 = arith.constant 0 : i32
    return %c0_i32, %c0_i32_0 : i32, i32
  }
  func.func @transform_5(%arg0: i32, %arg1: i32) -> (i32, i32) {
    %c0_i32 = arith.constant 0 : i32
    %c0_i32_0 = arith.constant 0 : i32
    %c0_i32_1 = arith.constant 0 : i32
    return %c0_i32, %c0_i32_0 : i32, i32
  }
  func.func @transform_6(%arg0: i32, %arg1: i32) -> (i32, i32) {
    %0 = arith.muli %arg1, %arg0 : i32
    %c0_i32 = arith.constant 0 : i32
    %c0_i32_0 = arith.constant 0 : i32
    return %0, %c0_i32 : i32, i32
  }
  func.func @transform_7(%arg0: i32, %arg1: i32) -> (i32, i32) {
    %0 = arith.muli %arg1, %arg0 : i32
    %c0_i32 = arith.constant 0 : i32
    %c0_i32_0 = arith.constant 0 : i32
    return %0, %c0_i32 : i32, i32
  }
}

</mosaic_0001>

<llo_original>
// kernel: tile.43
$region0: #{tile.43}
  #allocation0 [shape = 's32[1]{0}', space=sflag, size = 0x4, scoped, tag = 'scoped memory for tile.43']
  %s0 = inlined_call_operand.vmem [shape: f32[8], index: 0, kind: input, shape index: {}]
  %s1 = inlined_call_operand.vmem [shape: f32[16,8], index: 1, kind: output, shape index: {}]
  // Predicated region
  $region2: #{tile.43} parent=0 // pred_check
    _
  $region3: #{tile.43} parent=0 // pred_check_branch
    %3 = sbr.rel (0) target = $region5
  $region4: #{tile.43} parent=0 // pred_region
    _
  $region5: #{tile.43} parent=0 // pred_fallthru
    _
  %v4 = vld [vmem:[%s0] ss:$0 sm:$0xff]
  %5 = vst [vmem:[%s1] sm:$0xff] %v4
  %s6 = scalar_lea.vmem %s1, 8
  %7 = vst [vmem:[%s6] sm:$0xff] %v4

// kernel: tile.44
$region0: #{tile.44}
  %s0 = inlined_call_operand.vmem [shape: f32[16,8], index: 0, kind: input, shape index: {}]
  %s1 = inlined_call_operand.vmem [shape: f32[1,128], index: 1, kind: output, shape index: {}]
  $region1: #{tile.44} parent=0
    #allocation0 [shape = 'u8[4096]{0}', space=vmem, size = 0x1000, scoped, tag = 'scoped mem for output reshape']
    %v2 = vld [vmem:[%s0] sm:$0x1]
    %vm3 = vcmask 64512
    %4 = vst.msk [vmem:[#allocation0] sm:$0x1] %vm3, %v2
    %s5 = scalar_lea.vmem %s0, 15
    %v6 = vld [vmem:[%s5] sm:$0x1]
    %7 = vrot.lane.b32.xlu0 %v6, 120
    %v8 = vpop.permute.xlu0 %7
    %vm9 = vcmask 1048512
    %10 = vst.msk [vmem:[#allocation0] sm:$0x1] %vm9, %v8
    %s11 = scalar_lea.vmem %s0, 14
    %v12 = vld [vmem:[%s11] sm:$0x1]
    %13 = vrot.lane.b32.xlu0 %v12, 112
    %v14 = vpop.permute.xlu0 %13
    %vm15 = vcmask 982912
    %16 = vst.msk [vmem:[#allocation0] sm:$0x1] %vm15, %v14
    %s17 = scalar_lea.vmem %s0, 13
    %v18 = vld [vmem:[%s17] sm:$0x1]
    %19 = vrot.lane.b32.xlu0 %v18, 104
    %v20 = vpop.permute.xlu0 %19
    %vm21 = vcmask 917312
    %22 = vst.msk [vmem:[#allocation0] sm:$0x1] %vm21, %v20
    %s23 = scalar_lea.vmem %s0, 12
    %v24 = vld [vmem:[%s23] sm:$0x1]
    %25 = vrot.lane.b32.xlu0 %v24, 96
    %v26 = vpop.permute.xlu0 %25
    %vm27 = vcmask 851712
    %28 = vst.msk [vmem:[#allocation0] sm:$0x1] %vm27, %v26
    %s29 = scalar_lea.vmem %s0, 11
    %v30 = vld [vmem:[%s29] sm:$0x1]
    %31 = vrot.lane.b32.xlu0 %v30, 88
    %v32 = vpop.permute.xlu0 %31
    %vm33 = vcmask 786112
    %34 = vst.msk [vmem:[#allocation0] sm:$0x1] %vm33, %v32
    %s35 = scalar_lea.vmem %s0, 10
    %v36 = vld [vmem:[%s35] sm:$0x1]
    %37 = vrot.lane.b32.xlu0 %v36, 80
    %v38 = vpop.permute.xlu0 %37
    %vm39 = vcmask 720512
    %40 = vst.msk [vmem:[#allocation0] sm:$0x1] %vm39, %v38
    %s41 = scalar_lea.vmem %s0, 9
    %v42 = vld [vmem:[%s41] sm:$0x1]
    %43 = vrot.lane.b32.xlu0 %v42, 72
    %v44 = vpop.permute.xlu0 %43
    %vm45 = vcmask 654912
    %46 = vst.msk [vmem:[#allocation0] sm:$0x1] %vm45, %v44
    %s47 = scalar_lea.vmem %s0, 8
    %v48 = vld [vmem:[%s47] sm:$0x1]
    %49 = vrot.lane.b32.xlu0 %v48, 64
    %v50 = vpop.permute.xlu0 %49
    %vm51 = vcmask 589312
    %52 = vst.msk [vmem:[#allocation0] sm:$0x1] %vm51, %v50
    %s53 = scalar_lea.vmem %s0, 7
    %v54 = vld [vmem:[%s53] sm:$0x1]
    %55 = vrot.lane.b32.xlu0 %v54, 56
    %v56 = vpop.permute.xlu0 %55
    %vm57 = vcmask 523712
    %58 = vst.msk [vmem:[#allocation0] sm:$0x1] %vm57, %v56
    %s59 = scalar_lea.vmem %s0, 6
    %v60 = vld [vmem:[%s59] sm:$0x1]
    %61 = vrot.lane.b32.xlu0 %v60, 48
    %v62 = vpop.permute.xlu0 %61
    %vm63 = vcmask 458112
    %64 = vst.msk [vmem:[#allocation0] sm:$0x1] %vm63, %v62
    %s65 = scalar_lea.vmem %s0, 5
    %v66 = vld [vmem:[%s65] sm:$0x1]
    %67 = vrot.lane.b32.xlu0 %v66, 40
    %v68 = vpop.permute.xlu0 %67
    %vm69 = vcmask 392512
    %70 = vst.msk [vmem:[#allocation0] sm:$0x1] %vm69, %v68
    %s71 = scalar_lea.vmem %s0, 4
    %v72 = vld [vmem:[%s71] sm:$0x1]
    %73 = vrot.lane.b32.xlu0 %v72, 32
    %v74 = vpop.permute.xlu0 %73
    %vm75 = vcmask 326912
    %76 = vst.msk [vmem:[#allocation0] sm:$0x1] %vm75, %v74
    %s77 = scalar_lea.vmem %s0, 3
    %v78 = vld [vmem:[%s77] sm:$0x1]
    %79 = vrot.lane.b32.xlu0 %v78, 24
    %v80 = vpop.permute.xlu0 %79
    %vm81 = vcmask 261312
    %82 = vst.msk [vmem:[#allocation0] sm:$0x1] %vm81, %v80
    %s83 = scalar_lea.vmem %s0, 2
    %v84 = vld [vmem:[%s83] sm:$0x1]
    %85 = vrot.lane.b32.xlu0 %v84, 16
    %v86 = vpop.permute.xlu0 %85
    %vm87 = vcmask 195712
    %88 = vst.msk [vmem:[#allocation0] sm:$0x1] %vm87, %v86
    %s89 = scalar_lea.vmem %s0, 1
    %v90 = vld [vmem:[%s89] sm:$0x1]
    %91 = vrot.lane.b32.xlu0 %v90, 8
    %v92 = vpop.permute.xlu0 %91
    %vm93 = vcmask 130112
    %94 = vst.msk [vmem:[#allocation0] sm:$0x1] %vm93, %v92
    %s96 = sshll.u32 1, 1
    %s97 = ssub.s32 %s96, 1
    %v99 = vld [vmem:[#allocation0] sm:%s97]
    %s100 = sshll.u32 1, 1
    %s101 = ssub.s32 %s100, 1
    %102 = vst [vmem:[%s1] sm:%s101] %v99

// kernel: resblock_forward.3
$region0: #{resblock_forward.3}
  #allocation0 [shape = 'u32[]', space=smem, size = 0x4, offset = 0x4, fixed_abs, tag = 'smem constant byte address 0x4 - core index']
  #allocation1 [shape = 'u32[144,128]{1,0:T(1,128)}', space=vmem, size = 0x12000, scoped, tag = 'internal scratch']
  #allocation2 [shape = 'f32[2,128]{1,0:T(2,128)}', space=vmem, size = 0x400, scoped, tag = 'scratch operand']
  #allocation3 [shape = 'f32[1,128]{1,0:T(1,128)}', space=vmem, size = 0x200, scoped, tag = 'scratch operand']
  #allocation4 [shape = 'f32[1,128]{1,0:T(1,128)}', space=vmem, size = 0x200, scoped, tag = 'scratch operand']
  %s0 = inlined_call_operand.vmem [shape: f32[36,64], index: 0, kind: input, shape index: {}]
  %s1 = inlined_call_operand.vmem [shape: f32[64,384], index: 1, kind: input, shape index: {}]
  %s2 = inlined_call_operand.vmem [shape: f32[128,128], index: 2, kind: input, shape index: {}]
  %s3 = inlined_call_operand.vmem [shape: f32[36,128], index: 3, kind: input, shape index: {}]
  %s4 = inlined_call_operand.vmem [shape: f32[1,128], index: 4, kind: input, shape index: {}]
  %s5 = inlined_call_operand.vmem [shape: f32[1,128], index: 5, kind: input, shape index: {}]
  %s6 = inlined_call_operand.vmem [shape: f32[36,128], index: 6, kind: output, shape index: {0}]
  %s7 = inlined_call_operand.vmem [shape: f32[36,128], index: 7, kind: output, shape index: {1}]
  %8 = xla_tuple %s6, %s7
  %s9 = sld [smem:[#allocation0]]
  $region81: #{resblock_forward.3} parent=0
    _
  %s11 = ssub.s32 1, %s9
  %s12 = scalar_select 0, %s11, %s9
  loop: start=0, step=1, limit=4
  $region2: #{resblock_forward.3} parent=0 // loop_pre_header
    _
  $region3: #{resblock_forward.3} parent=0 // loop_header
    %s14 = sphi 0, %s18
    %p15 = scmp.ge.s32.totalorder %s14, 4
    %s21 = sphi 0, %s33
    %s22 = sphi 0, %s29
    %s23 = sphi 0, %s21
    %s24 = sphi 0, %s22
    %s25 = sphi 0, %s23
    %s26 = sphi 0, %s24
    %s36 = sphi 0, %s38
    %s39 = sphi 0, %s36
    %s40 = sphi 0, %s39
    %s56 = sphi 0, %s40
    %s60 = sphi 0, %s60
    %s62 = sphi 0, %s60
    %s63 = sphi 0, %s62
    %s77 = sphi 0, %s63
    %s81 = sphi 0, %s81
    %s83 = sphi 0, %s81
    %s84 = sphi 0, %s83
    %s98 = sphi 0, %s84
    %s102 = sphi 0, %s102
    %s104 = sphi 0, %s102
    %s105 = sphi 0, %s104
    %s119 = sphi 0, %s105
    %s123 = sphi 0, %s123
    %s125 = sphi 0, %s123
    %s126 = sphi 0, %s125
    %s140 = sphi 0, %s126
    %s144 = sphi 0, %s144
    %s146 = sphi 0, %s144
    %s147 = sphi 0, %s146
    %s161 = sphi 0, %s147
    %s169 = sphi 0, %s171
    %s172 = sphi 0, %s169
    %s173 = sphi 0, %s172
    %s189 = sphi 0, %s173
    %s197 = sphi 0, %s199
    %s200 = sphi 0, %s197
    %s201 = sphi 0, %s200
    %s217 = sphi 0, %s201
  $region4: #{resblock_forward.3} parent=0 // loop_header_branch
    %17 = sbr.rel (%p15) target = $region8
  $region5: #{resblock_forward.3} parent=0 // loop_body
    %s19 = ssub.s32 %s14, 1
    %s20 = ssub.s32 %s14, 2
    %s27 = sadd.s32 1, %s22
    %p28 = scmp.ge.s32.totalorder %s27, 1
    %s29 = scalar_select %p28, 0, %s27
    %s30 = sadd.s32 1, %s21
    %s31 = scalar_select %p28, %s30, %s21
    %p32 = scmp.ge.s32.totalorder %s31, 2
    %s33 = scalar_select %p32, 0, %s31
    %s34 = ssub.s32 %s22, %s29
    %p35 = scmp.eq.s32.totalorder %s34, 0
    %s37 = sadd.s32 %s36, 1
    %s38 = scalar_select %p35, %s36, %s37
    %p41 = pneg %p35
    %p42 = scmp.eq.s32.totalorder %s14, 1
    %p43 = por %p41, %p42
    %p44 = scmp.ne.s32.totalorder %s36, %s39
    %p45 = scmp.eq.s32.totalorder %s14, 0
    %p46 = por %p44, %p45
    %p47 = scmp.ne.s32.totalorder %s36, %s39
    %p48 = scmp.eq.s32.totalorder %s19, 1
    %p49 = por %p47, %p48
    %p50 = scmp.ne.s32.totalorder %s39, %s40
    %p51 = scmp.eq.s32.totalorder %s19, 0
    %p52 = por %p50, %p51
    %p53 = scmp.ne.s32.totalorder %s39, %s40
    %p54 = scmp.eq.s32.totalorder %s20, 1
    %p55 = por %p53, %p54
    %p57 = scmp.ne.s32.totalorder %s40, %s56
    %p58 = scmp.eq.s32.totalorder %s20, 0
    %p59 = por %p57, %p58
    %s61 = sadd.s32 %s60, 1
    %p64 = scmp.eq.s32.totalorder %s14, 1
    %p65 = scmp.ne.s32.totalorder %s60, %s62
    %p66 = scmp.eq.s32.totalorder %s14, 0
    %p67 = por %p65, %p66
    %p68 = scmp.ne.s32.totalorder %s60, %s62
    %p69 = scmp.eq.s32.totalorder %s19, 1
    %p70 = por %p68, %p69
    %p71 = scmp.ne.s32.totalorder %s62, %s63
    %p72 = scmp.eq.s32.totalorder %s19, 0
    %p73 = por %p71, %p72
    %p74 = scmp.ne.s32.totalorder %s62, %s63
    %p75 = scmp.eq.s32.totalorder %s20, 1
    %p76 = por %p74, %p75
    %p78 = scmp.ne.s32.totalorder %s63, %s77
    %p79 = scmp.eq.s32.totalorder %s20, 0
    %p80 = por %p78, %p79
    %s82 = sadd.s32 %s81, 1
    %p85 = scmp.eq.s32.totalorder %s14, 1
    %p86 = scmp.ne.s32.totalorder %s81, %s83
    %p87 = scmp.eq.s32.totalorder %s14, 0
    %p88 = por %p86, %p87
    %p89 = scmp.ne.s32.totalorder %s81, %s83
    %p90 = scmp.eq.s32.totalorder %s19, 1
    %p91 = por %p89, %p90
    %p92 = scmp.ne.s32.totalorder %s83, %s84
    %p93 = scmp.eq.s32.totalorder %s19, 0
    %p94 = por %p92, %p93
    %p95 = scmp.ne.s32.totalorder %s83, %s84
    %p96 = scmp.eq.s32.totalorder %s20, 1
    %p97 = por %p95, %p96
    %p99 = scmp.ne.s32.totalorder %s84, %s98
    %p100 = scmp.eq.s32.totalorder %s20, 0
    %p101 = por %p99, %p100
    %s103 = sadd.s32 %s102, 1
    %p106 = scmp.eq.s32.totalorder %s14, 1
    %p107 = scmp.ne.s32.totalorder %s102, %s104
    %p108 = scmp.eq.s32.totalorder %s14, 0
    %p109 = por %p107, %p108
    %p110 = scmp.ne.s32.totalorder %s102, %s104
    %p111 = scmp.eq.s32.totalorder %s19, 1
    %p112 = por %p110, %p111
    %p113 = scmp.ne.s32.totalorder %s104, %s105
    %p114 = scmp.eq.s32.totalorder %s19, 0
    %p115 = por %p113, %p114
    %p116 = scmp.ne.s32.totalorder %s104, %s105
    %p117 = scmp.eq.s32.totalorder %s20, 1
    %p118 = por %p116, %p117
    %p120 = scmp.ne.s32.totalorder %s105, %s119
    %p121 = scmp.eq.s32.totalorder %s20, 0
    %p122 = por %p120, %p121
    %s124 = sadd.s32 %s123, 1
    %p127 = scmp.eq.s32.totalorder %s14, 1
    %p128 = scmp.ne.s32.totalorder %s123, %s125
    %p129 = scmp.eq.s32.totalorder %s14, 0
    %p130 = por %p128, %p129
    %p131 = scmp.ne.s32.totalorder %s123, %s125
    %p132 = scmp.eq.s32.totalorder %s19, 1
    %p133 = por %p131, %p132
    %p134 = scmp.ne.s32.totalorder %s125, %s126
    %p135 = scmp.eq.s32.totalorder %s19, 0
    %p136 = por %p134, %p135
    %p137 = scmp.ne.s32.totalorder %s125, %s126
    %p138 = scmp.eq.s32.totalorder %s20, 1
    %p139 = por %p137, %p138
    %p141 = scmp.ne.s32.totalorder %s126, %s140
    %p142 = scmp.eq.s32.totalorder %s20, 0
    %p143 = por %p141, %p142
    %s145 = sadd.s32 %s144, 1
    %p148 = scmp.eq.s32.totalorder %s14, 1
    %p149 = scmp.ne.s32.totalorder %s144, %s146
    %p150 = scmp.eq.s32.totalorder %s14, 0
    %p151 = por %p149, %p150
    %p152 = scmp.ne.s32.totalorder %s144, %s146
    %p153 = scmp.eq.s32.totalorder %s19, 1
    %p154 = por %p152, %p153
    %p155 = scmp.ne.s32.totalorder %s146, %s147
    %p156 = scmp.eq.s32.totalorder %s19, 0
    %p157 = por %p155, %p156
    %p158 = scmp.ne.s32.totalorder %s146, %s147
    %p159 = scmp.eq.s32.totalorder %s20, 1
    %p160 = por %p158, %p159
    %p162 = scmp.ne.s32.totalorder %s147, %s161
    %p163 = scmp.eq.s32.totalorder %s20, 0
    %p164 = por %p162, %p163
    %s165 = smul.u32 %s22, %s21
    %s166 = smul.u32 %s29, %s33
    %s167 = ssub.s32 %s165, %s166
    %p168 = scmp.eq.s32.totalorder %s167, 0
    %s170 = sadd.s32 %s169, 1
    %s171 = scalar_select %p168, %s169, %s170
    %p174 = pneg %p168
    %p175 = scmp.eq.s32.totalorder %s14, 1
    %p176 = por %p174, %p175
    %p177 = scmp.ne.s32.totalorder %s169, %s172
    %p178 = scmp.eq.s32.totalorder %s14, 0
    %p179 = por %p177, %p178
    %p180 = scmp.ne.s32.totalorder %s169, %s172
    %p181 = scmp.eq.s32.totalorder %s19, 1
    %p182 = por %p180, %p181
    %p183 = scmp.ne.s32.totalorder %s172, %s173
    %p184 = scmp.eq.s32.totalorder %s19, 0
    %p185 = por %p183, %p184
    %p186 = scmp.ne.s32.totalorder %s172, %s173
    %p187 = scmp.eq.s32.totalorder %s20, 1
    %p188 = por %p186, %p187
    %p190 = scmp.ne.s32.totalorder %s173, %s189
    %p191 = scmp.eq.s32.totalorder %s20, 0
    %p192 = por %p190, %p191
    %s193 = smul.u32 %s22, %s21
    %s194 = smul.u32 %s29, %s33
    %s195 = ssub.s32 %s193, %s194
    %p196 = scmp.eq.s32.totalorder %s195, 0
    %s198 = sadd.s32 %s197, 1
    %s199 = scalar_select %p196, %s197, %s198
    %p202 = pneg %p196
    %p203 = scmp.eq.s32.totalorder %s14, 1
    %p204 = por %p202, %p203
    %p205 = scmp.ne.s32.totalorder %s197, %s200
    %p206 = scmp.eq.s32.totalorder %s14, 0
    %p207 = por %p205, %p206
    %p208 = scmp.ne.s32.totalorder %s197, %s200
    %p209 = scmp.eq.s32.totalorder %s19, 1
    %p210 = por %p208, %p209
    %p211 = scmp.ne.s32.totalorder %s200, %s201
    %p212 = scmp.eq.s32.totalorder %s19, 0
    %p213 = por %p211, %p212
    %p214 = scmp.ne.s32.totalorder %s200, %s201
    %p215 = scmp.eq.s32.totalorder %s20, 1
    %p216 = por %p214, %p215
    %p218 = scmp.ne.s32.totalorder %s201, %s217
    %p219 = scmp.eq.s32.totalorder %s20, 0
    %p220 = por %p218, %p219
    %p221 = scmp.le.s32.totalorder 1, %s14
    %p222 = scmp.lt.s32.totalorder %s14, 3
    %p223 = pnand %p221, %p222
    %p224 = pneg %p223
    // Predicated region
    $region9: #{resblock_forward.3} parent=5 // pred_check
      _
    $region10: #{resblock_forward.3} parent=5 // pred_check_branch
      %226 = sbr.rel (%p223) target = $region12
    $region11: #{resblock_forward.3} parent=5 // pred_region
      %s227 = ssub.s32 %s14, 1
      // Predicated region
      $region13: #{resblock_forward.3} parent=11 // pred_check
        %p228 = pneg %p52
      $region14: #{resblock_forward.3} parent=11 // pred_check_branch
        %230 = sbr.rel (%p228) target = $region16
      $region15: #{resblock_forward.3} parent=11 // pred_region
        %s231 = smul.u32 5, %s24
        %p232 = scmp.lt.s32.totalorder %s231, 4
        %s233 = scalar_select %p232, %s231, 4
        %s234 = smul.addr %s233, 8
        %s235 = scalar_lea.vmem %s0, %s234
        %s236 = smul.u32 5, %s24
      $region16: #{resblock_forward.3} parent=11 // pred_fallthru
        _
      // Predicated region
      $region17: #{resblock_forward.3} parent=11 // pred_check
        %p237 = pneg %p73
      $region18: #{resblock_forward.3} parent=11 // pred_check_branch
        %239 = sbr.rel (%p237) target = $region20
      $region19: #{resblock_forward.3} parent=11 // pred_region
        _
      $region20: #{resblock_forward.3} parent=11 // pred_fallthru
        _
      // Predicated region
      $region21: #{resblock_forward.3} parent=11 // pred_check
        %p240 = pneg %p94
      $region22: #{resblock_forward.3} parent=11 // pred_check_branch
        %242 = sbr.rel (%p240) target = $region24
      $region23: #{resblock_forward.3} parent=11 // pred_region
        _
      $region24: #{resblock_forward.3} parent=11 // pred_fallthru
        _
      // Predicated region
      $region25: #{resblock_forward.3} parent=11 // pred_check
        %p243 = pneg %p115
      $region26: #{resblock_forward.3} parent=11 // pred_check_branch
        %245 = sbr.rel (%p243) target = $region28
      $region27: #{resblock_forward.3} parent=11 // pred_region
        _
      $region28: #{resblock_forward.3} parent=11 // pred_fallthru
        _
      // Predicated region
      $region29: #{resblock_forward.3} parent=11 // pred_check
        %p246 = pneg %p136
      $region30: #{resblock_forward.3} parent=11 // pred_check_branch
        %248 = sbr.rel (%p246) target = $region32
      $region31: #{resblock_forward.3} parent=11 // pred_region
        _
      $region32: #{resblock_forward.3} parent=11 // pred_fallthru
        _
      // Predicated region
      $region33: #{resblock_forward.3} parent=11 // pred_check
        %p249 = pneg %p157
      $region34: #{resblock_forward.3} parent=11 // pred_check_branch
        %251 = sbr.rel (%p249) target = $region36
      $region35: #{resblock_forward.3} parent=11 // pred_region
        _
      $region36: #{resblock_forward.3} parent=11 // pred_fallthru
        _
    $region12: #{resblock_forward.3} parent=5 // pred_fallthru
      _
    %p252 = scmp.lt.s32.totalorder %s14, 2
    // Predicated region
    $region37: #{resblock_forward.3} parent=5 // pred_check
      %p253 = pneg %p252
    $region38: #{resblock_forward.3} parent=5 // pred_check_branch
      %255 = sbr.rel (%p253) target = $region40
    $region39: #{resblock_forward.3} parent=5 // pred_region
      _
    $region40: #{resblock_forward.3} parent=5 // pred_fallthru
      _
    %p256 = scmp.le.s32.totalorder 1, %s14
    %p257 = scmp.lt.s32.totalorder %s14, 3
    %p258 = pnand %p256, %p257
    %p259 = pneg %p258
    // Predicated region
    $region41: #{resblock_forward.3} parent=5 // pred_check
      _
    $region42: #{resblock_forward.3} parent=5 // pred_check_branch
      %261 = sbr.rel (%p258) target = $region44
    $region43: #{resblock_forward.3} parent=5 // pred_region
      %s262 = ssub.s32 %s14, 1
      %s263 = smul.u32 5, %s24
      %p264 = scmp.lt.s32.totalorder %s263, 4
      %s265 = scalar_select %p264, %s263, 4
      %s266 = smul.addr %s265, 8
      %s267 = scalar_lea.vmem %s0, %s266
      %p268 = pneg %p52
      %p269 = pneg %p49
      %p270 = pneg %p73
      %p271 = pneg %p70
      %p272 = pneg %p94
      %p273 = pneg %p91
      %p274 = pneg %p115
      %p275 = pneg %p112
      %p276 = pneg %p136
      %p277 = pneg %p133
      %p278 = pneg %p157
      %p279 = pneg %p154
      %p280 = pneg %p185
      %p281 = pneg %p182
      %s282 = smul.u32 %s24, %s23
      %s283 = smul.u32 5, %s282
      %p284 = scmp.lt.s32.totalorder %s283, 4
      %s285 = scalar_select %p284, %s283, 4
      %s286 = smul.addr %s285, 8
      %s287 = scalar_lea.vmem %s6, %s286
      %p288 = pneg %p213
      %p289 = pneg %p210
      %s290 = smul.u32 %s24, %s23
      %s291 = smul.u32 5, %s290
      %p292 = scmp.lt.s32.totalorder %s291, 4
      %s293 = scalar_select %p292, %s291, 4
      %s294 = smul.addr %s293, 8
      %s295 = scalar_lea.vmem %s7, %s294
      %s296 = smul.u32 5, %s24
      %p297 = scmp.lt.s32.totalorder %s296, 4
      %s298 = scalar_select %p297, %s296, 4
      %s299 = smul.addr %s298, 8
      %s300 = scalar_lea.vmem %s0, %s299
      %s301 = smul.u32 5, %s24
      %s302 = smul.u32 %s24, %s23
      %s303 = smul.u32 5, %s302
      %p304 = scmp.lt.s32.totalorder %s303, 4
      %s305 = scalar_select %p304, %s303, 4
      %s306 = smul.addr %s305, 8
      %s307 = scalar_lea.vmem %s6, %s306
      %s308 = smul.u32 %s24, %s23
      %s309 = smul.u32 5, %s308
      %s310 = smul.u32 %s24, %s23
      %s311 = smul.u32 5, %s310
      %p312 = scmp.lt.s32.totalorder %s311, 4
      %s313 = scalar_select %p312, %s311, 4
      %s314 = smul.addr %s313, 8
      %s315 = scalar_lea.vmem %s7, %s314
      %s316 = smul.u32 %s24, %s23
      %s317 = smul.u32 5, %s316
      %p318 = scmp.eq.s32.totalorder %s23, 0
      %p319 = scmp.eq.s32.totalorder %s24, 0
      %p320 = pnand %p318, %p319
      %p321 = pneg %p320
      // Predicated region
      $region45: #{resblock_forward.3} parent=43 // pred_check
        _
      $region46: #{resblock_forward.3} parent=43 // pred_check_branch
        %323 = sbr.rel (%p320) target = $region48
      $region47: #{resblock_forward.3} parent=43 // pred_region
        %324 = vst [vmem:[#allocation2] sm:$0x3] 0.0
      $region48: #{resblock_forward.3} parent=43 // pred_fallthru
        _
      // Predicated region
      $region49: #{resblock_forward.3} parent=43 // pred_check
        %p325 = pneg %p318
      $region50: #{resblock_forward.3} parent=43 // pred_check_branch
        %327 = sbr.rel (%p325) target = $region52
      $region51: #{resblock_forward.3} parent=43 // pred_region
        %v328 = vld [vmem:[%s300] sm:$0xff]
        %v329 = vld [vmem:[%s300 + $0x8] sm:$0xff]
        %v330 = vld [vmem:[%s300 + $0x10] sm:$0xff]
        %v331 = vld [vmem:[%s300 + $0x18] sm:$0xff]
        %v332 = vld [vmem:[%s300 + $0x20] sm:$0xf]
        %v333 = vld [vmem:[%s1] sm:$0xff]
        %v334 = vld [vmem:[%s1 + $0x8] sm:$0xff]
        %v335 = vld [vmem:[%s1 + $0x10] sm:$0xff]
        %v336 = vld [vmem:[%s1 + $0x18] sm:$0xff]
        %v337 = vld [vmem:[%s1 + $0x20] sm:$0xff]
        %v338 = vld [vmem:[%s1 + $0x28] sm:$0xff]
        %v339 = vld [vmem:[%s1 + $0x30] sm:$0xff]
        %v340 = vld [vmem:[%s1 + $0x38] sm:$0xff]
        %v341 = vld [vmem:[%s1 + $0x40] sm:$0xff]
        %v342 = vld [vmem:[%s1 + $0x48] sm:$0xff]
        %v343 = vld [vmem:[%s1 + $0x50] sm:$0xff]
        %v344 = vld [vmem:[%s1 + $0x58] sm:$0xff]
        %v345 = vld [vmem:[%s1 + $0x60] sm:$0xff]
        %v346 = vld [vmem:[%s1 + $0x68] sm:$0xff]
        %v347 = vld [vmem:[%s1 + $0x70] sm:$0xff]
        %v348 = vld [vmem:[%s1 + $0x78] sm:$0xff]
        %v349 = vld [vmem:[%s1 + $0x80] sm:$0xff]
        %v350 = vld [vmem:[%s1 + $0x88] sm:$0xff]
        %v351 = vld [vmem:[%s1 + $0x90] sm:$0xff]
        %v352 = vld [vmem:[%s1 + $0x98] sm:$0xff]
        %v353 = vld [vmem:[%s1 + $0xa0] sm:$0xff]
        %v354 = vld [vmem:[%s1 + $0xa8] sm:$0xff]
        %v355 = vld [vmem:[%s1 + $0xb0] sm:$0xff]
        %v356 = vld [vmem:[%s1 + $0xb8] sm:$0xff]
        %vm357 = vcmask 523264
        %v359 = vsel %vm357, %v328, 0
        %v362 = vsel %vm357, %v329, 0
        %v365 = vsel %vm357, %v330, 0
        %v368 = vsel %vm357, %v331, 0
        %v371 = vsel %vm357, %v332, 0
        %373 = vmatprep.subr.mxu0 0.0
        %374 = vmatpush1.msra.mxu0 0.0
        %375 = vmatprep.subr.mxu0 0.0
        %376 = vmatpush1.msra.mxu0 0.0
        %377 = vmatprep.subr.mxu0 0.0
        %378 = vmatpush1.msra.mxu0 0.0
        %379 = vmatprep.subr.mxu0 0.0
        %380 = vmatpush1.msra.mxu0 0.0
        %381 = vmatprep.subr.mxu0 0.0
        %382 = vmatpush1.msra.mxu0 0.0
        %383 = vmatprep.subr.mxu0 0.0
        %384 = vmatpush1.msra.mxu0 0.0
        %385 = vmatprep.subr.mxu0 0.0
        %386 = vmatpush1.msra.mxu0 0.0
        %387 = vmatprep.subr.mxu0 0.0
        %388 = vmatpush1.msra.mxu0 0.0
        %389 = vmatprep.subr.mxu0 %v355
        %390 = vmatpush1.msra.mxu0 %v354
        %391 = vmatprep.subr.mxu0 %v352
        %392 = vmatpush1.msra.mxu0 %v351
        %393 = vmatprep.subr.mxu0 %v349
        %394 = vmatpush1.msra.mxu0 %v348
        %395 = vmatprep.subr.mxu0 %v346
        %396 = vmatpush1.msra.mxu0 %v345
        %397 = vmatprep.subr.mxu0 %v343
        %398 = vmatpush1.msra.mxu0 %v342
        %399 = vmatprep.subr.mxu0 %v340
        %400 = vmatpush1.msra.mxu0 %v339
        %401 = vmatprep.subr.mxu0 %v337
        %402 = vmatpush1.msra.mxu0 %v336
        %403 = vmatprep.subr.mxu0 %v334
        %404 = vmatpush1.msra.mxu0 %v333
        %405 = vmatprep.subr.mxu0 0.0
        %406 = vmatpush2.msra.mxu0 0.0
        %407 = vmatprep.subr.mxu0 0.0
        %408 = vmatpush2.msra.mxu0 0.0
        %409 = vmatprep.subr.mxu0 0.0
        %410 = vmatpush2.msra.mxu0 0.0
        %411 = vmatprep.subr.mxu0 0.0
        %412 = vmatpush2.msra.mxu0 0.0
        %413 = vmatprep.subr.mxu0 0.0
        %414 = vmatpush2.msra.mxu0 0.0
        %415 = vmatprep.subr.mxu0 0.0
        %416 = vmatpush2.msra.mxu0 0.0
        %417 = vmatprep.subr.mxu0 0.0
        %418 = vmatpush2.msra.mxu0 0.0
        %419 = vmatprep.subr.mxu0 0.0
        %420 = vmatpush2.msra.mxu0 0.0
        %421 = vmatprep.subr.mxu0 0.0
        %422 = vmatpush2.msra.mxu0 0.0
        %423 = vmatprep.subr.mxu0 0.0
        %424 = vmatpush2.msra.mxu0 0.0
        %425 = vmatprep.subr.mxu0 0.0
        %426 = vmatpush2.msra.mxu0 0.0
        %427 = vmatprep.subr.mxu0 0.0
        %428 = vmatpush2.msra.mxu0 0.0
        %429 = vmatprep.subr.mxu0 0.0
        %430 = vmatpush2.msra.mxu0 0.0
        %431 = vmatprep.subr.mxu0 0.0
        %432 = vmatpush2.msra.mxu0 0.0
        %433 = vmatprep.subr.mxu0 0.0
        %434 = vmatpush2.msra.mxu0 0.0
        %435 = vmatprep.subr.mxu0 0.0
        %436 = vmatpush2.msra.mxu0 0.0
        %437 = vmatprep.mubr.f32.mxu0 0.0
        %438 = vmatmul.mubr.f32.gmra.mxu0 %v359
        %v439 = vpop.f32.mrf.mxu0
        %v440 = vadd.f32 0.0, %v439
        %v441 = vpop.f32.mrf.mxu0
        %v442 = vadd.f32 0.0, %v441
        %443 = vmatprep.mubr.f32.mxu0 0.0
        %444 = vmatmul.mubr.f32.gmra.mxu0 %v362
        %v445 = vpop.f32.mrf.mxu0
        %v446 = vadd.f32 0.0, %v445
        %v447 = vpop.f32.mrf.mxu0
        %v448 = vadd.f32 0.0, %v447
        %449 = vmatprep.mubr.f32.mxu0 0.0
        %450 = vmatmul.mubr.f32.gmra.mxu0 %v365
        %v451 = vpop.f32.mrf.mxu0
        %v452 = vadd.f32 0.0, %v451
        %v453 = vpop.f32.mrf.mxu0
        %v454 = vadd.f32 0.0, %v453
        %455 = vmatprep.mubr.f32.mxu0 0.0
        %456 = vmatmul.mubr.f32.gmra.mxu0 %v368
        %v457 = vpop.f32.mrf.mxu0
        %v458 = vadd.f32 0.0, %v457
        %v459 = vpop.f32.mrf.mxu0
        %v460 = vadd.f32 0.0, %v459
        %461 = vmatprep.mubr.f32.mxu0 0.0
        %462 = vmatmul.mubr.f32.gmra.mxu0 %v371
        %v463 = vpop.f32.mrf.mxu0
        %v464 = vadd.f32 0.0, %v463
        %v465 = vpop.f32.mrf.mxu0
        %v466 = vadd.f32 0.0, %v465
        %467 = vdwg.mxu0
        %468 = vmatprep.subr.mxu0 0.0
        %469 = vmatpush1.msra.mxu0 0.0
        %470 = vmatprep.subr.mxu0 0.0
        %471 = vmatpush1.msra.mxu0 0.0
        %472 = vmatprep.subr.mxu0 0.0
        %473 = vmatpush1.msra.mxu0 0.0
        %474 = vmatprep.subr.mxu0 0.0
        %475 = vmatpush1.msra.mxu0 0.0
        %476 = vmatprep.subr.mxu0 0.0
        %477 = vmatpush1.msra.mxu0 0.0
        %478 = vmatprep.subr.mxu0 0.0
        %479 = vmatpush1.msra.mxu0 0.0
        %480 = vmatprep.subr.mxu0 0.0
        %481 = vmatpush1.msra.mxu0 0.0
        %482 = vmatprep.subr.mxu0 0.0
        %483 = vmatpush1.msra.mxu0 0.0
        %484 = vmatprep.subr.mxu0 0.0
        %485 = vmatpush1.msra.mxu0 %v356
        %486 = vmatprep.subr.mxu0 0.0
        %487 = vmatpush1.msra.mxu0 %v353
        %488 = vmatprep.subr.mxu0 0.0
        %489 = vmatpush1.msra.mxu0 %v350
        %490 = vmatprep.subr.mxu0 0.0
        %491 = vmatpush1.msra.mxu0 %v347
        %492 = vmatprep.subr.mxu0 0.0
        %493 = vmatpush1.msra.mxu0 %v344
        %494 = vmatprep.subr.mxu0 0.0
        %495 = vmatpush1.msra.mxu0 %v341
        %496 = vmatprep.subr.mxu0 0.0
        %497 = vmatpush1.msra.mxu0 %v338
        %498 = vmatprep.subr.mxu0 0.0
        %499 = vmatpush1.msra.mxu0 %v335
        %500 = vmatprep.subr.mxu0 0.0
        %501 = vmatpush2.msra.mxu0 0.0
        %502 = vmatprep.subr.mxu0 0.0
        %503 = vmatpush2.msra.mxu0 0.0
        %504 = vmatprep.subr.mxu0 0.0
        %505 = vmatpush2.msra.mxu0 0.0
        %506 = vmatprep.subr.mxu0 0.0
        %507 = vmatpush2.msra.mxu0 0.0
        %508 = vmatprep.subr.mxu0 0.0
        %509 = vmatpush2.msra.mxu0 0.0
        %510 = vmatprep.subr.mxu0 0.0
        %511 = vmatpush2.msra.mxu0 0.0
        %512 = vmatprep.subr.mxu0 0.0
        %513 = vmatpush2.msra.mxu0 0.0
        %514 = vmatprep.subr.mxu0 0.0
        %515 = vmatpush2.msra.mxu0 0.0
        %516 = vmatprep.subr.mxu0 0.0
        %517 = vmatpush2.msra.mxu0 0.0
        %518 = vmatprep.subr.mxu0 0.0
        %519 = vmatpush2.msra.mxu0 0.0
        %520 = vmatprep.subr.mxu0 0.0
        %521 = vmatpush2.msra.mxu0 0.0
        %522 = vmatprep.subr.mxu0 0.0
        %523 = vmatpush2.msra.mxu0 0.0
        %524 = vmatprep.subr.mxu0 0.0
        %525 = vmatpush2.msra.mxu0 0.0
        %526 = vmatprep.subr.mxu0 0.0
        %527 = vmatpush2.msra.mxu0 0.0
        %528 = vmatprep.subr.mxu0 0.0
        %529 = vmatpush2.msra.mxu0 0.0
        %530 = vmatprep.subr.mxu0 0.0
        %531 = vmatpush2.msra.mxu0 0.0
        %532 = vmatprep.mubr.f32.mxu0 0.0
        %533 = vmatmul.mubr.f32.gmra.mxu0 %v359
        %v534 = vpop.f32.mrf.mxu0
        %v535 = vadd.f32 0.0, %v534
        %v536 = vpop.f32.mrf.mxu0
        %537 = vmatprep.mubr.f32.mxu0 0.0
        %538 = vmatmul.mubr.f32.gmra.mxu0 %v362
        %v539 = vpop.f32.mrf.mxu0
        %v540 = vadd.f32 0.0, %v539
        %v541 = vpop.f32.mrf.mxu0
        %542 = vmatprep.mubr.f32.mxu0 0.0
        %543 = vmatmul.mubr.f32.gmra.mxu0 %v365
        %v544 = vpop.f32.mrf.mxu0
        %v545 = vadd.f32 0.0, %v544
        %v546 = vpop.f32.mrf.mxu0
        %547 = vmatprep.mubr.f32.mxu0 0.0
        %548 = vmatmul.mubr.f32.gmra.mxu0 %v368
        %v549 = vpop.f32.mrf.mxu0
        %v550 = vadd.f32 0.0, %v549
        %v551 = vpop.f32.mrf.mxu0
        %552 = vmatprep.mubr.f32.mxu0 0.0
        %553 = vmatmul.mubr.f32.gmra.mxu0 %v371
        %v554 = vpop.f32.mrf.mxu0
        %v555 = vadd.f32 0.0, %v554
        %v556 = vpop.f32.mrf.mxu0
        %557 = vdwg.mxu0
        %vm563 = vcmask 1040384
        %v564 = vrot.slane %v440, 7
        %v565 = vrot.slane %v446, 7
        %v566 = vsel %vm563, %v564, %v565
        %v567 = vrot.slane %v452, 7
        %v568 = vsel %vm563, %v565, %v567
        %v569 = vrot.slane %v458, 7
        %v570 = vsel %vm563, %v567, %v569
        %v571 = vrot.slane %v464, 7
        %v572 = vsel %vm563, %v569, %v571
        %v578 = vsel %vm563, 0.0, %v564
        %vm584 = vcmask 1046528
        %v585 = vrot.slane %v535, 1
        %v586 = vrot.slane %v540, 1
        %v587 = vsel %vm584, %v585, %v586
        %v588 = vrot.slane %v545, 1
        %v589 = vsel %vm584, %v586, %v588
        %v590 = vrot.slane %v550, 1
        %v591 = vsel %vm584, %v588, %v590
        %v592 = vrot.slane %v555, 1
        %v593 = vsel %vm584, %v590, %v592
        %vm599 = vcmask 1042432
        %v600 = vsel %vm599, %v592, 0.0
        %v601 = vadd.f32 %v578, %v442
        %v602 = vadd.f32 %v566, %v448
        %v603 = vadd.f32 %v568, %v454
        %v604 = vadd.f32 %v570, %v460
        %v605 = vadd.f32 %v572, %v466
        %v606 = vadd.f32 %v601, %v587
        %v607 = vadd.f32 %v602, %v589
        %v608 = vadd.f32 %v603, %v591
        %v609 = vadd.f32 %v604, %v593
        %v610 = vadd.f32 %v605, %v600
        %v611 = vld [vmem:[%s3] sm:$0xff]
        %v612 = vld [vmem:[%s3 + $0x8] sm:$0xff]
        %v613 = vld [vmem:[%s3 + $0x10] sm:$0xff]
        %v614 = vld [vmem:[%s3 + $0x18] sm:$0xff]
        %v615 = vld [vmem:[%s3 + $0x20] sm:$0xf]
        %v616 = vmul.f32 %v606, %v611
        %v617 = vmul.f32 %v607, %v612
        %v618 = vmul.f32 %v608, %v613
        %v619 = vmul.f32 %v609, %v614
        %v620 = vmul.f32 %v610, %v615
        %v621 = vadd.f32 %v616, %v617
        %v622 = vadd.f32 %v621, %v618
        %v623 = vadd.f32 %v622, %v619
        %vm624 = vcmask 1043456
        %v625 = vsel %vm624, %v620, 0.0
        %v626 = vadd.f32 %v623, %v625
        %v627 = vrot.slane %v626, 4
        %v628 = vadd.f32 %v626, %v627
        %v629 = vrot.slane %v628, 2
        %v630 = vadd.f32 %v628, %v629
        %v631 = vrot.slane %v630, 1
        %v632 = vadd.f32 %v630, %v631
        %v633 = vmul.f32 %v616, %v616
        %v634 = vmul.f32 %v617, %v617
        %v635 = vmul.f32 %v618, %v618
        %v636 = vmul.f32 %v619, %v619
        %v637 = vmul.f32 %v620, %v620
        %v638 = vadd.f32 %v633, %v634
        %v639 = vadd.f32 %v638, %v635
        %v640 = vadd.f32 %v639, %v636
        %v641 = vsel %vm624, %v637, 0.0
        %v642 = vadd.f32 %v640, %v641
        %v643 = vrot.slane %v642, 4
        %v644 = vadd.f32 %v642, %v643
        %v645 = vrot.slane %v644, 2
        %v646 = vadd.f32 %v644, %v645
        %v647 = vrot.slane %v646, 1
        %v648 = vadd.f32 %v646, %v647
        %v649 = vld [vmem:[#allocation2] sm:$0x3]
        %v650 = vsel %vm563, %v632, %v648
        %v651 = vadd.f32 %v649, %v650
        %652 = vst [vmem:[#allocation2] sm:$0x3] %v651
      $region52: #{resblock_forward.3} parent=43 // pred_fallthru
        _
      %p653 = scmp.eq.s32.totalorder %s23, 1
      %p654 = pnand %p653, %p319
      %p655 = pneg %p654
      // Predicated region
      $region53: #{resblock_forward.3} parent=43 // pred_check
        _
      $region54: #{resblock_forward.3} parent=43 // pred_check_branch
        %657 = sbr.rel (%p654) target = $region56
      $region55: #{resblock_forward.3} parent=43 // pred_region
        %v658 = vld [vmem:[#allocation2] sm:$0x3]
        %v659 = vld [vmem:[%s2] sm:$0xff]
        %v660 = vld [vmem:[%s2 + $0x8] sm:$0xff]
        %v661 = vld [vmem:[%s2 + $0x10] sm:$0xff]
        %v662 = vld [vmem:[%s2 + $0x18] sm:$0xff]
        %v663 = vld [vmem:[%s2 + $0x20] sm:$0xff]
        %v664 = vld [vmem:[%s2 + $0x28] sm:$0xff]
        %v665 = vld [vmem:[%s2 + $0x30] sm:$0xff]
        %v666 = vld [vmem:[%s2 + $0x38] sm:$0xff]
        %v667 = vld [vmem:[%s2 + $0x40] sm:$0xff]
        %v668 = vld [vmem:[%s2 + $0x48] sm:$0xff]
        %v669 = vld [vmem:[%s2 + $0x50] sm:$0xff]
        %v670 = vld [vmem:[%s2 + $0x58] sm:$0xff]
        %v671 = vld [vmem:[%s2 + $0x60] sm:$0xff]
        %v672 = vld [vmem:[%s2 + $0x68] sm:$0xff]
        %v673 = vld [vmem:[%s2 + $0x70] sm:$0xff]
        %v674 = vld [vmem:[%s2 + $0x78] sm:$0xff]
        %675 = vmatprep.subr.mxu0 0.0
        %676 = vmatpush1.msra.mxu0 %v674
        %677 = vmatprep.subr.mxu0 0.0
        %678 = vmatpush1.msra.mxu0 %v673
        %679 = vmatprep.subr.mxu0 0.0
        %680 = vmatpush1.msra.mxu0 %v672
        %681 = vmatprep.subr.mxu0 0.0
        %682 = vmatpush1.msra.mxu0 %v671
        %683 = vmatprep.subr.mxu0 0.0
        %684 = vmatpush1.msra.mxu0 %v670
        %685 = vmatprep.subr.mxu0 0.0
        %686 = vmatpush1.msra.mxu0 %v669
        %687 = vmatprep.subr.mxu0 0.0
        %688 = vmatpush1.msra.mxu0 %v668
        %689 = vmatprep.subr.mxu0 0.0
        %690 = vmatpush1.msra.mxu0 %v667
        %691 = vmatprep.subr.mxu0 0.0
        %692 = vmatpush1.msra.mxu0 %v666
        %693 = vmatprep.subr.mxu0 0.0
        %694 = vmatpush1.msra.mxu0 %v665
        %695 = vmatprep.subr.mxu0 0.0
        %696 = vmatpush1.msra.mxu0 %v664
        %697 = vmatprep.subr.mxu0 0.0
        %698 = vmatpush1.msra.mxu0 %v663
        %699 = vmatprep.subr.mxu0 0.0
        %700 = vmatpush1.msra.mxu0 %v662
        %701 = vmatprep.subr.mxu0 0.0
        %702 = vmatpush1.msra.mxu0 %v661
        %703 = vmatprep.subr.mxu0 0.0
        %704 = vmatpush1.msra.mxu0 %v660
        %705 = vmatprep.subr.mxu0 0.0
        %706 = vmatpush1.msra.mxu0 %v659
        %707 = vmatprep.subr.mxu0 0.0
        %708 = vmatpush2.msra.mxu0 0.0
        %709 = vmatprep.subr.mxu0 0.0
        %710 = vmatpush2.msra.mxu0 0.0
        %711 = vmatprep.subr.mxu0 0.0
        %712 = vmatpush2.msra.mxu0 0.0
        %713 = vmatprep.subr.mxu0 0.0
        %714 = vmatpush2.msra.mxu0 0.0
        %715 = vmatprep.subr.mxu0 0.0
        %716 = vmatpush2.msra.mxu0 0.0
        %717 = vmatprep.subr.mxu0 0.0
        %718 = vmatpush2.msra.mxu0 0.0
        %719 = vmatprep.subr.mxu0 0.0
        %720 = vmatpush2.msra.mxu0 0.0
        %721 = vmatprep.subr.mxu0 0.0
        %722 = vmatpush2.msra.mxu0 0.0
        %723 = vmatprep.subr.mxu0 0.0
        %724 = vmatpush2.msra.mxu0 0.0
        %725 = vmatprep.subr.mxu0 0.0
        %726 = vmatpush2.msra.mxu0 0.0
        %727 = vmatprep.subr.mxu0 0.0
        %728 = vmatpush2.msra.mxu0 0.0
        %729 = vmatprep.subr.mxu0 0.0
        %730 = vmatpush2.msra.mxu0 0.0
        %731 = vmatprep.subr.mxu0 0.0
        %732 = vmatpush2.msra.mxu0 0.0
        %733 = vmatprep.subr.mxu0 0.0
        %734 = vmatpush2.msra.mxu0 0.0
        %735 = vmatprep.subr.mxu0 0.0
        %736 = vmatpush2.msra.mxu0 0.0
        %737 = vmatprep.subr.mxu0 0.0
        %738 = vmatpush2.msra.mxu0 0.0
        %739 = vmatprep.mubr.f32.mxu0 0.0
        %740 = vmatmul.mubr.f32.gmra.mxu0 %v658
        %v741 = vpop.f32.mrf.mxu0
        %v742 = vadd.f32 0.0, %v741
        %v743 = vpop.f32.mrf.mxu0
        %744 = vdwg.mxu0
        %v745 = vmul.f32 %v742, 0.001953125
        %v746 = vmul.f32 %v745, %v745
        %v748 = vrot.slane %v746, 7
        %v750 = vsub.f32 %v745, %v748
        %v751 = vmax.f32 %v750, 0.0
        %v752 = vld [vmem:[%s4] sm:$0x1]
        %v753 = vadd.f32 %v751, 1e-05
        %v754 = vrsqrt.pop %v753
        %v757 = vunpack.c.l.s4 1966171168
        %v758 = vunpack.c.0.s8 %v757
        %v759 = vlaneseq
        %v760 = vshrl.u32 %v759, 7
        %v761 = vsub.s32 %v758, %v760
        %v762 = vrot.slane %v754, %v761
        %v763 = vcombine.high %v762, %v762
        %v765 = vunpack.c.l.s4 1966171168
        %v766 = vunpack.c.0.s8 %v765
        %v767 = vlaneseq
        %v768 = vshrl.u32 %v767, 7
        %v769 = vsub.s32 %v766, %v768
        %v770 = vrot.slane %v763, %v769
        %v772 = vmul.f32 %v752, %v770
        %773 = vst [vmem:[#allocation3] sm:$0x1] %v772
        %v774 = vld [vmem:[%s5] sm:$0x1]
        %v775 = vmul.f32 %v745, %v772
        %v776 = vsub.f32 %v774, %v775
        %777 = vst [vmem:[#allocation4] sm:$0x1] %v776
      $region56: #{resblock_forward.3} parent=43 // pred_fallthru
        _
      // Predicated region
      $region57: #{resblock_forward.3} parent=43 // pred_check
        %p778 = pneg %p653
      $region58: #{resblock_forward.3} parent=43 // pred_check_branch
        %780 = sbr.rel (%p778) target = $region60
      $region59: #{resblock_forward.3} parent=43 // pred_region
        %v781 = vld [vmem:[%s300] sm:$0xff]
        %v782 = vld [vmem:[%s300 + $0x8] sm:$0xff]
        %v783 = vld [vmem:[%s300 + $0x10] sm:$0xff]
        %v784 = vld [vmem:[%s300 + $0x18] sm:$0xff]
        %v785 = vld [vmem:[%s300 + $0x20] sm:$0xf]
        %v786 = vld [vmem:[%s1] sm:$0xff]
        %v787 = vld [vmem:[%s1 + $0x8] sm:$0xff]
        %v788 = vld [vmem:[%s1 + $0x10] sm:$0xff]
        %v789 = vld [vmem:[%s1 + $0x18] sm:$0xff]
        %v790 = vld [vmem:[%s1 + $0x20] sm:$0xff]
        %v791 = vld [vmem:[%s1 + $0x28] sm:$0xff]
        %v792 = vld [vmem:[%s1 + $0x30] sm:$0xff]
        %v793 = vld [vmem:[%s1 + $0x38] sm:$0xff]
        %v794 = vld [vmem:[%s1 + $0x40] sm:$0xff]
        %v795 = vld [vmem:[%s1 + $0x48] sm:$0xff]
        %v796 = vld [vmem:[%s1 + $0x50] sm:$0xff]
        %v797 = vld [vmem:[%s1 + $0x58] sm:$0xff]
        %v798 = vld [vmem:[%s1 + $0x60] sm:$0xff]
        %v799 = vld [vmem:[%s1 + $0x68] sm:$0xff]
        %v800 = vld [vmem:[%s1 + $0x70] sm:$0xff]
        %v801 = vld [vmem:[%s1 + $0x78] sm:$0xff]
        %v802 = vld [vmem:[%s1 + $0x80] sm:$0xff]
        %v803 = vld [vmem:[%s1 + $0x88] sm:$0xff]
        %v804 = vld [vmem:[%s1 + $0x90] sm:$0xff]
        %v805 = vld [vmem:[%s1 + $0x98] sm:$0xff]
        %v806 = vld [vmem:[%s1 + $0xa0] sm:$0xff]
        %v807 = vld [vmem:[%s1 + $0xa8] sm:$0xff]
        %v808 = vld [vmem:[%s1 + $0xb0] sm:$0xff]
        %v809 = vld [vmem:[%s1 + $0xb8] sm:$0xff]
        %vm810 = vcmask 523264
        %v812 = vsel %vm810, %v781, 0
        %v815 = vsel %vm810, %v782, 0
        %v818 = vsel %vm810, %v783, 0
        %v821 = vsel %vm810, %v784, 0
        %v824 = vsel %vm810, %v785, 0
        %826 = vmatprep.subr.mxu0 0.0
        %827 = vmatpush1.msra.mxu0 0.0
        %828 = vmatprep.subr.mxu0 0.0
        %829 = vmatpush1.msra.mxu0 0.0
        %830 = vmatprep.subr.mxu0 0.0
        %831 = vmatpush1.msra.mxu0 0.0
        %832 = vmatprep.subr.mxu0 0.0
        %833 = vmatpush1.msra.mxu0 0.0
        %834 = vmatprep.subr.mxu0 0.0
        %835 = vmatpush1.msra.mxu0 0.0
        %836 = vmatprep.subr.mxu0 0.0
        %837 = vmatpush1.msra.mxu0 0.0
        %838 = vmatprep.subr.mxu0 0.0
        %839 = vmatpush1.msra.mxu0 0.0
        %840 = vmatprep.subr.mxu0 0.0
        %841 = vmatpush1.msra.mxu0 0.0
        %842 = vmatprep.subr.mxu0 %v808
        %843 = vmatpush1.msra.mxu0 %v807
        %844 = vmatprep.subr.mxu0 %v805
        %845 = vmatpush1.msra.mxu0 %v804
        %846 = vmatprep.subr.mxu0 %v802
        %847 = vmatpush1.msra.mxu0 %v801
        %848 = vmatprep.subr.mxu0 %v799
        %849 = vmatpush1.msra.mxu0 %v798
        %850 = vmatprep.subr.mxu0 %v796
        %851 = vmatpush1.msra.mxu0 %v795
        %852 = vmatprep.subr.mxu0 %v793
        %853 = vmatpush1.msra.mxu0 %v792
        %854 = vmatprep.subr.mxu0 %v790
        %855 = vmatpush1.msra.mxu0 %v789
        %856 = vmatprep.subr.mxu0 %v787
        %857 = vmatpush1.msra.mxu0 %v786
        %858 = vmatprep.subr.mxu0 0.0
        %859 = vmatpush2.msra.mxu0 0.0
        %860 = vmatprep.subr.mxu0 0.0
        %861 = vmatpush2.msra.mxu0 0.0
        %862 = vmatprep.subr.mxu0 0.0
        %863 = vmatpush2.msra.mxu0 0.0
        %864 = vmatprep.subr.mxu0 0.0
        %865 = vmatpush2.msra.mxu0 0.0
        %866 = vmatprep.subr.mxu0 0.0
        %867 = vmatpush2.msra.mxu0 0.0
        %868 = vmatprep.subr.mxu0 0.0
        %869 = vmatpush2.msra.mxu0 0.0
        %870 = vmatprep.subr.mxu0 0.0
        %871 = vmatpush2.msra.mxu0 0.0
        %872 = vmatprep.subr.mxu0 0.0
        %873 = vmatpush2.msra.mxu0 0.0
        %874 = vmatprep.subr.mxu0 0.0
        %875 = vmatpush2.msra.mxu0 0.0
        %876 = vmatprep.subr.mxu0 0.0
        %877 = vmatpush2.msra.mxu0 0.0
        %878 = vmatprep.subr.mxu0 0.0
        %879 = vmatpush2.msra.mxu0 0.0
        %880 = vmatprep.subr.mxu0 0.0
        %881 = vmatpush2.msra.mxu0 0.0
        %882 = vmatprep.subr.mxu0 0.0
        %883 = vmatpush2.msra.mxu0 0.0
        %884 = vmatprep.subr.mxu0 0.0
        %885 = vmatpush2.msra.mxu0 0.0
        %886 = vmatprep.subr.mxu0 0.0
        %887 = vmatpush2.msra.mxu0 0.0
        %888 = vmatprep.subr.mxu0 0.0
        %889 = vmatpush2.msra.mxu0 0.0
        %890 = vmatprep.mubr.f32.mxu0 0.0
        %891 = vmatmul.mubr.f32.gmra.mxu0 %v812
        %v892 = vpop.f32.mrf.mxu0
        %v893 = vadd.f32 0.0, %v892
        %v894 = vpop.f32.mrf.mxu0
        %v895 = vadd.f32 0.0, %v894
        %896 = vmatprep.mubr.f32.mxu0 0.0
        %897 = vmatmul.mubr.f32.gmra.mxu0 %v815
        %v898 = vpop.f32.mrf.mxu0
        %v899 = vadd.f32 0.0, %v898
        %v900 = vpop.f32.mrf.mxu0
        %v901 = vadd.f32 0.0, %v900
        %902 = vmatprep.mubr.f32.mxu0 0.0
        %903 = vmatmul.mubr.f32.gmra.mxu0 %v818
        %v904 = vpop.f32.mrf.mxu0
        %v905 = vadd.f32 0.0, %v904
        %v906 = vpop.f32.mrf.mxu0
        %v907 = vadd.f32 0.0, %v906
        %908 = vmatprep.mubr.f32.mxu0 0.0
        %909 = vmatmul.mubr.f32.gmra.mxu0 %v821
        %v910 = vpop.f32.mrf.mxu0
        %v911 = vadd.f32 0.0, %v910
        %v912 = vpop.f32.mrf.mxu0
        %v913 = vadd.f32 0.0, %v912
        %914 = vmatprep.mubr.f32.mxu0 0.0
        %915 = vmatmul.mubr.f32.gmra.mxu0 %v824
        %v916 = vpop.f32.mrf.mxu0
        %v917 = vadd.f32 0.0, %v916
        %v918 = vpop.f32.mrf.mxu0
        %v919 = vadd.f32 0.0, %v918
        %920 = vdwg.mxu0
        %921 = vmatprep.subr.mxu0 0.0
        %922 = vmatpush1.msra.mxu0 0.0
        %923 = vmatprep.subr.mxu0 0.0
        %924 = vmatpush1.msra.mxu0 0.0
        %925 = vmatprep.subr.mxu0 0.0
        %926 = vmatpush1.msra.mxu0 0.0
        %927 = vmatprep.subr.mxu0 0.0
        %928 = vmatpush1.msra.mxu0 0.0
        %929 = vmatprep.subr.mxu0 0.0
        %930 = vmatpush1.msra.mxu0 0.0
        %931 = vmatprep.subr.mxu0 0.0
        %932 = vmatpush1.msra.mxu0 0.0
        %933 = vmatprep.subr.mxu0 0.0
        %934 = vmatpush1.msra.mxu0 0.0
        %935 = vmatprep.subr.mxu0 0.0
        %936 = vmatpush1.msra.mxu0 0.0
        %937 = vmatprep.subr.mxu0 0.0
        %938 = vmatpush1.msra.mxu0 %v809
        %939 = vmatprep.subr.mxu0 0.0
        %940 = vmatpush1.msra.mxu0 %v806
        %941 = vmatprep.subr.mxu0 0.0
        %942 = vmatpush1.msra.mxu0 %v803
        %943 = vmatprep.subr.mxu0 0.0
        %944 = vmatpush1.msra.mxu0 %v800
        %945 = vmatprep.subr.mxu0 0.0
        %946 = vmatpush1.msra.mxu0 %v797
        %947 = vmatprep.subr.mxu0 0.0
        %948 = vmatpush1.msra.mxu0 %v794
        %949 = vmatprep.subr.mxu0 0.0
        %950 = vmatpush1.msra.mxu0 %v791
        %951 = vmatprep.subr.mxu0 0.0
        %952 = vmatpush1.msra.mxu0 %v788
        %953 = vmatprep.subr.mxu0 0.0
        %954 = vmatpush2.msra.mxu0 0.0
        %955 = vmatprep.subr.mxu0 0.0
        %956 = vmatpush2.msra.mxu0 0.0
        %957 = vmatprep.subr.mxu0 0.0
        %958 = vmatpush2.msra.mxu0 0.0
        %959 = vmatprep.subr.mxu0 0.0
        %960 = vmatpush2.msra.mxu0 0.0
        %961 = vmatprep.subr.mxu0 0.0
        %962 = vmatpush2.msra.mxu0 0.0
        %963 = vmatprep.subr.mxu0 0.0
        %964 = vmatpush2.msra.mxu0 0.0
        %965 = vmatprep.subr.mxu0 0.0
        %966 = vmatpush2.msra.mxu0 0.0
        %967 = vmatprep.subr.mxu0 0.0
        %968 = vmatpush2.msra.mxu0 0.0
        %969 = vmatprep.subr.mxu0 0.0
        %970 = vmatpush2.msra.mxu0 0.0
        %971 = vmatprep.subr.mxu0 0.0
        %972 = vmatpush2.msra.mxu0 0.0
        %973 = vmatprep.subr.mxu0 0.0
        %974 = vmatpush2.msra.mxu0 0.0
        %975 = vmatprep.subr.mxu0 0.0
        %976 = vmatpush2.msra.mxu0 0.0
        %977 = vmatprep.subr.mxu0 0.0
        %978 = vmatpush2.msra.mxu0 0.0
        %979 = vmatprep.subr.mxu0 0.0
        %980 = vmatpush2.msra.mxu0 0.0
        %981 = vmatprep.subr.mxu0 0.0
        %982 = vmatpush2.msra.mxu0 0.0
        %983 = vmatprep.subr.mxu0 0.0
        %984 = vmatpush2.msra.mxu0 0.0
        %985 = vmatprep.mubr.f32.mxu0 0.0
        %986 = vmatmul.mubr.f32.gmra.mxu0 %v812
        %v987 = vpop.f32.mrf.mxu0
        %v988 = vadd.f32 0.0, %v987
        %v989 = vpop.f32.mrf.mxu0
        %990 = vmatprep.mubr.f32.mxu0 0.0
        %991 = vmatmul.mubr.f32.gmra.mxu0 %v815
        %v992 = vpop.f32.mrf.mxu0
        %v993 = vadd.f32 0.0, %v992
        %v994 = vpop.f32.mrf.mxu0
        %995 = vmatprep.mubr.f32.mxu0 0.0
        %996 = vmatmul.mubr.f32.gmra.mxu0 %v818
        %v997 = vpop.f32.mrf.mxu0
        %v998 = vadd.f32 0.0, %v997
        %v999 = vpop.f32.mrf.mxu0
        %1000 = vmatprep.mubr.f32.mxu0 0.0
        %1001 = vmatmul.mubr.f32.gmra.mxu0 %v821
        %v1002 = vpop.f32.mrf.mxu0
        %v1003 = vadd.f32 0.0, %v1002
        %v1004 = vpop.f32.mrf.mxu0
        %1005 = vmatprep.mubr.f32.mxu0 0.0
        %1006 = vmatmul.mubr.f32.gmra.mxu0 %v824
        %v1007 = vpop.f32.mrf.mxu0
        %v1008 = vadd.f32 0.0, %v1007
        %v1009 = vpop.f32.mrf.mxu0
        %1010 = vdwg.mxu0
        %vm1016 = vcmask 1040384
        %v1017 = vrot.slane %v893, 7
        %v1018 = vrot.slane %v899, 7
        %v1019 = vsel %vm1016, %v1017, %v1018
        %v1020 = vrot.slane %v905, 7
        %v1021 = vsel %vm1016, %v1018, %v1020
        %v1022 = vrot.slane %v911, 7
        %v1023 = vsel %vm1016, %v1020, %v1022
        %v1024 = vrot.slane %v917, 7
        %v1025 = vsel %vm1016, %v1022, %v1024
        %v1031 = vsel %vm1016, 0.0, %v1017
        %vm1037 = vcmask 1046528
        %v1038 = vrot.slane %v988, 1
        %v1039 = vrot.slane %v993, 1
        %v1040 = vsel %vm1037, %v1038, %v1039
        %v1041 = vrot.slane %v998, 1
        %v1042 = vsel %vm1037, %v1039, %v1041
        %v1043 = vrot.slane %v1003, 1
        %v1044 = vsel %vm1037, %v1041, %v1043
        %v1045 = vrot.slane %v1008, 1
        %v1046 = vsel %vm1037, %v1043, %v1045
        %vm1052 = vcmask 1042432
        %v1053 = vsel %vm1052, %v1045, 0.0
        %v1054 = vadd.f32 %v1031, %v895
        %v1055 = vadd.f32 %v1019, %v901
        %v1056 = vadd.f32 %v1021, %v907
        %v1057 = vadd.f32 %v1023, %v913
        %v1058 = vadd.f32 %v1025, %v919
        %v1059 = vadd.f32 %v1054, %v1040
        %v1060 = vadd.f32 %v1055, %v1042
        %v1061 = vadd.f32 %v1056, %v1044
        %v1062 = vadd.f32 %v1057, %v1046
        %v1063 = vadd.f32 %v1058, %v1053
        %v1064 = vld [vmem:[#allocation3] sm:$0x1]
        %v1066 = vlaneseq
        %v1067 = vshrl.u32 %v1066, 7
        %v1068 = vsub.s32 0, %v1067
        %v1069 = vrot.slane %v1064, %v1068
        %v1071 = vmul.f32 %v1059, %v1069
        %v1072 = vmul.f32 %v1060, %v1069
        %v1073 = vmul.f32 %v1061, %v1069
        %v1074 = vmul.f32 %v1062, %v1069
        %v1075 = vmul.f32 %v1063, %v1069
        %v1076 = vld [vmem:[#allocation4] sm:$0x1]
        %v1078 = vlaneseq
        %v1079 = vshrl.u32 %v1078, 7
        %v1080 = vsub.s32 0, %v1079
        %v1081 = vrot.slane %v1076, %v1080
        %v1083 = vadd.f32 %v1071, %v1081
        %v1084 = vadd.f32 %v1072, %v1081
        %v1085 = vadd.f32 %v1073, %v1081
        %v1086 = vadd.f32 %v1074, %v1081
        %v1087 = vadd.f32 %v1075, %v1081
        %v1088 = vld [vmem:[%s3] sm:$0xff]
        %v1089 = vld [vmem:[%s3 + $0x8] sm:$0xff]
        %v1090 = vld [vmem:[%s3 + $0x10] sm:$0xff]
        %v1091 = vld [vmem:[%s3 + $0x18] sm:$0xff]
        %v1092 = vld [vmem:[%s3 + $0x20] sm:$0xf]
        %v1093 = vmul.f32 %v1083, %v1088
        %v1094 = vmul.f32 %v1084, %v1089
        %v1095 = vmul.f32 %v1085, %v1090
        %v1096 = vmul.f32 %v1086, %v1091
        %v1097 = vmul.f32 %v1087, %v1092
        %1098 = vst [vmem:[%s315] sm:$0xff] %v1093
        %1099 = vst [vmem:[%s315 + $0x8] sm:$0xff] %v1094
        %1100 = vst [vmem:[%s315 + $0x10] sm:$0xff] %v1095
        %1101 = vst [vmem:[%s315 + $0x18] sm:$0xff] %v1096
        %1102 = vst [vmem:[%s315 + $0x20] sm:$0xf] %v1097
        %v1103 = vmax.f32 %v1083, 0.0
        %v1104 = vmax.f32 %v1084, 0.0
        %v1105 = vmax.f32 %v1085, 0.0
        %v1106 = vmax.f32 %v1086, 0.0
        %v1107 = vmax.f32 %v1087, 0.0
        %v1108 = vld [vmem:[%s3] sm:$0xff]
        %v1109 = vld [vmem:[%s3 + $0x8] sm:$0xff]
        %v1110 = vld [vmem:[%s3 + $0x10] sm:$0xff]
        %v1111 = vld [vmem:[%s3 + $0x18] sm:$0xff]
        %v1112 = vld [vmem:[%s3 + $0x20] sm:$0xf]
        %v1113 = vmul.f32 %v1103, %v1108
        %v1114 = vmul.f32 %v1104, %v1109
        %v1115 = vmul.f32 %v1105, %v1110
        %v1116 = vmul.f32 %v1106, %v1111
        %v1117 = vmul.f32 %v1107, %v1112
        %1118 = vst [vmem:[%s307] sm:$0xff] %v1113
        %1119 = vst [vmem:[%s307 + $0x8] sm:$0xff] %v1114
        %1120 = vst [vmem:[%s307 + $0x10] sm:$0xff] %v1115
        %1121 = vst [vmem:[%s307 + $0x18] sm:$0xff] %v1116
        %1122 = vst [vmem:[%s307 + $0x20] sm:$0xf] %v1117
      $region60: #{resblock_forward.3} parent=43 // pred_fallthru
        _
      %s1123 = smul.u32 %s24, %s23
      %s1124 = smul.u32 5, %s1123
      %p1125 = scmp.lt.s32.totalorder %s1124, 4
      %s1126 = scalar_select %p1125, %s1124, 4
      %s1127 = smul.addr %s1126, 8
      %s1128 = scalar_lea.vmem %s6, %s1127
      %s1129 = smul.u32 %s24, %s23
      %s1130 = smul.u32 5, %s1129
      %p1131 = scmp.lt.s32.totalorder %s1130, 4
      %s1132 = scalar_select %p1131, %s1130, 4
      %s1133 = smul.addr %s1132, 8
      %s1134 = scalar_lea.vmem %s7, %s1133
      // Predicated region
      $region61: #{resblock_forward.3} parent=43 // pred_check
        %p1135 = pneg %p182
      $region62: #{resblock_forward.3} parent=43 // pred_check_branch
        %1137 = sbr.rel (%p1135) target = $region64
      $region63: #{resblock_forward.3} parent=43 // pred_region
        %s1138 = smul.u32 %s24, %s23
        %s1139 = smul.u32 5, %s1138
      $region64: #{resblock_forward.3} parent=43 // pred_fallthru
        _
      // Predicated region
      $region65: #{resblock_forward.3} parent=43 // pred_check
        %p1140 = pneg %p210
      $region66: #{resblock_forward.3} parent=43 // pred_check_branch
        %1142 = sbr.rel (%p1140) target = $region68
      $region67: #{resblock_forward.3} parent=43 // pred_region
        %s1143 = smul.u32 %s24, %s23
        %s1144 = smul.u32 5, %s1143
      $region68: #{resblock_forward.3} parent=43 // pred_fallthru
        _
    $region44: #{resblock_forward.3} parent=5 // pred_fallthru
      _
    %p1145 = scmp.le.s32.totalorder 2, %s14
    // Predicated region
    $region69: #{resblock_forward.3} parent=5 // pred_check
      %p1146 = pneg %p1145
    $region70: #{resblock_forward.3} parent=5 // pred_check_branch
      %1148 = sbr.rel (%p1146) target = $region72
    $region71: #{resblock_forward.3} parent=5 // pred_region
      %s1149 = ssub.s32 %s14, 2
      // Predicated region
      $region73: #{resblock_forward.3} parent=71 // pred_check
        %p1150 = pneg %p188
      $region74: #{resblock_forward.3} parent=71 // pred_check_branch
        %1152 = sbr.rel (%p1150) target = $region76
      $region75: #{resblock_forward.3} parent=71 // pred_region
        %s1153 = smul.u32 %s26, %s25
        %s1154 = smul.u32 5, %s1153
        %p1155 = scmp.lt.s32.totalorder %s1154, 4
        %s1156 = scalar_select %p1155, %s1154, 4
        %s1157 = smul.addr %s1156, 8
        %s1158 = scalar_lea.vmem %s6, %s1157
      $region76: #{resblock_forward.3} parent=71 // pred_fallthru
        _
      // Predicated region
      $region77: #{resblock_forward.3} parent=71 // pred_check
        %p1159 = pneg %p216
      $region78: #{resblock_forward.3} parent=71 // pred_check_branch
        %1161 = sbr.rel (%p1159) target = $region80
      $region79: #{resblock_forward.3} parent=71 // pred_region
        %s1162 = smul.u32 %s26, %s25
        %s1163 = smul.u32 5, %s1162
        %p1164 = scmp.lt.s32.totalorder %s1163, 4
        %s1165 = scalar_select %p1164, %s1163, 4
        %s1166 = smul.addr %s1165, 8
        %s1167 = scalar_lea.vmem %s7, %s1166
      $region80: #{resblock_forward.3} parent=71 // pred_fallthru
        _
    $region72: #{resblock_forward.3} parent=5 // pred_fallthru
      _
  $region6: #{resblock_forward.3} parent=0 // loop_footer
    %s18 = sadd.s32 1, %s14
  $region7: #{resblock_forward.3} parent=0 // loop_footer_branch
    %13 = sbr.rel target = $region3
  $region8: #{resblock_forward.3} parent=0 // loop_exit
    _

// kernel: resblock_forward.4
$region0: #{resblock_forward.4}
  #allocation0 [shape = 'u32[]', space=smem, size = 0x4, offset = 0x4, fixed_abs, tag = 'smem constant byte address 0x4 - core index']
  #allocation1 [shape = 'u32[144,128]{1,0:T(1,128)}', space=vmem, size = 0x12000, scoped, tag = 'internal scratch']
  #allocation2 [shape = 'f32[2,128]{1,0:T(2,128)}', space=vmem, size = 0x400, scoped, tag = 'scratch operand']
  #allocation3 [shape = 'f32[1,128]{1,0:T(1,128)}', space=vmem, size = 0x200, scoped, tag = 'scratch operand']
  #allocation4 [shape = 'f32[1,128]{1,0:T(1,128)}', space=vmem, size = 0x200, scoped, tag = 'scratch operand']
  %s0 = inlined_call_operand.vmem [shape: f32[36,128], index: 0, kind: input, shape index: {}]
  %s1 = inlined_call_operand.vmem [shape: f32[128,384], index: 1, kind: input, shape index: {}]
  %s2 = inlined_call_operand.vmem [shape: f32[128,128], index: 2, kind: input, shape index: {}]
  %s3 = inlined_call_operand.vmem [shape: f32[36,128], index: 3, kind: input, shape index: {}]
  %s4 = inlined_call_operand.vmem [shape: f32[1,128], index: 4, kind: input, shape index: {}]
  %s5 = inlined_call_operand.vmem [shape: f32[1,128], index: 5, kind: input, shape index: {}]
  %s6 = inlined_call_operand.vmem [shape: f32[36,128], index: 6, kind: output, shape index: {}]
  %s7 = sld [smem:[#allocation0]]
  $region73: #{resblock_forward.4} parent=0
    _
  %s9 = ssub.s32 1, %s7
  %s10 = scalar_select 0, %s9, %s7
  loop: start=0, step=1, limit=4
  $region2: #{resblock_forward.4} parent=0 // loop_pre_header
    _
  $region3: #{resblock_forward.4} parent=0 // loop_header
    %s12 = sphi 0, %s16
    %p13 = scmp.ge.s32.totalorder %s12, 4
    %s19 = sphi 0, %s31
    %s20 = sphi 0, %s27
    %s21 = sphi 0, %s19
    %s22 = sphi 0, %s20
    %s23 = sphi 0, %s21
    %s24 = sphi 0, %s22
    %s34 = sphi 0, %s36
    %s37 = sphi 0, %s34
    %s38 = sphi 0, %s37
    %s54 = sphi 0, %s38
    %s58 = sphi 0, %s58
    %s60 = sphi 0, %s58
    %s61 = sphi 0, %s60
    %s75 = sphi 0, %s61
    %s79 = sphi 0, %s79
    %s81 = sphi 0, %s79
    %s82 = sphi 0, %s81
    %s96 = sphi 0, %s82
    %s100 = sphi 0, %s100
    %s102 = sphi 0, %s100
    %s103 = sphi 0, %s102
    %s117 = sphi 0, %s103
    %s121 = sphi 0, %s121
    %s123 = sphi 0, %s121
    %s124 = sphi 0, %s123
    %s138 = sphi 0, %s124
    %s142 = sphi 0, %s142
    %s144 = sphi 0, %s142
    %s145 = sphi 0, %s144
    %s159 = sphi 0, %s145
    %s167 = sphi 0, %s169
    %s170 = sphi 0, %s167
    %s171 = sphi 0, %s170
    %s187 = sphi 0, %s171
  $region4: #{resblock_forward.4} parent=0 // loop_header_branch
    %15 = sbr.rel (%p13) target = $region8
  $region5: #{resblock_forward.4} parent=0 // loop_body
    %s17 = ssub.s32 %s12, 1
    %s18 = ssub.s32 %s12, 2
    %s25 = sadd.s32 1, %s20
    %p26 = scmp.ge.s32.totalorder %s25, 1
    %s27 = scalar_select %p26, 0, %s25
    %s28 = sadd.s32 1, %s19
    %s29 = scalar_select %p26, %s28, %s19
    %p30 = scmp.ge.s32.totalorder %s29, 2
    %s31 = scalar_select %p30, 0, %s29
    %s32 = ssub.s32 %s20, %s27
    %p33 = scmp.eq.s32.totalorder %s32, 0
    %s35 = sadd.s32 %s34, 1
    %s36 = scalar_select %p33, %s34, %s35
    %p39 = pneg %p33
    %p40 = scmp.eq.s32.totalorder %s12, 1
    %p41 = por %p39, %p40
    %p42 = scmp.ne.s32.totalorder %s34, %s37
    %p43 = scmp.eq.s32.totalorder %s12, 0
    %p44 = por %p42, %p43
    %p45 = scmp.ne.s32.totalorder %s34, %s37
    %p46 = scmp.eq.s32.totalorder %s17, 1
    %p47 = por %p45, %p46
    %p48 = scmp.ne.s32.totalorder %s37, %s38
    %p49 = scmp.eq.s32.totalorder %s17, 0
    %p50 = por %p48, %p49
    %p51 = scmp.ne.s32.totalorder %s37, %s38
    %p52 = scmp.eq.s32.totalorder %s18, 1
    %p53 = por %p51, %p52
    %p55 = scmp.ne.s32.totalorder %s38, %s54
    %p56 = scmp.eq.s32.totalorder %s18, 0
    %p57 = por %p55, %p56
    %s59 = sadd.s32 %s58, 1
    %p62 = scmp.eq.s32.totalorder %s12, 1
    %p63 = scmp.ne.s32.totalorder %s58, %s60
    %p64 = scmp.eq.s32.totalorder %s12, 0
    %p65 = por %p63, %p64
    %p66 = scmp.ne.s32.totalorder %s58, %s60
    %p67 = scmp.eq.s32.totalorder %s17, 1
    %p68 = por %p66, %p67
    %p69 = scmp.ne.s32.totalorder %s60, %s61
    %p70 = scmp.eq.s32.totalorder %s17, 0
    %p71 = por %p69, %p70
    %p72 = scmp.ne.s32.totalorder %s60, %s61
    %p73 = scmp.eq.s32.totalorder %s18, 1
    %p74 = por %p72, %p73
    %p76 = scmp.ne.s32.totalorder %s61, %s75
    %p77 = scmp.eq.s32.totalorder %s18, 0
    %p78 = por %p76, %p77
    %s80 = sadd.s32 %s79, 1
    %p83 = scmp.eq.s32.totalorder %s12, 1
    %p84 = scmp.ne.s32.totalorder %s79, %s81
    %p85 = scmp.eq.s32.totalorder %s12, 0
    %p86 = por %p84, %p85
    %p87 = scmp.ne.s32.totalorder %s79, %s81
    %p88 = scmp.eq.s32.totalorder %s17, 1
    %p89 = por %p87, %p88
    %p90 = scmp.ne.s32.totalorder %s81, %s82
    %p91 = scmp.eq.s32.totalorder %s17, 0
    %p92 = por %p90, %p91
    %p93 = scmp.ne.s32.totalorder %s81, %s82
    %p94 = scmp.eq.s32.totalorder %s18, 1
    %p95 = por %p93, %p94
    %p97 = scmp.ne.s32.totalorder %s82, %s96
    %p98 = scmp.eq.s32.totalorder %s18, 0
    %p99 = por %p97, %p98
    %s101 = sadd.s32 %s100, 1
    %p104 = scmp.eq.s32.totalorder %s12, 1
    %p105 = scmp.ne.s32.totalorder %s100, %s102
    %p106 = scmp.eq.s32.totalorder %s12, 0
    %p107 = por %p105, %p106
    %p108 = scmp.ne.s32.totalorder %s100, %s102
    %p109 = scmp.eq.s32.totalorder %s17, 1
    %p110 = por %p108, %p109
    %p111 = scmp.ne.s32.totalorder %s102, %s103
    %p112 = scmp.eq.s32.totalorder %s17, 0
    %p113 = por %p111, %p112
    %p114 = scmp.ne.s32.totalorder %s102, %s103
    %p115 = scmp.eq.s32.totalorder %s18, 1
    %p116 = por %p114, %p115
    %p118 = scmp.ne.s32.totalorder %s103, %s117
    %p119 = scmp.eq.s32.totalorder %s18, 0
    %p120 = por %p118, %p119
    %s122 = sadd.s32 %s121, 1
    %p125 = scmp.eq.s32.totalorder %s12, 1
    %p126 = scmp.ne.s32.totalorder %s121, %s123
    %p127 = scmp.eq.s32.totalorder %s12, 0
    %p128 = por %p126, %p127
    %p129 = scmp.ne.s32.totalorder %s121, %s123
    %p130 = scmp.eq.s32.totalorder %s17, 1
    %p131 = por %p129, %p130
    %p132 = scmp.ne.s32.totalorder %s123, %s124
    %p133 = scmp.eq.s32.totalorder %s17, 0
    %p134 = por %p132, %p133
    %p135 = scmp.ne.s32.totalorder %s123, %s124
    %p136 = scmp.eq.s32.totalorder %s18, 1
    %p137 = por %p135, %p136
    %p139 = scmp.ne.s32.totalorder %s124, %s138
    %p140 = scmp.eq.s32.totalorder %s18, 0
    %p141 = por %p139, %p140
    %s143 = sadd.s32 %s142, 1
    %p146 = scmp.eq.s32.totalorder %s12, 1
    %p147 = scmp.ne.s32.totalorder %s142, %s144
    %p148 = scmp.eq.s32.totalorder %s12, 0
    %p149 = por %p147, %p148
    %p150 = scmp.ne.s32.totalorder %s142, %s144
    %p151 = scmp.eq.s32.totalorder %s17, 1
    %p152 = por %p150, %p151
    %p153 = scmp.ne.s32.totalorder %s144, %s145
    %p154 = scmp.eq.s32.totalorder %s17, 0
    %p155 = por %p153, %p154
    %p156 = scmp.ne.s32.totalorder %s144, %s145
    %p157 = scmp.eq.s32.totalorder %s18, 1
    %p158 = por %p156, %p157
    %p160 = scmp.ne.s32.totalorder %s145, %s159
    %p161 = scmp.eq.s32.totalorder %s18, 0
    %p162 = por %p160, %p161
    %s163 = smul.u32 %s20, %s19
    %s164 = smul.u32 %s27, %s31
    %s165 = ssub.s32 %s163, %s164
    %p166 = scmp.eq.s32.totalorder %s165, 0
    %s168 = sadd.s32 %s167, 1
    %s169 = scalar_select %p166, %s167, %s168
    %p172 = pneg %p166
    %p173 = scmp.eq.s32.totalorder %s12, 1
    %p174 = por %p172, %p173
    %p175 = scmp.ne.s32.totalorder %s167, %s170
    %p176 = scmp.eq.s32.totalorder %s12, 0
    %p177 = por %p175, %p176
    %p178 = scmp.ne.s32.totalorder %s167, %s170
    %p179 = scmp.eq.s32.totalorder %s17, 1
    %p180 = por %p178, %p179
    %p181 = scmp.ne.s32.totalorder %s170, %s171
    %p182 = scmp.eq.s32.totalorder %s17, 0
    %p183 = por %p181, %p182
    %p184 = scmp.ne.s32.totalorder %s170, %s171
    %p185 = scmp.eq.s32.totalorder %s18, 1
    %p186 = por %p184, %p185
    %p188 = scmp.ne.s32.totalorder %s171, %s187
    %p189 = scmp.eq.s32.totalorder %s18, 0
    %p190 = por %p188, %p189
    %p191 = scmp.le.s32.totalorder 1, %s12
    %p192 = scmp.lt.s32.totalorder %s12, 3
    %p193 = pnand %p191, %p192
    %p194 = pneg %p193
    // Predicated region
    $region9: #{resblock_forward.4} parent=5 // pred_check
      _
    $region10: #{resblock_forward.4} parent=5 // pred_check_branch
      %196 = sbr.rel (%p193) target = $region12
    $region11: #{resblock_forward.4} parent=5 // pred_region
      %s197 = ssub.s32 %s12, 1
      // Predicated region
      $region13: #{resblock_forward.4} parent=11 // pred_check
        %p198 = pneg %p50
      $region14: #{resblock_forward.4} parent=11 // pred_check_branch
        %200 = sbr.rel (%p198) target = $region16
      $region15: #{resblock_forward.4} parent=11 // pred_region
        %s201 = smul.u32 5, %s22
        %p202 = scmp.lt.s32.totalorder %s201, 4
        %s203 = scalar_select %p202, %s201, 4
        %s204 = smul.addr %s203, 8
        %s205 = scalar_lea.vmem %s0, %s204
        %s206 = smul.u32 5, %s22
      $region16: #{resblock_forward.4} parent=11 // pred_fallthru
        _
      // Predicated region
      $region17: #{resblock_forward.4} parent=11 // pred_check
        %p207 = pneg %p71
      $region18: #{resblock_forward.4} parent=11 // pred_check_branch
        %209 = sbr.rel (%p207) target = $region20
      $region19: #{resblock_forward.4} parent=11 // pred_region
        _
      $region20: #{resblock_forward.4} parent=11 // pred_fallthru
        _
      // Predicated region
      $region21: #{resblock_forward.4} parent=11 // pred_check
        %p210 = pneg %p92
      $region22: #{resblock_forward.4} parent=11 // pred_check_branch
        %212 = sbr.rel (%p210) target = $region24
      $region23: #{resblock_forward.4} parent=11 // pred_region
        _
      $region24: #{resblock_forward.4} parent=11 // pred_fallthru
        _
      // Predicated region
      $region25: #{resblock_forward.4} parent=11 // pred_check
        %p213 = pneg %p113
      $region26: #{resblock_forward.4} parent=11 // pred_check_branch
        %215 = sbr.rel (%p213) target = $region28
      $region27: #{resblock_forward.4} parent=11 // pred_region
        _
      $region28: #{resblock_forward.4} parent=11 // pred_fallthru
        _
      // Predicated region
      $region29: #{resblock_forward.4} parent=11 // pred_check
        %p216 = pneg %p134
      $region30: #{resblock_forward.4} parent=11 // pred_check_branch
        %218 = sbr.rel (%p216) target = $region32
      $region31: #{resblock_forward.4} parent=11 // pred_region
        _
      $region32: #{resblock_forward.4} parent=11 // pred_fallthru
        _
      // Predicated region
      $region33: #{resblock_forward.4} parent=11 // pred_check
        %p219 = pneg %p155
      $region34: #{resblock_forward.4} parent=11 // pred_check_branch
        %221 = sbr.rel (%p219) target = $region36
      $region35: #{resblock_forward.4} parent=11 // pred_region
        _
      $region36: #{resblock_forward.4} parent=11 // pred_fallthru
        _
    $region12: #{resblock_forward.4} parent=5 // pred_fallthru
      _
    %p222 = scmp.lt.s32.totalorder %s12, 2
    // Predicated region
    $region37: #{resblock_forward.4} parent=5 // pred_check
      %p223 = pneg %p222
    $region38: #{resblock_forward.4} parent=5 // pred_check_branch
      %225 = sbr.rel (%p223) target = $region40
    $region39: #{resblock_forward.4} parent=5 // pred_region
      _
    $region40: #{resblock_forward.4} parent=5 // pred_fallthru
      _
    %p226 = scmp.le.s32.totalorder 1, %s12
    %p227 = scmp.lt.s32.totalorder %s12, 3
    %p228 = pnand %p226, %p227
    %p229 = pneg %p228
    // Predicated region
    $region41: #{resblock_forward.4} parent=5 // pred_check
      _
    $region42: #{resblock_forward.4} parent=5 // pred_check_branch
      %231 = sbr.rel (%p228) target = $region44
    $region43: #{resblock_forward.4} parent=5 // pred_region
      %s232 = ssub.s32 %s12, 1
      %s233 = smul.u32 5, %s22
      %p234 = scmp.lt.s32.totalorder %s233, 4
      %s235 = scalar_select %p234, %s233, 4
      %s236 = smul.addr %s235, 8
      %s237 = scalar_lea.vmem %s0, %s236
      %p238 = pneg %p50
      %p239 = pneg %p47
      %p240 = pneg %p71
      %p241 = pneg %p68
      %p242 = pneg %p92
      %p243 = pneg %p89
      %p244 = pneg %p113
      %p245 = pneg %p110
      %p246 = pneg %p134
      %p247 = pneg %p131
      %p248 = pneg %p155
      %p249 = pneg %p152
      %p250 = pneg %p183
      %p251 = pneg %p180
      %s252 = smul.u32 %s22, %s21
      %s253 = smul.u32 5, %s252
      %p254 = scmp.lt.s32.totalorder %s253, 4
      %s255 = scalar_select %p254, %s253, 4
      %s256 = smul.addr %s255, 8
      %s257 = scalar_lea.vmem %s6, %s256
      %s258 = smul.u32 5, %s22
      %p259 = scmp.lt.s32.totalorder %s258, 4
      %s260 = scalar_select %p259, %s258, 4
      %s261 = smul.addr %s260, 8
      %s262 = scalar_lea.vmem %s0, %s261
      %s263 = smul.u32 5, %s22
      %s264 = smul.u32 %s22, %s21
      %s265 = smul.u32 5, %s264
      %p266 = scmp.lt.s32.totalorder %s265, 4
      %s267 = scalar_select %p266, %s265, 4
      %s268 = smul.addr %s267, 8
      %s269 = scalar_lea.vmem %s6, %s268
      %s270 = smul.u32 %s22, %s21
      %s271 = smul.u32 5, %s270
      %p272 = scmp.eq.s32.totalorder %s21, 0
      %p273 = scmp.eq.s32.totalorder %s22, 0
      %p274 = pnand %p272, %p273
      %p275 = pneg %p274
      // Predicated region
      $region45: #{resblock_forward.4} parent=43 // pred_check
        _
      $region46: #{resblock_forward.4} parent=43 // pred_check_branch
        %277 = sbr.rel (%p274) target = $region48
      $region47: #{resblock_forward.4} parent=43 // pred_region
        %278 = vst [vmem:[#allocation2] sm:$0x3] 0.0
      $region48: #{resblock_forward.4} parent=43 // pred_fallthru
        _
      // Predicated region
      $region49: #{resblock_forward.4} parent=43 // pred_check
        %p279 = pneg %p272
      $region50: #{resblock_forward.4} parent=43 // pred_check_branch
        %281 = sbr.rel (%p279) target = $region52
      $region51: #{resblock_forward.4} parent=43 // pred_region
        %v282 = vld [vmem:[%s262] sm:$0xff]
        %v283 = vld [vmem:[%s262 + $0x8] sm:$0xff]
        %v284 = vld [vmem:[%s262 + $0x10] sm:$0xff]
        %v285 = vld [vmem:[%s262 + $0x18] sm:$0xff]
        %v286 = vld [vmem:[%s262 + $0x20] sm:$0xf]
        %v287 = vld [vmem:[%s1] sm:$0xff]
        %v288 = vld [vmem:[%s1 + $0x8] sm:$0xff]
        %v289 = vld [vmem:[%s1 + $0x10] sm:$0xff]
        %v290 = vld [vmem:[%s1 + $0x18] sm:$0xff]
        %v291 = vld [vmem:[%s1 + $0x20] sm:$0xff]
        %v292 = vld [vmem:[%s1 + $0x28] sm:$0xff]
        %v293 = vld [vmem:[%s1 + $0x30] sm:$0xff]
        %v294 = vld [vmem:[%s1 + $0x38] sm:$0xff]
        %v295 = vld [vmem:[%s1 + $0x40] sm:$0xff]
        %v296 = vld [vmem:[%s1 + $0x48] sm:$0xff]
        %v297 = vld [vmem:[%s1 + $0x50] sm:$0xff]
        %v298 = vld [vmem:[%s1 + $0x58] sm:$0xff]
        %v299 = vld [vmem:[%s1 + $0x60] sm:$0xff]
        %v300 = vld [vmem:[%s1 + $0x68] sm:$0xff]
        %v301 = vld [vmem:[%s1 + $0x70] sm:$0xff]
        %v302 = vld [vmem:[%s1 + $0x78] sm:$0xff]
        %v303 = vld [vmem:[%s1 + $0x80] sm:$0xff]
        %v304 = vld [vmem:[%s1 + $0x88] sm:$0xff]
        %v305 = vld [vmem:[%s1 + $0x90] sm:$0xff]
        %v306 = vld [vmem:[%s1 + $0x98] sm:$0xff]
        %v307 = vld [vmem:[%s1 + $0xa0] sm:$0xff]
        %v308 = vld [vmem:[%s1 + $0xa8] sm:$0xff]
        %v309 = vld [vmem:[%s1 + $0xb0] sm:$0xff]
        %v310 = vld [vmem:[%s1 + $0xb8] sm:$0xff]
        %v311 = vld [vmem:[%s1 + $0xc0] sm:$0xff]
        %v312 = vld [vmem:[%s1 + $0xc8] sm:$0xff]
        %v313 = vld [vmem:[%s1 + $0xd0] sm:$0xff]
        %v314 = vld [vmem:[%s1 + $0xd8] sm:$0xff]
        %v315 = vld [vmem:[%s1 + $0xe0] sm:$0xff]
        %v316 = vld [vmem:[%s1 + $0xe8] sm:$0xff]
        %v317 = vld [vmem:[%s1 + $0xf0] sm:$0xff]
        %v318 = vld [vmem:[%s1 + $0xf8] sm:$0xff]
        %v319 = vld [vmem:[%s1 + $0x100] sm:$0xff]
        %v320 = vld [vmem:[%s1 + $0x108] sm:$0xff]
        %v321 = vld [vmem:[%s1 + $0x110] sm:$0xff]
        %v322 = vld [vmem:[%s1 + $0x118] sm:$0xff]
        %v323 = vld [vmem:[%s1 + $0x120] sm:$0xff]
        %v324 = vld [vmem:[%s1 + $0x128] sm:$0xff]
        %v325 = vld [vmem:[%s1 + $0x130] sm:$0xff]
        %v326 = vld [vmem:[%s1 + $0x138] sm:$0xff]
        %v327 = vld [vmem:[%s1 + $0x140] sm:$0xff]
        %v328 = vld [vmem:[%s1 + $0x148] sm:$0xff]
        %v329 = vld [vmem:[%s1 + $0x150] sm:$0xff]
        %v330 = vld [vmem:[%s1 + $0x158] sm:$0xff]
        %v331 = vld [vmem:[%s1 + $0x160] sm:$0xff]
        %v332 = vld [vmem:[%s1 + $0x168] sm:$0xff]
        %v333 = vld [vmem:[%s1 + $0x170] sm:$0xff]
        %v334 = vld [vmem:[%s1 + $0x178] sm:$0xff]
        %335 = vmatprep.subr.mxu0 %v333
        %336 = vmatpush1.msra.mxu0 %v332
        %337 = vmatprep.subr.mxu0 %v330
        %338 = vmatpush1.msra.mxu0 %v329
        %339 = vmatprep.subr.mxu0 %v327
        %340 = vmatpush1.msra.mxu0 %v326
        %341 = vmatprep.subr.mxu0 %v324
        %342 = vmatpush1.msra.mxu0 %v323
        %343 = vmatprep.subr.mxu0 %v321
        %344 = vmatpush1.msra.mxu0 %v320
        %345 = vmatprep.subr.mxu0 %v318
        %346 = vmatpush1.msra.mxu0 %v317
        %347 = vmatprep.subr.mxu0 %v315
        %348 = vmatpush1.msra.mxu0 %v314
        %349 = vmatprep.subr.mxu0 %v312
        %350 = vmatpush1.msra.mxu0 %v311
        %351 = vmatprep.subr.mxu0 %v309
        %352 = vmatpush1.msra.mxu0 %v308
        %353 = vmatprep.subr.mxu0 %v306
        %354 = vmatpush1.msra.mxu0 %v305
        %355 = vmatprep.subr.mxu0 %v303
        %356 = vmatpush1.msra.mxu0 %v302
        %357 = vmatprep.subr.mxu0 %v300
        %358 = vmatpush1.msra.mxu0 %v299
        %359 = vmatprep.subr.mxu0 %v297
        %360 = vmatpush1.msra.mxu0 %v296
        %361 = vmatprep.subr.mxu0 %v294
        %362 = vmatpush1.msra.mxu0 %v293
        %363 = vmatprep.subr.mxu0 %v291
        %364 = vmatpush1.msra.mxu0 %v290
        %365 = vmatprep.subr.mxu0 %v288
        %366 = vmatpush1.msra.mxu0 %v287
        %367 = vmatprep.subr.mxu0 0.0
        %368 = vmatpush2.msra.mxu0 0.0
        %369 = vmatprep.subr.mxu0 0.0
        %370 = vmatpush2.msra.mxu0 0.0
        %371 = vmatprep.subr.mxu0 0.0
        %372 = vmatpush2.msra.mxu0 0.0
        %373 = vmatprep.subr.mxu0 0.0
        %374 = vmatpush2.msra.mxu0 0.0
        %375 = vmatprep.subr.mxu0 0.0
        %376 = vmatpush2.msra.mxu0 0.0
        %377 = vmatprep.subr.mxu0 0.0
        %378 = vmatpush2.msra.mxu0 0.0
        %379 = vmatprep.subr.mxu0 0.0
        %380 = vmatpush2.msra.mxu0 0.0
        %381 = vmatprep.subr.mxu0 0.0
        %382 = vmatpush2.msra.mxu0 0.0
        %383 = vmatprep.subr.mxu0 0.0
        %384 = vmatpush2.msra.mxu0 0.0
        %385 = vmatprep.subr.mxu0 0.0
        %386 = vmatpush2.msra.mxu0 0.0
        %387 = vmatprep.subr.mxu0 0.0
        %388 = vmatpush2.msra.mxu0 0.0
        %389 = vmatprep.subr.mxu0 0.0
        %390 = vmatpush2.msra.mxu0 0.0
        %391 = vmatprep.subr.mxu0 0.0
        %392 = vmatpush2.msra.mxu0 0.0
        %393 = vmatprep.subr.mxu0 0.0
        %394 = vmatpush2.msra.mxu0 0.0
        %395 = vmatprep.subr.mxu0 0.0
        %396 = vmatpush2.msra.mxu0 0.0
        %397 = vmatprep.subr.mxu0 0.0
        %398 = vmatpush2.msra.mxu0 0.0
        %399 = vmatprep.mubr.f32.mxu0 0.0
        %400 = vmatmul.mubr.f32.gmra.mxu0 %v282
        %v401 = vpop.f32.mrf.mxu0
        %v402 = vadd.f32 0.0, %v401
        %v403 = vpop.f32.mrf.mxu0
        %v404 = vadd.f32 0.0, %v403
        %405 = vmatprep.mubr.f32.mxu0 0.0
        %406 = vmatmul.mubr.f32.gmra.mxu0 %v283
        %v407 = vpop.f32.mrf.mxu0
        %v408 = vadd.f32 0.0, %v407
        %v409 = vpop.f32.mrf.mxu0
        %v410 = vadd.f32 0.0, %v409
        %411 = vmatprep.mubr.f32.mxu0 0.0
        %412 = vmatmul.mubr.f32.gmra.mxu0 %v284
        %v413 = vpop.f32.mrf.mxu0
        %v414 = vadd.f32 0.0, %v413
        %v415 = vpop.f32.mrf.mxu0
        %v416 = vadd.f32 0.0, %v415
        %417 = vmatprep.mubr.f32.mxu0 0.0
        %418 = vmatmul.mubr.f32.gmra.mxu0 %v285
        %v419 = vpop.f32.mrf.mxu0
        %v420 = vadd.f32 0.0, %v419
        %v421 = vpop.f32.mrf.mxu0
        %v422 = vadd.f32 0.0, %v421
        %423 = vmatprep.mubr.f32.mxu0 0.0
        %424 = vmatmul.mubr.f32.gmra.mxu0 %v286
        %v425 = vpop.f32.mrf.mxu0
        %v426 = vadd.f32 0.0, %v425
        %v427 = vpop.f32.mrf.mxu0
        %v428 = vadd.f32 0.0, %v427
        %429 = vdwg.mxu0
        %430 = vmatprep.subr.mxu0 0.0
        %431 = vmatpush1.msra.mxu0 %v334
        %432 = vmatprep.subr.mxu0 0.0
        %433 = vmatpush1.msra.mxu0 %v331
        %434 = vmatprep.subr.mxu0 0.0
        %435 = vmatpush1.msra.mxu0 %v328
        %436 = vmatprep.subr.mxu0 0.0
        %437 = vmatpush1.msra.mxu0 %v325
        %438 = vmatprep.subr.mxu0 0.0
        %439 = vmatpush1.msra.mxu0 %v322
        %440 = vmatprep.subr.mxu0 0.0
        %441 = vmatpush1.msra.mxu0 %v319
        %442 = vmatprep.subr.mxu0 0.0
        %443 = vmatpush1.msra.mxu0 %v316
        %444 = vmatprep.subr.mxu0 0.0
        %445 = vmatpush1.msra.mxu0 %v313
        %446 = vmatprep.subr.mxu0 0.0
        %447 = vmatpush1.msra.mxu0 %v310
        %448 = vmatprep.subr.mxu0 0.0
        %449 = vmatpush1.msra.mxu0 %v307
        %450 = vmatprep.subr.mxu0 0.0
        %451 = vmatpush1.msra.mxu0 %v304
        %452 = vmatprep.subr.mxu0 0.0
        %453 = vmatpush1.msra.mxu0 %v301
        %454 = vmatprep.subr.mxu0 0.0
        %455 = vmatpush1.msra.mxu0 %v298
        %456 = vmatprep.subr.mxu0 0.0
        %457 = vmatpush1.msra.mxu0 %v295
        %458 = vmatprep.subr.mxu0 0.0
        %459 = vmatpush1.msra.mxu0 %v292
        %460 = vmatprep.subr.mxu0 0.0
        %461 = vmatpush1.msra.mxu0 %v289
        %462 = vmatprep.subr.mxu0 0.0
        %463 = vmatpush2.msra.mxu0 0.0
        %464 = vmatprep.subr.mxu0 0.0
        %465 = vmatpush2.msra.mxu0 0.0
        %466 = vmatprep.subr.mxu0 0.0
        %467 = vmatpush2.msra.mxu0 0.0
        %468 = vmatprep.subr.mxu0 0.0
        %469 = vmatpush2.msra.mxu0 0.0
        %470 = vmatprep.subr.mxu0 0.0
        %471 = vmatpush2.msra.mxu0 0.0
        %472 = vmatprep.subr.mxu0 0.0
        %473 = vmatpush2.msra.mxu0 0.0
        %474 = vmatprep.subr.mxu0 0.0
        %475 = vmatpush2.msra.mxu0 0.0
        %476 = vmatprep.subr.mxu0 0.0
        %477 = vmatpush2.msra.mxu0 0.0
        %478 = vmatprep.subr.mxu0 0.0
        %479 = vmatpush2.msra.mxu0 0.0
        %480 = vmatprep.subr.mxu0 0.0
        %481 = vmatpush2.msra.mxu0 0.0
        %482 = vmatprep.subr.mxu0 0.0
        %483 = vmatpush2.msra.mxu0 0.0
        %484 = vmatprep.subr.mxu0 0.0
        %485 = vmatpush2.msra.mxu0 0.0
        %486 = vmatprep.subr.mxu0 0.0
        %487 = vmatpush2.msra.mxu0 0.0
        %488 = vmatprep.subr.mxu0 0.0
        %489 = vmatpush2.msra.mxu0 0.0
        %490 = vmatprep.subr.mxu0 0.0
        %491 = vmatpush2.msra.mxu0 0.0
        %492 = vmatprep.subr.mxu0 0.0
        %493 = vmatpush2.msra.mxu0 0.0
        %494 = vmatprep.mubr.f32.mxu0 0.0
        %495 = vmatmul.mubr.f32.gmra.mxu0 %v282
        %v496 = vpop.f32.mrf.mxu0
        %v497 = vadd.f32 0.0, %v496
        %v498 = vpop.f32.mrf.mxu0
        %499 = vmatprep.mubr.f32.mxu0 0.0
        %500 = vmatmul.mubr.f32.gmra.mxu0 %v283
        %v501 = vpop.f32.mrf.mxu0
        %v502 = vadd.f32 0.0, %v501
        %v503 = vpop.f32.mrf.mxu0
        %504 = vmatprep.mubr.f32.mxu0 0.0
        %505 = vmatmul.mubr.f32.gmra.mxu0 %v284
        %v506 = vpop.f32.mrf.mxu0
        %v507 = vadd.f32 0.0, %v506
        %v508 = vpop.f32.mrf.mxu0
        %509 = vmatprep.mubr.f32.mxu0 0.0
        %510 = vmatmul.mubr.f32.gmra.mxu0 %v285
        %v511 = vpop.f32.mrf.mxu0
        %v512 = vadd.f32 0.0, %v511
        %v513 = vpop.f32.mrf.mxu0
        %514 = vmatprep.mubr.f32.mxu0 0.0
        %515 = vmatmul.mubr.f32.gmra.mxu0 %v286
        %v516 = vpop.f32.mrf.mxu0
        %v517 = vadd.f32 0.0, %v516
        %v518 = vpop.f32.mrf.mxu0
        %519 = vdwg.mxu0
        %vm525 = vcmask 1040384
        %v526 = vrot.slane %v402, 7
        %v527 = vrot.slane %v408, 7
        %v528 = vsel %vm525, %v526, %v527
        %v529 = vrot.slane %v414, 7
        %v530 = vsel %vm525, %v527, %v529
        %v531 = vrot.slane %v420, 7
        %v532 = vsel %vm525, %v529, %v531
        %v533 = vrot.slane %v426, 7
        %v534 = vsel %vm525, %v531, %v533
        %v540 = vsel %vm525, 0.0, %v526
        %vm546 = vcmask 1046528
        %v547 = vrot.slane %v497, 1
        %v548 = vrot.slane %v502, 1
        %v549 = vsel %vm546, %v547, %v548
        %v550 = vrot.slane %v507, 1
        %v551 = vsel %vm546, %v548, %v550
        %v552 = vrot.slane %v512, 1
        %v553 = vsel %vm546, %v550, %v552
        %v554 = vrot.slane %v517, 1
        %v555 = vsel %vm546, %v552, %v554
        %vm561 = vcmask 1042432
        %v562 = vsel %vm561, %v554, 0.0
        %v563 = vadd.f32 %v540, %v404
        %v564 = vadd.f32 %v528, %v410
        %v565 = vadd.f32 %v530, %v416
        %v566 = vadd.f32 %v532, %v422
        %v567 = vadd.f32 %v534, %v428
        %v568 = vadd.f32 %v563, %v549
        %v569 = vadd.f32 %v564, %v551
        %v570 = vadd.f32 %v565, %v553
        %v571 = vadd.f32 %v566, %v555
        %v572 = vadd.f32 %v567, %v562
        %v573 = vld [vmem:[%s3] sm:$0xff]
        %v574 = vld [vmem:[%s3 + $0x8] sm:$0xff]
        %v575 = vld [vmem:[%s3 + $0x10] sm:$0xff]
        %v576 = vld [vmem:[%s3 + $0x18] sm:$0xff]
        %v577 = vld [vmem:[%s3 + $0x20] sm:$0xf]
        %v578 = vmul.f32 %v568, %v573
        %v579 = vmul.f32 %v569, %v574
        %v580 = vmul.f32 %v570, %v575
        %v581 = vmul.f32 %v571, %v576
        %v582 = vmul.f32 %v572, %v577
        %v583 = vadd.f32 %v578, %v579
        %v584 = vadd.f32 %v583, %v580
        %v585 = vadd.f32 %v584, %v581
        %vm586 = vcmask 1043456
        %v587 = vsel %vm586, %v582, 0.0
        %v588 = vadd.f32 %v585, %v587
        %v589 = vrot.slane %v588, 4
        %v590 = vadd.f32 %v588, %v589
        %v591 = vrot.slane %v590, 2
        %v592 = vadd.f32 %v590, %v591
        %v593 = vrot.slane %v592, 1
        %v594 = vadd.f32 %v592, %v593
        %v595 = vmul.f32 %v578, %v578
        %v596 = vmul.f32 %v579, %v579
        %v597 = vmul.f32 %v580, %v580
        %v598 = vmul.f32 %v581, %v581
        %v599 = vmul.f32 %v582, %v582
        %v600 = vadd.f32 %v595, %v596
        %v601 = vadd.f32 %v600, %v597
        %v602 = vadd.f32 %v601, %v598
        %v603 = vsel %vm586, %v599, 0.0
        %v604 = vadd.f32 %v602, %v603
        %v605 = vrot.slane %v604, 4
        %v606 = vadd.f32 %v604, %v605
        %v607 = vrot.slane %v606, 2
        %v608 = vadd.f32 %v606, %v607
        %v609 = vrot.slane %v608, 1
        %v610 = vadd.f32 %v608, %v609
        %v611 = vld [vmem:[#allocation2] sm:$0x3]
        %v612 = vsel %vm525, %v594, %v610
        %v613 = vadd.f32 %v611, %v612
        %614 = vst [vmem:[#allocation2] sm:$0x3] %v613
      $region52: #{resblock_forward.4} parent=43 // pred_fallthru
        _
      %p615 = scmp.eq.s32.totalorder %s21, 1
      %p616 = pnand %p615, %p273
      %p617 = pneg %p616
      // Predicated region
      $region53: #{resblock_forward.4} parent=43 // pred_check
        _
      $region54: #{resblock_forward.4} parent=43 // pred_check_branch
        %619 = sbr.rel (%p616) target = $region56
      $region55: #{resblock_forward.4} parent=43 // pred_region
        %v620 = vld [vmem:[#allocation2] sm:$0x3]
        %v621 = vld [vmem:[%s2] sm:$0xff]
        %v622 = vld [vmem:[%s2 + $0x8] sm:$0xff]
        %v623 = vld [vmem:[%s2 + $0x10] sm:$0xff]
        %v624 = vld [vmem:[%s2 + $0x18] sm:$0xff]
        %v625 = vld [vmem:[%s2 + $0x20] sm:$0xff]
        %v626 = vld [vmem:[%s2 + $0x28] sm:$0xff]
        %v627 = vld [vmem:[%s2 + $0x30] sm:$0xff]
        %v628 = vld [vmem:[%s2 + $0x38] sm:$0xff]
        %v629 = vld [vmem:[%s2 + $0x40] sm:$0xff]
        %v630 = vld [vmem:[%s2 + $0x48] sm:$0xff]
        %v631 = vld [vmem:[%s2 + $0x50] sm:$0xff]
        %v632 = vld [vmem:[%s2 + $0x58] sm:$0xff]
        %v633 = vld [vmem:[%s2 + $0x60] sm:$0xff]
        %v634 = vld [vmem:[%s2 + $0x68] sm:$0xff]
        %v635 = vld [vmem:[%s2 + $0x70] sm:$0xff]
        %v636 = vld [vmem:[%s2 + $0x78] sm:$0xff]
        %637 = vmatprep.subr.mxu0 0.0
        %638 = vmatpush1.msra.mxu0 %v636
        %639 = vmatprep.subr.mxu0 0.0
        %640 = vmatpush1.msra.mxu0 %v635
        %641 = vmatprep.subr.mxu0 0.0
        %642 = vmatpush1.msra.mxu0 %v634
        %643 = vmatprep.subr.mxu0 0.0
        %644 = vmatpush1.msra.mxu0 %v633
        %645 = vmatprep.subr.mxu0 0.0
        %646 = vmatpush1.msra.mxu0 %v632
        %647 = vmatprep.subr.mxu0 0.0
        %648 = vmatpush1.msra.mxu0 %v631
        %649 = vmatprep.subr.mxu0 0.0
        %650 = vmatpush1.msra.mxu0 %v630
        %651 = vmatprep.subr.mxu0 0.0
        %652 = vmatpush1.msra.mxu0 %v629
        %653 = vmatprep.subr.mxu0 0.0
        %654 = vmatpush1.msra.mxu0 %v628
        %655 = vmatprep.subr.mxu0 0.0
        %656 = vmatpush1.msra.mxu0 %v627
        %657 = vmatprep.subr.mxu0 0.0
        %658 = vmatpush1.msra.mxu0 %v626
        %659 = vmatprep.subr.mxu0 0.0
        %660 = vmatpush1.msra.mxu0 %v625
        %661 = vmatprep.subr.mxu0 0.0
        %662 = vmatpush1.msra.mxu0 %v624
        %663 = vmatprep.subr.mxu0 0.0
        %664 = vmatpush1.msra.mxu0 %v623
        %665 = vmatprep.subr.mxu0 0.0
        %666 = vmatpush1.msra.mxu0 %v622
        %667 = vmatprep.subr.mxu0 0.0
        %668 = vmatpush1.msra.mxu0 %v621
        %669 = vmatprep.subr.mxu0 0.0
        %670 = vmatpush2.msra.mxu0 0.0
        %671 = vmatprep.subr.mxu0 0.0
        %672 = vmatpush2.msra.mxu0 0.0
        %673 = vmatprep.subr.mxu0 0.0
        %674 = vmatpush2.msra.mxu0 0.0
        %675 = vmatprep.subr.mxu0 0.0
        %676 = vmatpush2.msra.mxu0 0.0
        %677 = vmatprep.subr.mxu0 0.0
        %678 = vmatpush2.msra.mxu0 0.0
        %679 = vmatprep.subr.mxu0 0.0
        %680 = vmatpush2.msra.mxu0 0.0
        %681 = vmatprep.subr.mxu0 0.0
        %682 = vmatpush2.msra.mxu0 0.0
        %683 = vmatprep.subr.mxu0 0.0
        %684 = vmatpush2.msra.mxu0 0.0
        %685 = vmatprep.subr.mxu0 0.0
        %686 = vmatpush2.msra.mxu0 0.0
        %687 = vmatprep.subr.mxu0 0.0
        %688 = vmatpush2.msra.mxu0 0.0
        %689 = vmatprep.subr.mxu0 0.0
        %690 = vmatpush2.msra.mxu0 0.0
        %691 = vmatprep.subr.mxu0 0.0
        %692 = vmatpush2.msra.mxu0 0.0
        %693 = vmatprep.subr.mxu0 0.0
        %694 = vmatpush2.msra.mxu0 0.0
        %695 = vmatprep.subr.mxu0 0.0
        %696 = vmatpush2.msra.mxu0 0.0
        %697 = vmatprep.subr.mxu0 0.0
        %698 = vmatpush2.msra.mxu0 0.0
        %699 = vmatprep.subr.mxu0 0.0
        %700 = vmatpush2.msra.mxu0 0.0
        %701 = vmatprep.mubr.f32.mxu0 0.0
        %702 = vmatmul.mubr.f32.gmra.mxu0 %v620
        %v703 = vpop.f32.mrf.mxu0
        %v704 = vadd.f32 0.0, %v703
        %v705 = vpop.f32.mrf.mxu0
        %706 = vdwg.mxu0
        %v707 = vmul.f32 %v704, 0.001953125
        %v708 = vmul.f32 %v707, %v707
        %v710 = vrot.slane %v708, 7
        %v712 = vsub.f32 %v707, %v710
        %v713 = vmax.f32 %v712, 0.0
        %v714 = vld [vmem:[%s4] sm:$0x1]
        %v715 = vadd.f32 %v713, 1e-05
        %v716 = vrsqrt.pop %v715
        %v719 = vunpack.c.l.s4 1966171168
        %v720 = vunpack.c.0.s8 %v719
        %v721 = vlaneseq
        %v722 = vshrl.u32 %v721, 7
        %v723 = vsub.s32 %v720, %v722
        %v724 = vrot.slane %v716, %v723
        %v725 = vcombine.high %v724, %v724
        %v727 = vunpack.c.l.s4 1966171168
        %v728 = vunpack.c.0.s8 %v727
        %v729 = vlaneseq
        %v730 = vshrl.u32 %v729, 7
        %v731 = vsub.s32 %v728, %v730
        %v732 = vrot.slane %v725, %v731
        %v734 = vmul.f32 %v714, %v732
        %735 = vst [vmem:[#allocation3] sm:$0x1] %v734
        %v736 = vld [vmem:[%s5] sm:$0x1]
        %v737 = vmul.f32 %v707, %v734
        %v738 = vsub.f32 %v736, %v737
        %739 = vst [vmem:[#allocation4] sm:$0x1] %v738
      $region56: #{resblock_forward.4} parent=43 // pred_fallthru
        _
      // Predicated region
      $region57: #{resblock_forward.4} parent=43 // pred_check
        %p740 = pneg %p615
      $region58: #{resblock_forward.4} parent=43 // pred_check_branch
        %742 = sbr.rel (%p740) target = $region60
      $region59: #{resblock_forward.4} parent=43 // pred_region
        %v743 = vld [vmem:[%s262] sm:$0xff]
        %v744 = vld [vmem:[%s262 + $0x8] sm:$0xff]
        %v745 = vld [vmem:[%s262 + $0x10] sm:$0xff]
        %v746 = vld [vmem:[%s262 + $0x18] sm:$0xff]
        %v747 = vld [vmem:[%s262 + $0x20] sm:$0xf]
        %v748 = vld [vmem:[%s1] sm:$0xff]
        %v749 = vld [vmem:[%s1 + $0x8] sm:$0xff]
        %v750 = vld [vmem:[%s1 + $0x10] sm:$0xff]
        %v751 = vld [vmem:[%s1 + $0x18] sm:$0xff]
        %v752 = vld [vmem:[%s1 + $0x20] sm:$0xff]
        %v753 = vld [vmem:[%s1 + $0x28] sm:$0xff]
        %v754 = vld [vmem:[%s1 + $0x30] sm:$0xff]
        %v755 = vld [vmem:[%s1 + $0x38] sm:$0xff]
        %v756 = vld [vmem:[%s1 + $0x40] sm:$0xff]
        %v757 = vld [vmem:[%s1 + $0x48] sm:$0xff]
        %v758 = vld [vmem:[%s1 + $0x50] sm:$0xff]
        %v759 = vld [vmem:[%s1 + $0x58] sm:$0xff]
        %v760 = vld [vmem:[%s1 + $0x60] sm:$0xff]
        %v761 = vld [vmem:[%s1 + $0x68] sm:$0xff]
        %v762 = vld [vmem:[%s1 + $0x70] sm:$0xff]
        %v763 = vld [vmem:[%s1 + $0x78] sm:$0xff]
        %v764 = vld [vmem:[%s1 + $0x80] sm:$0xff]
        %v765 = vld [vmem:[%s1 + $0x88] sm:$0xff]
        %v766 = vld [vmem:[%s1 + $0x90] sm:$0xff]
        %v767 = vld [vmem:[%s1 + $0x98] sm:$0xff]
        %v768 = vld [vmem:[%s1 + $0xa0] sm:$0xff]
        %v769 = vld [vmem:[%s1 + $0xa8] sm:$0xff]
        %v770 = vld [vmem:[%s1 + $0xb0] sm:$0xff]
        %v771 = vld [vmem:[%s1 + $0xb8] sm:$0xff]
        %v772 = vld [vmem:[%s1 + $0xc0] sm:$0xff]
        %v773 = vld [vmem:[%s1 + $0xc8] sm:$0xff]
        %v774 = vld [vmem:[%s1 + $0xd0] sm:$0xff]
        %v775 = vld [vmem:[%s1 + $0xd8] sm:$0xff]
        %v776 = vld [vmem:[%s1 + $0xe0] sm:$0xff]
        %v777 = vld [vmem:[%s1 + $0xe8] sm:$0xff]
        %v778 = vld [vmem:[%s1 + $0xf0] sm:$0xff]
        %v779 = vld [vmem:[%s1 + $0xf8] sm:$0xff]
        %v780 = vld [vmem:[%s1 + $0x100] sm:$0xff]
        %v781 = vld [vmem:[%s1 + $0x108] sm:$0xff]
        %v782 = vld [vmem:[%s1 + $0x110] sm:$0xff]
        %v783 = vld [vmem:[%s1 + $0x118] sm:$0xff]
        %v784 = vld [vmem:[%s1 + $0x120] sm:$0xff]
        %v785 = vld [vmem:[%s1 + $0x128] sm:$0xff]
        %v786 = vld [vmem:[%s1 + $0x130] sm:$0xff]
        %v787 = vld [vmem:[%s1 + $0x138] sm:$0xff]
        %v788 = vld [vmem:[%s1 + $0x140] sm:$0xff]
        %v789 = vld [vmem:[%s1 + $0x148] sm:$0xff]
        %v790 = vld [vmem:[%s1 + $0x150] sm:$0xff]
        %v791 = vld [vmem:[%s1 + $0x158] sm:$0xff]
        %v792 = vld [vmem:[%s1 + $0x160] sm:$0xff]
        %v793 = vld [vmem:[%s1 + $0x168] sm:$0xff]
        %v794 = vld [vmem:[%s1 + $0x170] sm:$0xff]
        %v795 = vld [vmem:[%s1 + $0x178] sm:$0xff]
        %796 = vmatprep.subr.mxu0 %v794
        %797 = vmatpush1.msra.mxu0 %v793
        %798 = vmatprep.subr.mxu0 %v791
        %799 = vmatpush1.msra.mxu0 %v790
        %800 = vmatprep.subr.mxu0 %v788
        %801 = vmatpush1.msra.mxu0 %v787
        %802 = vmatprep.subr.mxu0 %v785
        %803 = vmatpush1.msra.mxu0 %v784
        %804 = vmatprep.subr.mxu0 %v782
        %805 = vmatpush1.msra.mxu0 %v781
        %806 = vmatprep.subr.mxu0 %v779
        %807 = vmatpush1.msra.mxu0 %v778
        %808 = vmatprep.subr.mxu0 %v776
        %809 = vmatpush1.msra.mxu0 %v775
        %810 = vmatprep.subr.mxu0 %v773
        %811 = vmatpush1.msra.mxu0 %v772
        %812 = vmatprep.subr.mxu0 %v770
        %813 = vmatpush1.msra.mxu0 %v769
        %814 = vmatprep.subr.mxu0 %v767
        %815 = vmatpush1.msra.mxu0 %v766
        %816 = vmatprep.subr.mxu0 %v764
        %817 = vmatpush1.msra.mxu0 %v763
        %818 = vmatprep.subr.mxu0 %v761
        %819 = vmatpush1.msra.mxu0 %v760
        %820 = vmatprep.subr.mxu0 %v758
        %821 = vmatpush1.msra.mxu0 %v757
        %822 = vmatprep.subr.mxu0 %v755
        %823 = vmatpush1.msra.mxu0 %v754
        %824 = vmatprep.subr.mxu0 %v752
        %825 = vmatpush1.msra.mxu0 %v751
        %826 = vmatprep.subr.mxu0 %v749
        %827 = vmatpush1.msra.mxu0 %v748
        %828 = vmatprep.subr.mxu0 0.0
        %829 = vmatpush2.msra.mxu0 0.0
        %830 = vmatprep.subr.mxu0 0.0
        %831 = vmatpush2.msra.mxu0 0.0
        %832 = vmatprep.subr.mxu0 0.0
        %833 = vmatpush2.msra.mxu0 0.0
        %834 = vmatprep.subr.mxu0 0.0
        %835 = vmatpush2.msra.mxu0 0.0
        %836 = vmatprep.subr.mxu0 0.0
        %837 = vmatpush2.msra.mxu0 0.0
        %838 = vmatprep.subr.mxu0 0.0
        %839 = vmatpush2.msra.mxu0 0.0
        %840 = vmatprep.subr.mxu0 0.0
        %841 = vmatpush2.msra.mxu0 0.0
        %842 = vmatprep.subr.mxu0 0.0
        %843 = vmatpush2.msra.mxu0 0.0
        %844 = vmatprep.subr.mxu0 0.0
        %845 = vmatpush2.msra.mxu0 0.0
        %846 = vmatprep.subr.mxu0 0.0
        %847 = vmatpush2.msra.mxu0 0.0
        %848 = vmatprep.subr.mxu0 0.0
        %849 = vmatpush2.msra.mxu0 0.0
        %850 = vmatprep.subr.mxu0 0.0
        %851 = vmatpush2.msra.mxu0 0.0
        %852 = vmatprep.subr.mxu0 0.0
        %853 = vmatpush2.msra.mxu0 0.0
        %854 = vmatprep.subr.mxu0 0.0
        %855 = vmatpush2.msra.mxu0 0.0
        %856 = vmatprep.subr.mxu0 0.0
        %857 = vmatpush2.msra.mxu0 0.0
        %858 = vmatprep.subr.mxu0 0.0
        %859 = vmatpush2.msra.mxu0 0.0
        %860 = vmatprep.mubr.f32.mxu0 0.0
        %861 = vmatmul.mubr.f32.gmra.mxu0 %v743
        %v862 = vpop.f32.mrf.mxu0
        %v863 = vadd.f32 0.0, %v862
        %v864 = vpop.f32.mrf.mxu0
        %v865 = vadd.f32 0.0, %v864
        %866 = vmatprep.mubr.f32.mxu0 0.0
        %867 = vmatmul.mubr.f32.gmra.mxu0 %v744
        %v868 = vpop.f32.mrf.mxu0
        %v869 = vadd.f32 0.0, %v868
        %v870 = vpop.f32.mrf.mxu0
        %v871 = vadd.f32 0.0, %v870
        %872 = vmatprep.mubr.f32.mxu0 0.0
        %873 = vmatmul.mubr.f32.gmra.mxu0 %v745
        %v874 = vpop.f32.mrf.mxu0
        %v875 = vadd.f32 0.0, %v874
        %v876 = vpop.f32.mrf.mxu0
        %v877 = vadd.f32 0.0, %v876
        %878 = vmatprep.mubr.f32.mxu0 0.0
        %879 = vmatmul.mubr.f32.gmra.mxu0 %v746
        %v880 = vpop.f32.mrf.mxu0
        %v881 = vadd.f32 0.0, %v880
        %v882 = vpop.f32.mrf.mxu0
        %v883 = vadd.f32 0.0, %v882
        %884 = vmatprep.mubr.f32.mxu0 0.0
        %885 = vmatmul.mubr.f32.gmra.mxu0 %v747
        %v886 = vpop.f32.mrf.mxu0
        %v887 = vadd.f32 0.0, %v886
        %v888 = vpop.f32.mrf.mxu0
        %v889 = vadd.f32 0.0, %v888
        %890 = vdwg.mxu0
        %891 = vmatprep.subr.mxu0 0.0
        %892 = vmatpush1.msra.mxu0 %v795
        %893 = vmatprep.subr.mxu0 0.0
        %894 = vmatpush1.msra.mxu0 %v792
        %895 = vmatprep.subr.mxu0 0.0
        %896 = vmatpush1.msra.mxu0 %v789
        %897 = vmatprep.subr.mxu0 0.0
        %898 = vmatpush1.msra.mxu0 %v786
        %899 = vmatprep.subr.mxu0 0.0
        %900 = vmatpush1.msra.mxu0 %v783
        %901 = vmatprep.subr.mxu0 0.0
        %902 = vmatpush1.msra.mxu0 %v780
        %903 = vmatprep.subr.mxu0 0.0
        %904 = vmatpush1.msra.mxu0 %v777
        %905 = vmatprep.subr.mxu0 0.0
        %906 = vmatpush1.msra.mxu0 %v774
        %907 = vmatprep.subr.mxu0 0.0
        %908 = vmatpush1.msra.mxu0 %v771
        %909 = vmatprep.subr.mxu0 0.0
        %910 = vmatpush1.msra.mxu0 %v768
        %911 = vmatprep.subr.mxu0 0.0
        %912 = vmatpush1.msra.mxu0 %v765
        %913 = vmatprep.subr.mxu0 0.0
        %914 = vmatpush1.msra.mxu0 %v762
        %915 = vmatprep.subr.mxu0 0.0
        %916 = vmatpush1.msra.mxu0 %v759
        %917 = vmatprep.subr.mxu0 0.0
        %918 = vmatpush1.msra.mxu0 %v756
        %919 = vmatprep.subr.mxu0 0.0
        %920 = vmatpush1.msra.mxu0 %v753
        %921 = vmatprep.subr.mxu0 0.0
        %922 = vmatpush1.msra.mxu0 %v750
        %923 = vmatprep.subr.mxu0 0.0
        %924 = vmatpush2.msra.mxu0 0.0
        %925 = vmatprep.subr.mxu0 0.0
        %926 = vmatpush2.msra.mxu0 0.0
        %927 = vmatprep.subr.mxu0 0.0
        %928 = vmatpush2.msra.mxu0 0.0
        %929 = vmatprep.subr.mxu0 0.0
        %930 = vmatpush2.msra.mxu0 0.0
        %931 = vmatprep.subr.mxu0 0.0
        %932 = vmatpush2.msra.mxu0 0.0
        %933 = vmatprep.subr.mxu0 0.0
        %934 = vmatpush2.msra.mxu0 0.0
        %935 = vmatprep.subr.mxu0 0.0
        %936 = vmatpush2.msra.mxu0 0.0
        %937 = vmatprep.subr.mxu0 0.0
        %938 = vmatpush2.msra.mxu0 0.0
        %939 = vmatprep.subr.mxu0 0.0
        %940 = vmatpush2.msra.mxu0 0.0
        %941 = vmatprep.subr.mxu0 0.0
        %942 = vmatpush2.msra.mxu0 0.0
        %943 = vmatprep.subr.mxu0 0.0
        %944 = vmatpush2.msra.mxu0 0.0
        %945 = vmatprep.subr.mxu0 0.0
        %946 = vmatpush2.msra.mxu0 0.0
        %947 = vmatprep.subr.mxu0 0.0
        %948 = vmatpush2.msra.mxu0 0.0
        %949 = vmatprep.subr.mxu0 0.0
        %950 = vmatpush2.msra.mxu0 0.0
        %951 = vmatprep.subr.mxu0 0.0
        %952 = vmatpush2.msra.mxu0 0.0
        %953 = vmatprep.subr.mxu0 0.0
        %954 = vmatpush2.msra.mxu0 0.0
        %955 = vmatprep.mubr.f32.mxu0 0.0
        %956 = vmatmul.mubr.f32.gmra.mxu0 %v743
        %v957 = vpop.f32.mrf.mxu0
        %v958 = vadd.f32 0.0, %v957
        %v959 = vpop.f32.mrf.mxu0
        %960 = vmatprep.mubr.f32.mxu0 0.0
        %961 = vmatmul.mubr.f32.gmra.mxu0 %v744
        %v962 = vpop.f32.mrf.mxu0
        %v963 = vadd.f32 0.0, %v962
        %v964 = vpop.f32.mrf.mxu0
        %965 = vmatprep.mubr.f32.mxu0 0.0
        %966 = vmatmul.mubr.f32.gmra.mxu0 %v745
        %v967 = vpop.f32.mrf.mxu0
        %v968 = vadd.f32 0.0, %v967
        %v969 = vpop.f32.mrf.mxu0
        %970 = vmatprep.mubr.f32.mxu0 0.0
        %971 = vmatmul.mubr.f32.gmra.mxu0 %v746
        %v972 = vpop.f32.mrf.mxu0
        %v973 = vadd.f32 0.0, %v972
        %v974 = vpop.f32.mrf.mxu0
        %975 = vmatprep.mubr.f32.mxu0 0.0
        %976 = vmatmul.mubr.f32.gmra.mxu0 %v747
        %v977 = vpop.f32.mrf.mxu0
        %v978 = vadd.f32 0.0, %v977
        %v979 = vpop.f32.mrf.mxu0
        %980 = vdwg.mxu0
        %vm986 = vcmask 1040384
        %v987 = vrot.slane %v863, 7
        %v988 = vrot.slane %v869, 7
        %v989 = vsel %vm986, %v987, %v988
        %v990 = vrot.slane %v875, 7
        %v991 = vsel %vm986, %v988, %v990
        %v992 = vrot.slane %v881, 7
        %v993 = vsel %vm986, %v990, %v992
        %v994 = vrot.slane %v887, 7
        %v995 = vsel %vm986, %v992, %v994
        %v1001 = vsel %vm986, 0.0, %v987
        %vm1007 = vcmask 1046528
        %v1008 = vrot.slane %v958, 1
        %v1009 = vrot.slane %v963, 1
        %v1010 = vsel %vm1007, %v1008, %v1009
        %v1011 = vrot.slane %v968, 1
        %v1012 = vsel %vm1007, %v1009, %v1011
        %v1013 = vrot.slane %v973, 1
        %v1014 = vsel %vm1007, %v1011, %v1013
        %v1015 = vrot.slane %v978, 1
        %v1016 = vsel %vm1007, %v1013, %v1015
        %vm1022 = vcmask 1042432
        %v1023 = vsel %vm1022, %v1015, 0.0
        %v1024 = vadd.f32 %v1001, %v865
        %v1025 = vadd.f32 %v989, %v871
        %v1026 = vadd.f32 %v991, %v877
        %v1027 = vadd.f32 %v993, %v883
        %v1028 = vadd.f32 %v995, %v889
        %v1029 = vadd.f32 %v1024, %v1010
        %v1030 = vadd.f32 %v1025, %v1012
        %v1031 = vadd.f32 %v1026, %v1014
        %v1032 = vadd.f32 %v1027, %v1016
        %v1033 = vadd.f32 %v1028, %v1023
        %v1034 = vld [vmem:[#allocation3] sm:$0x1]
        %v1036 = vlaneseq
        %v1037 = vshrl.u32 %v1036, 7
        %v1038 = vsub.s32 0, %v1037
        %v1039 = vrot.slane %v1034, %v1038
        %v1041 = vmul.f32 %v1029, %v1039
        %v1042 = vmul.f32 %v1030, %v1039
        %v1043 = vmul.f32 %v1031, %v1039
        %v1044 = vmul.f32 %v1032, %v1039
        %v1045 = vmul.f32 %v1033, %v1039
        %v1046 = vld [vmem:[#allocation4] sm:$0x1]
        %v1048 = vlaneseq
        %v1049 = vshrl.u32 %v1048, 7
        %v1050 = vsub.s32 0, %v1049
        %v1051 = vrot.slane %v1046, %v1050
        %v1053 = vadd.f32 %v1041, %v1051
        %v1054 = vadd.f32 %v1042, %v1051
        %v1055 = vadd.f32 %v1043, %v1051
        %v1056 = vadd.f32 %v1044, %v1051
        %v1057 = vadd.f32 %v1045, %v1051
        %v1058 = vmax.f32 %v1053, 0.0
        %v1059 = vmax.f32 %v1054, 0.0
        %v1060 = vmax.f32 %v1055, 0.0
        %v1061 = vmax.f32 %v1056, 0.0
        %v1062 = vmax.f32 %v1057, 0.0
        %v1063 = vld [vmem:[%s3] sm:$0xff]
        %v1064 = vld [vmem:[%s3 + $0x8] sm:$0xff]
        %v1065 = vld [vmem:[%s3 + $0x10] sm:$0xff]
        %v1066 = vld [vmem:[%s3 + $0x18] sm:$0xff]
        %v1067 = vld [vmem:[%s3 + $0x20] sm:$0xf]
        %v1068 = vmul.f32 %v1058, %v1063
        %v1069 = vmul.f32 %v1059, %v1064
        %v1070 = vmul.f32 %v1060, %v1065
        %v1071 = vmul.f32 %v1061, %v1066
        %v1072 = vmul.f32 %v1062, %v1067
        %1073 = vst [vmem:[%s269] sm:$0xff] %v1068
        %1074 = vst [vmem:[%s269 + $0x8] sm:$0xff] %v1069
        %1075 = vst [vmem:[%s269 + $0x10] sm:$0xff] %v1070
        %1076 = vst [vmem:[%s269 + $0x18] sm:$0xff] %v1071
        %1077 = vst [vmem:[%s269 + $0x20] sm:$0xf] %v1072
      $region60: #{resblock_forward.4} parent=43 // pred_fallthru
        _
      %s1078 = smul.u32 %s22, %s21
      %s1079 = smul.u32 5, %s1078
      %p1080 = scmp.lt.s32.totalorder %s1079, 4
      %s1081 = scalar_select %p1080, %s1079, 4
      %s1082 = smul.addr %s1081, 8
      %s1083 = scalar_lea.vmem %s6, %s1082
      // Predicated region
      $region61: #{resblock_forward.4} parent=43 // pred_check
        %p1084 = pneg %p180
      $region62: #{resblock_forward.4} parent=43 // pred_check_branch
        %1086 = sbr.rel (%p1084) target = $region64
      $region63: #{resblock_forward.4} parent=43 // pred_region
        %s1087 = smul.u32 %s22, %s21
        %s1088 = smul.u32 5, %s1087
      $region64: #{resblock_forward.4} parent=43 // pred_fallthru
        _
    $region44: #{resblock_forward.4} parent=5 // pred_fallthru
      _
    %p1089 = scmp.le.s32.totalorder 2, %s12
    // Predicated region
    $region65: #{resblock_forward.4} parent=5 // pred_check
      %p1090 = pneg %p1089
    $region66: #{resblock_forward.4} parent=5 // pred_check_branch
      %1092 = sbr.rel (%p1090) target = $region68
    $region67: #{resblock_forward.4} parent=5 // pred_region
      %s1093 = ssub.s32 %s12, 2
      // Predicated region
      $region69: #{resblock_forward.4} parent=67 // pred_check
        %p1094 = pneg %p186
      $region70: #{resblock_forward.4} parent=67 // pred_check_branch
        %1096 = sbr.rel (%p1094) target = $region72
      $region71: #{resblock_forward.4} parent=67 // pred_region
        %s1097 = smul.u32 %s24, %s23
        %s1098 = smul.u32 5, %s1097
        %p1099 = scmp.lt.s32.totalorder %s1098, 4
        %s1100 = scalar_select %p1099, %s1098, 4
        %s1101 = smul.addr %s1100, 8
        %s1102 = scalar_lea.vmem %s6, %s1101
      $region72: #{resblock_forward.4} parent=67 // pred_fallthru
        _
    $region68: #{resblock_forward.4} parent=5 // pred_fallthru
      _
  $region6: #{resblock_forward.4} parent=0 // loop_footer
    %s16 = sadd.s32 1, %s12
  $region7: #{resblock_forward.4} parent=0 // loop_footer_branch
    %11 = sbr.rel target = $region3
  $region8: #{resblock_forward.4} parent=0 // loop_exit
    _

// kernel: resblock_forward.5
$region0: #{resblock_forward.5}
  #allocation0 [shape = 'u32[]', space=smem, size = 0x4, offset = 0x4, fixed_abs, tag = 'smem constant byte address 0x4 - core index']
  #allocation1 [shape = 'u32[144,128]{1,0:T(1,128)}', space=vmem, size = 0x12000, scoped, tag = 'internal scratch']
  #allocation2 [shape = 'f32[2,128]{1,0:T(2,128)}', space=vmem, size = 0x400, scoped, tag = 'scratch operand']
  #allocation3 [shape = 'f32[1,128]{1,0:T(1,128)}', space=vmem, size = 0x200, scoped, tag = 'scratch operand']
  #allocation4 [shape = 'f32[1,128]{1,0:T(1,128)}', space=vmem, size = 0x200, scoped, tag = 'scratch operand']
  %s0 = inlined_call_operand.vmem [shape: f32[36,128], index: 0, kind: input, shape index: {}]
  %s1 = inlined_call_operand.vmem [shape: f32[128,384], index: 1, kind: input, shape index: {}]
  %s2 = inlined_call_operand.vmem [shape: f32[128,128], index: 2, kind: input, shape index: {}]
  %s3 = inlined_call_operand.vmem [shape: f32[36,128], index: 3, kind: input, shape index: {}]
  %s4 = inlined_call_operand.vmem [shape: f32[1,128], index: 4, kind: input, shape index: {}]
  %s5 = inlined_call_operand.vmem [shape: f32[1,128], index: 5, kind: input, shape index: {}]
  %s6 = inlined_call_operand.vmem [shape: f32[36,128], index: 6, kind: input, shape index: {}]
  %s7 = inlined_call_operand.vmem [shape: f32[36,128], index: 7, kind: output, shape index: {}]
  %s8 = sld [smem:[#allocation0]]
  $region77: #{resblock_forward.5} parent=0
    _
  %s10 = ssub.s32 1, %s8
  %s11 = scalar_select 0, %s10, %s8
  loop: start=0, step=1, limit=4
  $region2: #{resblock_forward.5} parent=0 // loop_pre_header
    _
  $region3: #{resblock_forward.5} parent=0 // loop_header
    %s13 = sphi 0, %s17
    %p14 = scmp.ge.s32.totalorder %s13, 4
    %s20 = sphi 0, %s32
    %s21 = sphi 0, %s28
    %s22 = sphi 0, %s20
    %s23 = sphi 0, %s21
    %s24 = sphi 0, %s22
    %s25 = sphi 0, %s23
    %s35 = sphi 0, %s37
    %s38 = sphi 0, %s35
    %s39 = sphi 0, %s38
    %s55 = sphi 0, %s39
    %s59 = sphi 0, %s59
    %s61 = sphi 0, %s59
    %s62 = sphi 0, %s61
    %s76 = sphi 0, %s62
    %s80 = sphi 0, %s80
    %s82 = sphi 0, %s80
    %s83 = sphi 0, %s82
    %s97 = sphi 0, %s83
    %s101 = sphi 0, %s101
    %s103 = sphi 0, %s101
    %s104 = sphi 0, %s103
    %s118 = sphi 0, %s104
    %s122 = sphi 0, %s122
    %s124 = sphi 0, %s122
    %s125 = sphi 0, %s124
    %s139 = sphi 0, %s125
    %s143 = sphi 0, %s143
    %s145 = sphi 0, %s143
    %s146 = sphi 0, %s145
    %s160 = sphi 0, %s146
    %s168 = sphi 0, %s170
    %s171 = sphi 0, %s168
    %s172 = sphi 0, %s171
    %s188 = sphi 0, %s172
    %s196 = sphi 0, %s198
    %s199 = sphi 0, %s196
    %s200 = sphi 0, %s199
    %s216 = sphi 0, %s200
  $region4: #{resblock_forward.5} parent=0 // loop_header_branch
    %16 = sbr.rel (%p14) target = $region8
  $region5: #{resblock_forward.5} parent=0 // loop_body
    %s18 = ssub.s32 %s13, 1
    %s19 = ssub.s32 %s13, 2
    %s26 = sadd.s32 1, %s21
    %p27 = scmp.ge.s32.totalorder %s26, 1
    %s28 = scalar_select %p27, 0, %s26
    %s29 = sadd.s32 1, %s20
    %s30 = scalar_select %p27, %s29, %s20
    %p31 = scmp.ge.s32.totalorder %s30, 2
    %s32 = scalar_select %p31, 0, %s30
    %s33 = ssub.s32 %s21, %s28
    %p34 = scmp.eq.s32.totalorder %s33, 0
    %s36 = sadd.s32 %s35, 1
    %s37 = scalar_select %p34, %s35, %s36
    %p40 = pneg %p34
    %p41 = scmp.eq.s32.totalorder %s13, 1
    %p42 = por %p40, %p41
    %p43 = scmp.ne.s32.totalorder %s35, %s38
    %p44 = scmp.eq.s32.totalorder %s13, 0
    %p45 = por %p43, %p44
    %p46 = scmp.ne.s32.totalorder %s35, %s38
    %p47 = scmp.eq.s32.totalorder %s18, 1
    %p48 = por %p46, %p47
    %p49 = scmp.ne.s32.totalorder %s38, %s39
    %p50 = scmp.eq.s32.totalorder %s18, 0
    %p51 = por %p49, %p50
    %p52 = scmp.ne.s32.totalorder %s38, %s39
    %p53 = scmp.eq.s32.totalorder %s19, 1
    %p54 = por %p52, %p53
    %p56 = scmp.ne.s32.totalorder %s39, %s55
    %p57 = scmp.eq.s32.totalorder %s19, 0
    %p58 = por %p56, %p57
    %s60 = sadd.s32 %s59, 1
    %p63 = scmp.eq.s32.totalorder %s13, 1
    %p64 = scmp.ne.s32.totalorder %s59, %s61
    %p65 = scmp.eq.s32.totalorder %s13, 0
    %p66 = por %p64, %p65
    %p67 = scmp.ne.s32.totalorder %s59, %s61
    %p68 = scmp.eq.s32.totalorder %s18, 1
    %p69 = por %p67, %p68
    %p70 = scmp.ne.s32.totalorder %s61, %s62
    %p71 = scmp.eq.s32.totalorder %s18, 0
    %p72 = por %p70, %p71
    %p73 = scmp.ne.s32.totalorder %s61, %s62
    %p74 = scmp.eq.s32.totalorder %s19, 1
    %p75 = por %p73, %p74
    %p77 = scmp.ne.s32.totalorder %s62, %s76
    %p78 = scmp.eq.s32.totalorder %s19, 0
    %p79 = por %p77, %p78
    %s81 = sadd.s32 %s80, 1
    %p84 = scmp.eq.s32.totalorder %s13, 1
    %p85 = scmp.ne.s32.totalorder %s80, %s82
    %p86 = scmp.eq.s32.totalorder %s13, 0
    %p87 = por %p85, %p86
    %p88 = scmp.ne.s32.totalorder %s80, %s82
    %p89 = scmp.eq.s32.totalorder %s18, 1
    %p90 = por %p88, %p89
    %p91 = scmp.ne.s32.totalorder %s82, %s83
    %p92 = scmp.eq.s32.totalorder %s18, 0
    %p93 = por %p91, %p92
    %p94 = scmp.ne.s32.totalorder %s82, %s83
    %p95 = scmp.eq.s32.totalorder %s19, 1
    %p96 = por %p94, %p95
    %p98 = scmp.ne.s32.totalorder %s83, %s97
    %p99 = scmp.eq.s32.totalorder %s19, 0
    %p100 = por %p98, %p99
    %s102 = sadd.s32 %s101, 1
    %p105 = scmp.eq.s32.totalorder %s13, 1
    %p106 = scmp.ne.s32.totalorder %s101, %s103
    %p107 = scmp.eq.s32.totalorder %s13, 0
    %p108 = por %p106, %p107
    %p109 = scmp.ne.s32.totalorder %s101, %s103
    %p110 = scmp.eq.s32.totalorder %s18, 1
    %p111 = por %p109, %p110
    %p112 = scmp.ne.s32.totalorder %s103, %s104
    %p113 = scmp.eq.s32.totalorder %s18, 0
    %p114 = por %p112, %p113
    %p115 = scmp.ne.s32.totalorder %s103, %s104
    %p116 = scmp.eq.s32.totalorder %s19, 1
    %p117 = por %p115, %p116
    %p119 = scmp.ne.s32.totalorder %s104, %s118
    %p120 = scmp.eq.s32.totalorder %s19, 0
    %p121 = por %p119, %p120
    %s123 = sadd.s32 %s122, 1
    %p126 = scmp.eq.s32.totalorder %s13, 1
    %p127 = scmp.ne.s32.totalorder %s122, %s124
    %p128 = scmp.eq.s32.totalorder %s13, 0
    %p129 = por %p127, %p128
    %p130 = scmp.ne.s32.totalorder %s122, %s124
    %p131 = scmp.eq.s32.totalorder %s18, 1
    %p132 = por %p130, %p131
    %p133 = scmp.ne.s32.totalorder %s124, %s125
    %p134 = scmp.eq.s32.totalorder %s18, 0
    %p135 = por %p133, %p134
    %p136 = scmp.ne.s32.totalorder %s124, %s125
    %p137 = scmp.eq.s32.totalorder %s19, 1
    %p138 = por %p136, %p137
    %p140 = scmp.ne.s32.totalorder %s125, %s139
    %p141 = scmp.eq.s32.totalorder %s19, 0
    %p142 = por %p140, %p141
    %s144 = sadd.s32 %s143, 1
    %p147 = scmp.eq.s32.totalorder %s13, 1
    %p148 = scmp.ne.s32.totalorder %s143, %s145
    %p149 = scmp.eq.s32.totalorder %s13, 0
    %p150 = por %p148, %p149
    %p151 = scmp.ne.s32.totalorder %s143, %s145
    %p152 = scmp.eq.s32.totalorder %s18, 1
    %p153 = por %p151, %p152
    %p154 = scmp.ne.s32.totalorder %s145, %s146
    %p155 = scmp.eq.s32.totalorder %s18, 0
    %p156 = por %p154, %p155
    %p157 = scmp.ne.s32.totalorder %s145, %s146
    %p158 = scmp.eq.s32.totalorder %s19, 1
    %p159 = por %p157, %p158
    %p161 = scmp.ne.s32.totalorder %s146, %s160
    %p162 = scmp.eq.s32.totalorder %s19, 0
    %p163 = por %p161, %p162
    %s164 = smul.u32 %s21, %s20
    %s165 = smul.u32 %s28, %s32
    %s166 = ssub.s32 %s164, %s165
    %p167 = scmp.eq.s32.totalorder %s166, 0
    %s169 = sadd.s32 %s168, 1
    %s170 = scalar_select %p167, %s168, %s169
    %p173 = pneg %p167
    %p174 = scmp.eq.s32.totalorder %s13, 1
    %p175 = por %p173, %p174
    %p176 = scmp.ne.s32.totalorder %s168, %s171
    %p177 = scmp.eq.s32.totalorder %s13, 0
    %p178 = por %p176, %p177
    %p179 = scmp.ne.s32.totalorder %s168, %s171
    %p180 = scmp.eq.s32.totalorder %s18, 1
    %p181 = por %p179, %p180
    %p182 = scmp.ne.s32.totalorder %s171, %s172
    %p183 = scmp.eq.s32.totalorder %s18, 0
    %p184 = por %p182, %p183
    %p185 = scmp.ne.s32.totalorder %s171, %s172
    %p186 = scmp.eq.s32.totalorder %s19, 1
    %p187 = por %p185, %p186
    %p189 = scmp.ne.s32.totalorder %s172, %s188
    %p190 = scmp.eq.s32.totalorder %s19, 0
    %p191 = por %p189, %p190
    %s192 = smul.u32 %s21, %s20
    %s193 = smul.u32 %s28, %s32
    %s194 = ssub.s32 %s192, %s193
    %p195 = scmp.eq.s32.totalorder %s194, 0
    %s197 = sadd.s32 %s196, 1
    %s198 = scalar_select %p195, %s196, %s197
    %p201 = pneg %p195
    %p202 = scmp.eq.s32.totalorder %s13, 1
    %p203 = por %p201, %p202
    %p204 = scmp.ne.s32.totalorder %s196, %s199
    %p205 = scmp.eq.s32.totalorder %s13, 0
    %p206 = por %p204, %p205
    %p207 = scmp.ne.s32.totalorder %s196, %s199
    %p208 = scmp.eq.s32.totalorder %s18, 1
    %p209 = por %p207, %p208
    %p210 = scmp.ne.s32.totalorder %s199, %s200
    %p211 = scmp.eq.s32.totalorder %s18, 0
    %p212 = por %p210, %p211
    %p213 = scmp.ne.s32.totalorder %s199, %s200
    %p214 = scmp.eq.s32.totalorder %s19, 1
    %p215 = por %p213, %p214
    %p217 = scmp.ne.s32.totalorder %s200, %s216
    %p218 = scmp.eq.s32.totalorder %s19, 0
    %p219 = por %p217, %p218
    %p220 = scmp.le.s32.totalorder 1, %s13
    %p221 = scmp.lt.s32.totalorder %s13, 3
    %p222 = pnand %p220, %p221
    %p223 = pneg %p222
    // Predicated region
    $region9: #{resblock_forward.5} parent=5 // pred_check
      _
    $region10: #{resblock_forward.5} parent=5 // pred_check_branch
      %225 = sbr.rel (%p222) target = $region12
    $region11: #{resblock_forward.5} parent=5 // pred_region
      %s226 = ssub.s32 %s13, 1
      // Predicated region
      $region13: #{resblock_forward.5} parent=11 // pred_check
        %p227 = pneg %p51
      $region14: #{resblock_forward.5} parent=11 // pred_check_branch
        %229 = sbr.rel (%p227) target = $region16
      $region15: #{resblock_forward.5} parent=11 // pred_region
        %s230 = smul.u32 5, %s23
        %p231 = scmp.lt.s32.totalorder %s230, 4
        %s232 = scalar_select %p231, %s230, 4
        %s233 = smul.addr %s232, 8
        %s234 = scalar_lea.vmem %s0, %s233
        %s235 = smul.u32 5, %s23
      $region16: #{resblock_forward.5} parent=11 // pred_fallthru
        _
      // Predicated region
      $region17: #{resblock_forward.5} parent=11 // pred_check
        %p236 = pneg %p72
      $region18: #{resblock_forward.5} parent=11 // pred_check_branch
        %238 = sbr.rel (%p236) target = $region20
      $region19: #{resblock_forward.5} parent=11 // pred_region
        _
      $region20: #{resblock_forward.5} parent=11 // pred_fallthru
        _
      // Predicated region
      $region21: #{resblock_forward.5} parent=11 // pred_check
        %p239 = pneg %p93
      $region22: #{resblock_forward.5} parent=11 // pred_check_branch
        %241 = sbr.rel (%p239) target = $region24
      $region23: #{resblock_forward.5} parent=11 // pred_region
        _
      $region24: #{resblock_forward.5} parent=11 // pred_fallthru
        _
      // Predicated region
      $region25: #{resblock_forward.5} parent=11 // pred_check
        %p242 = pneg %p114
      $region26: #{resblock_forward.5} parent=11 // pred_check_branch
        %244 = sbr.rel (%p242) target = $region28
      $region27: #{resblock_forward.5} parent=11 // pred_region
        _
      $region28: #{resblock_forward.5} parent=11 // pred_fallthru
        _
      // Predicated region
      $region29: #{resblock_forward.5} parent=11 // pred_check
        %p245 = pneg %p135
      $region30: #{resblock_forward.5} parent=11 // pred_check_branch
        %247 = sbr.rel (%p245) target = $region32
      $region31: #{resblock_forward.5} parent=11 // pred_region
        _
      $region32: #{resblock_forward.5} parent=11 // pred_fallthru
        _
      // Predicated region
      $region33: #{resblock_forward.5} parent=11 // pred_check
        %p248 = pneg %p156
      $region34: #{resblock_forward.5} parent=11 // pred_check_branch
        %250 = sbr.rel (%p248) target = $region36
      $region35: #{resblock_forward.5} parent=11 // pred_region
        _
      $region36: #{resblock_forward.5} parent=11 // pred_fallthru
        _
    $region12: #{resblock_forward.5} parent=5 // pred_fallthru
      _
    %p251 = scmp.lt.s32.totalorder %s13, 2
    // Predicated region
    $region37: #{resblock_forward.5} parent=5 // pred_check
      %p252 = pneg %p251
    $region38: #{resblock_forward.5} parent=5 // pred_check_branch
      %254 = sbr.rel (%p252) target = $region40
    $region39: #{resblock_forward.5} parent=5 // pred_region
      // Predicated region
      $region41: #{resblock_forward.5} parent=39 // pred_check
        %p255 = pneg %p178
      $region42: #{resblock_forward.5} parent=39 // pred_check_branch
        %257 = sbr.rel (%p255) target = $region44
      $region43: #{resblock_forward.5} parent=39 // pred_region
        %s258 = smul.u32 %s21, %s20
        %s259 = smul.u32 5, %s258
        %p260 = scmp.lt.s32.totalorder %s259, 4
        %s261 = scalar_select %p260, %s259, 4
        %s262 = smul.addr %s261, 8
        %s263 = scalar_lea.vmem %s6, %s262
        %s264 = smul.u32 %s21, %s20
        %s265 = smul.u32 5, %s264
      $region44: #{resblock_forward.5} parent=39 // pred_fallthru
        _
    $region40: #{resblock_forward.5} parent=5 // pred_fallthru
      _
    %p266 = scmp.le.s32.totalorder 1, %s13
    %p267 = scmp.lt.s32.totalorder %s13, 3
    %p268 = pnand %p266, %p267
    %p269 = pneg %p268
    // Predicated region
    $region45: #{resblock_forward.5} parent=5 // pred_check
      _
    $region46: #{resblock_forward.5} parent=5 // pred_check_branch
      %271 = sbr.rel (%p268) target = $region48
    $region47: #{resblock_forward.5} parent=5 // pred_region
      %s272 = ssub.s32 %s13, 1
      %s273 = smul.u32 5, %s23
      %p274 = scmp.lt.s32.totalorder %s273, 4
      %s275 = scalar_select %p274, %s273, 4
      %s276 = smul.addr %s275, 8
      %s277 = scalar_lea.vmem %s0, %s276
      %p278 = pneg %p51
      %p279 = pneg %p48
      %p280 = pneg %p72
      %p281 = pneg %p69
      %p282 = pneg %p93
      %p283 = pneg %p90
      %p284 = pneg %p114
      %p285 = pneg %p111
      %p286 = pneg %p135
      %p287 = pneg %p132
      %p288 = pneg %p156
      %p289 = pneg %p153
      %s290 = smul.u32 %s23, %s22
      %s291 = smul.u32 5, %s290
      %p292 = scmp.lt.s32.totalorder %s291, 4
      %s293 = scalar_select %p292, %s291, 4
      %s294 = smul.addr %s293, 8
      %s295 = scalar_lea.vmem %s6, %s294
      %p296 = pneg %p184
      %p297 = pneg %p181
      %p298 = pneg %p212
      %p299 = pneg %p209
      %s300 = smul.u32 %s23, %s22
      %s301 = smul.u32 5, %s300
      %p302 = scmp.lt.s32.totalorder %s301, 4
      %s303 = scalar_select %p302, %s301, 4
      %s304 = smul.addr %s303, 8
      %s305 = scalar_lea.vmem %s7, %s304
      %s306 = smul.u32 5, %s23
      %p307 = scmp.lt.s32.totalorder %s306, 4
      %s308 = scalar_select %p307, %s306, 4
      %s309 = smul.addr %s308, 8
      %s310 = scalar_lea.vmem %s0, %s309
      %s311 = smul.u32 5, %s23
      %s312 = smul.u32 %s23, %s22
      %s313 = smul.u32 5, %s312
      %p314 = scmp.lt.s32.totalorder %s313, 4
      %s315 = scalar_select %p314, %s313, 4
      %s316 = smul.addr %s315, 8
      %s317 = scalar_lea.vmem %s6, %s316
      %s318 = smul.u32 %s23, %s22
      %s319 = smul.u32 5, %s318
      %s320 = smul.u32 %s23, %s22
      %s321 = smul.u32 5, %s320
      %p322 = scmp.lt.s32.totalorder %s321, 4
      %s323 = scalar_select %p322, %s321, 4
      %s324 = smul.addr %s323, 8
      %s325 = scalar_lea.vmem %s7, %s324
      %s326 = smul.u32 %s23, %s22
      %s327 = smul.u32 5, %s326
      %p328 = scmp.eq.s32.totalorder %s22, 0
      %p329 = scmp.eq.s32.totalorder %s23, 0
      %p330 = pnand %p328, %p329
      %p331 = pneg %p330
      // Predicated region
      $region49: #{resblock_forward.5} parent=47 // pred_check
        _
      $region50: #{resblock_forward.5} parent=47 // pred_check_branch
        %333 = sbr.rel (%p330) target = $region52
      $region51: #{resblock_forward.5} parent=47 // pred_region
        %334 = vst [vmem:[#allocation2] sm:$0x3] 0.0
      $region52: #{resblock_forward.5} parent=47 // pred_fallthru
        _
      // Predicated region
      $region53: #{resblock_forward.5} parent=47 // pred_check
        %p335 = pneg %p328
      $region54: #{resblock_forward.5} parent=47 // pred_check_branch
        %337 = sbr.rel (%p335) target = $region56
      $region55: #{resblock_forward.5} parent=47 // pred_region
        %v338 = vld [vmem:[%s310] sm:$0xff]
        %v339 = vld [vmem:[%s310 + $0x8] sm:$0xff]
        %v340 = vld [vmem:[%s310 + $0x10] sm:$0xff]
        %v341 = vld [vmem:[%s310 + $0x18] sm:$0xff]
        %v342 = vld [vmem:[%s310 + $0x20] sm:$0xf]
        %v343 = vld [vmem:[%s1] sm:$0xff]
        %v344 = vld [vmem:[%s1 + $0x8] sm:$0xff]
        %v345 = vld [vmem:[%s1 + $0x10] sm:$0xff]
        %v346 = vld [vmem:[%s1 + $0x18] sm:$0xff]
        %v347 = vld [vmem:[%s1 + $0x20] sm:$0xff]
        %v348 = vld [vmem:[%s1 + $0x28] sm:$0xff]
        %v349 = vld [vmem:[%s1 + $0x30] sm:$0xff]
        %v350 = vld [vmem:[%s1 + $0x38] sm:$0xff]
        %v351 = vld [vmem:[%s1 + $0x40] sm:$0xff]
        %v352 = vld [vmem:[%s1 + $0x48] sm:$0xff]
        %v353 = vld [vmem:[%s1 + $0x50] sm:$0xff]
        %v354 = vld [vmem:[%s1 + $0x58] sm:$0xff]
        %v355 = vld [vmem:[%s1 + $0x60] sm:$0xff]
        %v356 = vld [vmem:[%s1 + $0x68] sm:$0xff]
        %v357 = vld [vmem:[%s1 + $0x70] sm:$0xff]
        %v358 = vld [vmem:[%s1 + $0x78] sm:$0xff]
        %v359 = vld [vmem:[%s1 + $0x80] sm:$0xff]
        %v360 = vld [vmem:[%s1 + $0x88] sm:$0xff]
        %v361 = vld [vmem:[%s1 + $0x90] sm:$0xff]
        %v362 = vld [vmem:[%s1 + $0x98] sm:$0xff]
        %v363 = vld [vmem:[%s1 + $0xa0] sm:$0xff]
        %v364 = vld [vmem:[%s1 + $0xa8] sm:$0xff]
        %v365 = vld [vmem:[%s1 + $0xb0] sm:$0xff]
        %v366 = vld [vmem:[%s1 + $0xb8] sm:$0xff]
        %v367 = vld [vmem:[%s1 + $0xc0] sm:$0xff]
        %v368 = vld [vmem:[%s1 + $0xc8] sm:$0xff]
        %v369 = vld [vmem:[%s1 + $0xd0] sm:$0xff]
        %v370 = vld [vmem:[%s1 + $0xd8] sm:$0xff]
        %v371 = vld [vmem:[%s1 + $0xe0] sm:$0xff]
        %v372 = vld [vmem:[%s1 + $0xe8] sm:$0xff]
        %v373 = vld [vmem:[%s1 + $0xf0] sm:$0xff]
        %v374 = vld [vmem:[%s1 + $0xf8] sm:$0xff]
        %v375 = vld [vmem:[%s1 + $0x100] sm:$0xff]
        %v376 = vld [vmem:[%s1 + $0x108] sm:$0xff]
        %v377 = vld [vmem:[%s1 + $0x110] sm:$0xff]
        %v378 = vld [vmem:[%s1 + $0x118] sm:$0xff]
        %v379 = vld [vmem:[%s1 + $0x120] sm:$0xff]
        %v380 = vld [vmem:[%s1 + $0x128] sm:$0xff]
        %v381 = vld [vmem:[%s1 + $0x130] sm:$0xff]
        %v382 = vld [vmem:[%s1 + $0x138] sm:$0xff]
        %v383 = vld [vmem:[%s1 + $0x140] sm:$0xff]
        %v384 = vld [vmem:[%s1 + $0x148] sm:$0xff]
        %v385 = vld [vmem:[%s1 + $0x150] sm:$0xff]
        %v386 = vld [vmem:[%s1 + $0x158] sm:$0xff]
        %v387 = vld [vmem:[%s1 + $0x160] sm:$0xff]
        %v388 = vld [vmem:[%s1 + $0x168] sm:$0xff]
        %v389 = vld [vmem:[%s1 + $0x170] sm:$0xff]
        %v390 = vld [vmem:[%s1 + $0x178] sm:$0xff]
        %391 = vmatprep.subr.mxu0 %v389
        %392 = vmatpush1.msra.mxu0 %v388
        %393 = vmatprep.subr.mxu0 %v386
        %394 = vmatpush1.msra.mxu0 %v385
        %395 = vmatprep.subr.mxu0 %v383
        %396 = vmatpush1.msra.mxu0 %v382
        %397 = vmatprep.subr.mxu0 %v380
        %398 = vmatpush1.msra.mxu0 %v379
        %399 = vmatprep.subr.mxu0 %v377
        %400 = vmatpush1.msra.mxu0 %v376
        %401 = vmatprep.subr.mxu0 %v374
        %402 = vmatpush1.msra.mxu0 %v373
        %403 = vmatprep.subr.mxu0 %v371
        %404 = vmatpush1.msra.mxu0 %v370
        %405 = vmatprep.subr.mxu0 %v368
        %406 = vmatpush1.msra.mxu0 %v367
        %407 = vmatprep.subr.mxu0 %v365
        %408 = vmatpush1.msra.mxu0 %v364
        %409 = vmatprep.subr.mxu0 %v362
        %410 = vmatpush1.msra.mxu0 %v361
        %411 = vmatprep.subr.mxu0 %v359
        %412 = vmatpush1.msra.mxu0 %v358
        %413 = vmatprep.subr.mxu0 %v356
        %414 = vmatpush1.msra.mxu0 %v355
        %415 = vmatprep.subr.mxu0 %v353
        %416 = vmatpush1.msra.mxu0 %v352
        %417 = vmatprep.subr.mxu0 %v350
        %418 = vmatpush1.msra.mxu0 %v349
        %419 = vmatprep.subr.mxu0 %v347
        %420 = vmatpush1.msra.mxu0 %v346
        %421 = vmatprep.subr.mxu0 %v344
        %422 = vmatpush1.msra.mxu0 %v343
        %423 = vmatprep.subr.mxu0 0.0
        %424 = vmatpush2.msra.mxu0 0.0
        %425 = vmatprep.subr.mxu0 0.0
        %426 = vmatpush2.msra.mxu0 0.0
        %427 = vmatprep.subr.mxu0 0.0
        %428 = vmatpush2.msra.mxu0 0.0
        %429 = vmatprep.subr.mxu0 0.0
        %430 = vmatpush2.msra.mxu0 0.0
        %431 = vmatprep.subr.mxu0 0.0
        %432 = vmatpush2.msra.mxu0 0.0
        %433 = vmatprep.subr.mxu0 0.0
        %434 = vmatpush2.msra.mxu0 0.0
        %435 = vmatprep.subr.mxu0 0.0
        %436 = vmatpush2.msra.mxu0 0.0
        %437 = vmatprep.subr.mxu0 0.0
        %438 = vmatpush2.msra.mxu0 0.0
        %439 = vmatprep.subr.mxu0 0.0
        %440 = vmatpush2.msra.mxu0 0.0
        %441 = vmatprep.subr.mxu0 0.0
        %442 = vmatpush2.msra.mxu0 0.0
        %443 = vmatprep.subr.mxu0 0.0
        %444 = vmatpush2.msra.mxu0 0.0
        %445 = vmatprep.subr.mxu0 0.0
        %446 = vmatpush2.msra.mxu0 0.0
        %447 = vmatprep.subr.mxu0 0.0
        %448 = vmatpush2.msra.mxu0 0.0
        %449 = vmatprep.subr.mxu0 0.0
        %450 = vmatpush2.msra.mxu0 0.0
        %451 = vmatprep.subr.mxu0 0.0
        %452 = vmatpush2.msra.mxu0 0.0
        %453 = vmatprep.subr.mxu0 0.0
        %454 = vmatpush2.msra.mxu0 0.0
        %455 = vmatprep.mubr.f32.mxu0 0.0
        %456 = vmatmul.mubr.f32.gmra.mxu0 %v338
        %v457 = vpop.f32.mrf.mxu0
        %v458 = vadd.f32 0.0, %v457
        %v459 = vpop.f32.mrf.mxu0
        %v460 = vadd.f32 0.0, %v459
        %461 = vmatprep.mubr.f32.mxu0 0.0
        %462 = vmatmul.mubr.f32.gmra.mxu0 %v339
        %v463 = vpop.f32.mrf.mxu0
        %v464 = vadd.f32 0.0, %v463
        %v465 = vpop.f32.mrf.mxu0
        %v466 = vadd.f32 0.0, %v465
        %467 = vmatprep.mubr.f32.mxu0 0.0
        %468 = vmatmul.mubr.f32.gmra.mxu0 %v340
        %v469 = vpop.f32.mrf.mxu0
        %v470 = vadd.f32 0.0, %v469
        %v471 = vpop.f32.mrf.mxu0
        %v472 = vadd.f32 0.0, %v471
        %473 = vmatprep.mubr.f32.mxu0 0.0
        %474 = vmatmul.mubr.f32.gmra.mxu0 %v341
        %v475 = vpop.f32.mrf.mxu0
        %v476 = vadd.f32 0.0, %v475
        %v477 = vpop.f32.mrf.mxu0
        %v478 = vadd.f32 0.0, %v477
        %479 = vmatprep.mubr.f32.mxu0 0.0
        %480 = vmatmul.mubr.f32.gmra.mxu0 %v342
        %v481 = vpop.f32.mrf.mxu0
        %v482 = vadd.f32 0.0, %v481
        %v483 = vpop.f32.mrf.mxu0
        %v484 = vadd.f32 0.0, %v483
        %485 = vdwg.mxu0
        %486 = vmatprep.subr.mxu0 0.0
        %487 = vmatpush1.msra.mxu0 %v390
        %488 = vmatprep.subr.mxu0 0.0
        %489 = vmatpush1.msra.mxu0 %v387
        %490 = vmatprep.subr.mxu0 0.0
        %491 = vmatpush1.msra.mxu0 %v384
        %492 = vmatprep.subr.mxu0 0.0
        %493 = vmatpush1.msra.mxu0 %v381
        %494 = vmatprep.subr.mxu0 0.0
        %495 = vmatpush1.msra.mxu0 %v378
        %496 = vmatprep.subr.mxu0 0.0
        %497 = vmatpush1.msra.mxu0 %v375
        %498 = vmatprep.subr.mxu0 0.0
        %499 = vmatpush1.msra.mxu0 %v372
        %500 = vmatprep.subr.mxu0 0.0
        %501 = vmatpush1.msra.mxu0 %v369
        %502 = vmatprep.subr.mxu0 0.0
        %503 = vmatpush1.msra.mxu0 %v366
        %504 = vmatprep.subr.mxu0 0.0
        %505 = vmatpush1.msra.mxu0 %v363
        %506 = vmatprep.subr.mxu0 0.0
        %507 = vmatpush1.msra.mxu0 %v360
        %508 = vmatprep.subr.mxu0 0.0
        %509 = vmatpush1.msra.mxu0 %v357
        %510 = vmatprep.subr.mxu0 0.0
        %511 = vmatpush1.msra.mxu0 %v354
        %512 = vmatprep.subr.mxu0 0.0
        %513 = vmatpush1.msra.mxu0 %v351
        %514 = vmatprep.subr.mxu0 0.0
        %515 = vmatpush1.msra.mxu0 %v348
        %516 = vmatprep.subr.mxu0 0.0
        %517 = vmatpush1.msra.mxu0 %v345
        %518 = vmatprep.subr.mxu0 0.0
        %519 = vmatpush2.msra.mxu0 0.0
        %520 = vmatprep.subr.mxu0 0.0
        %521 = vmatpush2.msra.mxu0 0.0
        %522 = vmatprep.subr.mxu0 0.0
        %523 = vmatpush2.msra.mxu0 0.0
        %524 = vmatprep.subr.mxu0 0.0
        %525 = vmatpush2.msra.mxu0 0.0
        %526 = vmatprep.subr.mxu0 0.0
        %527 = vmatpush2.msra.mxu0 0.0
        %528 = vmatprep.subr.mxu0 0.0
        %529 = vmatpush2.msra.mxu0 0.0
        %530 = vmatprep.subr.mxu0 0.0
        %531 = vmatpush2.msra.mxu0 0.0
        %532 = vmatprep.subr.mxu0 0.0
        %533 = vmatpush2.msra.mxu0 0.0
        %534 = vmatprep.subr.mxu0 0.0
        %535 = vmatpush2.msra.mxu0 0.0
        %536 = vmatprep.subr.mxu0 0.0
        %537 = vmatpush2.msra.mxu0 0.0
        %538 = vmatprep.subr.mxu0 0.0
        %539 = vmatpush2.msra.mxu0 0.0
        %540 = vmatprep.subr.mxu0 0.0
        %541 = vmatpush2.msra.mxu0 0.0
        %542 = vmatprep.subr.mxu0 0.0
        %543 = vmatpush2.msra.mxu0 0.0
        %544 = vmatprep.subr.mxu0 0.0
        %545 = vmatpush2.msra.mxu0 0.0
        %546 = vmatprep.subr.mxu0 0.0
        %547 = vmatpush2.msra.mxu0 0.0
        %548 = vmatprep.subr.mxu0 0.0
        %549 = vmatpush2.msra.mxu0 0.0
        %550 = vmatprep.mubr.f32.mxu0 0.0
        %551 = vmatmul.mubr.f32.gmra.mxu0 %v338
        %v552 = vpop.f32.mrf.mxu0
        %v553 = vadd.f32 0.0, %v552
        %v554 = vpop.f32.mrf.mxu0
        %555 = vmatprep.mubr.f32.mxu0 0.0
        %556 = vmatmul.mubr.f32.gmra.mxu0 %v339
        %v557 = vpop.f32.mrf.mxu0
        %v558 = vadd.f32 0.0, %v557
        %v559 = vpop.f32.mrf.mxu0
        %560 = vmatprep.mubr.f32.mxu0 0.0
        %561 = vmatmul.mubr.f32.gmra.mxu0 %v340
        %v562 = vpop.f32.mrf.mxu0
        %v563 = vadd.f32 0.0, %v562
        %v564 = vpop.f32.mrf.mxu0
        %565 = vmatprep.mubr.f32.mxu0 0.0
        %566 = vmatmul.mubr.f32.gmra.mxu0 %v341
        %v567 = vpop.f32.mrf.mxu0
        %v568 = vadd.f32 0.0, %v567
        %v569 = vpop.f32.mrf.mxu0
        %570 = vmatprep.mubr.f32.mxu0 0.0
        %571 = vmatmul.mubr.f32.gmra.mxu0 %v342
        %v572 = vpop.f32.mrf.mxu0
        %v573 = vadd.f32 0.0, %v572
        %v574 = vpop.f32.mrf.mxu0
        %575 = vdwg.mxu0
        %vm581 = vcmask 1040384
        %v582 = vrot.slane %v458, 7
        %v583 = vrot.slane %v464, 7
        %v584 = vsel %vm581, %v582, %v583
        %v585 = vrot.slane %v470, 7
        %v586 = vsel %vm581, %v583, %v585
        %v587 = vrot.slane %v476, 7
        %v588 = vsel %vm581, %v585, %v587
        %v589 = vrot.slane %v482, 7
        %v590 = vsel %vm581, %v587, %v589
        %v596 = vsel %vm581, 0.0, %v582
        %vm602 = vcmask 1046528
        %v603 = vrot.slane %v553, 1
        %v604 = vrot.slane %v558, 1
        %v605 = vsel %vm602, %v603, %v604
        %v606 = vrot.slane %v563, 1
        %v607 = vsel %vm602, %v604, %v606
        %v608 = vrot.slane %v568, 1
        %v609 = vsel %vm602, %v606, %v608
        %v610 = vrot.slane %v573, 1
        %v611 = vsel %vm602, %v608, %v610
        %vm617 = vcmask 1042432
        %v618 = vsel %vm617, %v610, 0.0
        %v619 = vadd.f32 %v596, %v460
        %v620 = vadd.f32 %v584, %v466
        %v621 = vadd.f32 %v586, %v472
        %v622 = vadd.f32 %v588, %v478
        %v623 = vadd.f32 %v590, %v484
        %v624 = vadd.f32 %v619, %v605
        %v625 = vadd.f32 %v620, %v607
        %v626 = vadd.f32 %v621, %v609
        %v627 = vadd.f32 %v622, %v611
        %v628 = vadd.f32 %v623, %v618
        %v629 = vld [vmem:[%s3] sm:$0xff]
        %v630 = vld [vmem:[%s3 + $0x8] sm:$0xff]
        %v631 = vld [vmem:[%s3 + $0x10] sm:$0xff]
        %v632 = vld [vmem:[%s3 + $0x18] sm:$0xff]
        %v633 = vld [vmem:[%s3 + $0x20] sm:$0xf]
        %v634 = vmul.f32 %v624, %v629
        %v635 = vmul.f32 %v625, %v630
        %v636 = vmul.f32 %v626, %v631
        %v637 = vmul.f32 %v627, %v632
        %v638 = vmul.f32 %v628, %v633
        %v639 = vadd.f32 %v634, %v635
        %v640 = vadd.f32 %v639, %v636
        %v641 = vadd.f32 %v640, %v637
        %vm642 = vcmask 1043456
        %v643 = vsel %vm642, %v638, 0.0
        %v644 = vadd.f32 %v641, %v643
        %v645 = vrot.slane %v644, 4
        %v646 = vadd.f32 %v644, %v645
        %v647 = vrot.slane %v646, 2
        %v648 = vadd.f32 %v646, %v647
        %v649 = vrot.slane %v648, 1
        %v650 = vadd.f32 %v648, %v649
        %v651 = vmul.f32 %v634, %v634
        %v652 = vmul.f32 %v635, %v635
        %v653 = vmul.f32 %v636, %v636
        %v654 = vmul.f32 %v637, %v637
        %v655 = vmul.f32 %v638, %v638
        %v656 = vadd.f32 %v651, %v652
        %v657 = vadd.f32 %v656, %v653
        %v658 = vadd.f32 %v657, %v654
        %v659 = vsel %vm642, %v655, 0.0
        %v660 = vadd.f32 %v658, %v659
        %v661 = vrot.slane %v660, 4
        %v662 = vadd.f32 %v660, %v661
        %v663 = vrot.slane %v662, 2
        %v664 = vadd.f32 %v662, %v663
        %v665 = vrot.slane %v664, 1
        %v666 = vadd.f32 %v664, %v665
        %v667 = vld [vmem:[#allocation2] sm:$0x3]
        %v668 = vsel %vm581, %v650, %v666
        %v669 = vadd.f32 %v667, %v668
        %670 = vst [vmem:[#allocation2] sm:$0x3] %v669
      $region56: #{resblock_forward.5} parent=47 // pred_fallthru
        _
      %p671 = scmp.eq.s32.totalorder %s22, 1
      %p672 = pnand %p671, %p329
      %p673 = pneg %p672
      // Predicated region
      $region57: #{resblock_forward.5} parent=47 // pred_check
        _
      $region58: #{resblock_forward.5} parent=47 // pred_check_branch
        %675 = sbr.rel (%p672) target = $region60
      $region59: #{resblock_forward.5} parent=47 // pred_region
        %v676 = vld [vmem:[#allocation2] sm:$0x3]
        %v677 = vld [vmem:[%s2] sm:$0xff]
        %v678 = vld [vmem:[%s2 + $0x8] sm:$0xff]
        %v679 = vld [vmem:[%s2 + $0x10] sm:$0xff]
        %v680 = vld [vmem:[%s2 + $0x18] sm:$0xff]
        %v681 = vld [vmem:[%s2 + $0x20] sm:$0xff]
        %v682 = vld [vmem:[%s2 + $0x28] sm:$0xff]
        %v683 = vld [vmem:[%s2 + $0x30] sm:$0xff]
        %v684 = vld [vmem:[%s2 + $0x38] sm:$0xff]
        %v685 = vld [vmem:[%s2 + $0x40] sm:$0xff]
        %v686 = vld [vmem:[%s2 + $0x48] sm:$0xff]
        %v687 = vld [vmem:[%s2 + $0x50] sm:$0xff]
        %v688 = vld [vmem:[%s2 + $0x58] sm:$0xff]
        %v689 = vld [vmem:[%s2 + $0x60] sm:$0xff]
        %v690 = vld [vmem:[%s2 + $0x68] sm:$0xff]
        %v691 = vld [vmem:[%s2 + $0x70] sm:$0xff]
        %v692 = vld [vmem:[%s2 + $0x78] sm:$0xff]
        %693 = vmatprep.subr.mxu0 0.0
        %694 = vmatpush1.msra.mxu0 %v692
        %695 = vmatprep.subr.mxu0 0.0
        %696 = vmatpush1.msra.mxu0 %v691
        %697 = vmatprep.subr.mxu0 0.0
        %698 = vmatpush1.msra.mxu0 %v690
        %699 = vmatprep.subr.mxu0 0.0
        %700 = vmatpush1.msra.mxu0 %v689
        %701 = vmatprep.subr.mxu0 0.0
        %702 = vmatpush1.msra.mxu0 %v688
        %703 = vmatprep.subr.mxu0 0.0
        %704 = vmatpush1.msra.mxu0 %v687
        %705 = vmatprep.subr.mxu0 0.0
        %706 = vmatpush1.msra.mxu0 %v686
        %707 = vmatprep.subr.mxu0 0.0
        %708 = vmatpush1.msra.mxu0 %v685
        %709 = vmatprep.subr.mxu0 0.0
        %710 = vmatpush1.msra.mxu0 %v684
        %711 = vmatprep.subr.mxu0 0.0
        %712 = vmatpush1.msra.mxu0 %v683
        %713 = vmatprep.subr.mxu0 0.0
        %714 = vmatpush1.msra.mxu0 %v682
        %715 = vmatprep.subr.mxu0 0.0
        %716 = vmatpush1.msra.mxu0 %v681
        %717 = vmatprep.subr.mxu0 0.0
        %718 = vmatpush1.msra.mxu0 %v680
        %719 = vmatprep.subr.mxu0 0.0
        %720 = vmatpush1.msra.mxu0 %v679
        %721 = vmatprep.subr.mxu0 0.0
        %722 = vmatpush1.msra.mxu0 %v678
        %723 = vmatprep.subr.mxu0 0.0
        %724 = vmatpush1.msra.mxu0 %v677
        %725 = vmatprep.subr.mxu0 0.0
        %726 = vmatpush2.msra.mxu0 0.0
        %727 = vmatprep.subr.mxu0 0.0
        %728 = vmatpush2.msra.mxu0 0.0
        %729 = vmatprep.subr.mxu0 0.0
        %730 = vmatpush2.msra.mxu0 0.0
        %731 = vmatprep.subr.mxu0 0.0
        %732 = vmatpush2.msra.mxu0 0.0
        %733 = vmatprep.subr.mxu0 0.0
        %734 = vmatpush2.msra.mxu0 0.0
        %735 = vmatprep.subr.mxu0 0.0
        %736 = vmatpush2.msra.mxu0 0.0
        %737 = vmatprep.subr.mxu0 0.0
        %738 = vmatpush2.msra.mxu0 0.0
        %739 = vmatprep.subr.mxu0 0.0
        %740 = vmatpush2.msra.mxu0 0.0
        %741 = vmatprep.subr.mxu0 0.0
        %742 = vmatpush2.msra.mxu0 0.0
        %743 = vmatprep.subr.mxu0 0.0
        %744 = vmatpush2.msra.mxu0 0.0
        %745 = vmatprep.subr.mxu0 0.0
        %746 = vmatpush2.msra.mxu0 0.0
        %747 = vmatprep.subr.mxu0 0.0
        %748 = vmatpush2.msra.mxu0 0.0
        %749 = vmatprep.subr.mxu0 0.0
        %750 = vmatpush2.msra.mxu0 0.0
        %751 = vmatprep.subr.mxu0 0.0
        %752 = vmatpush2.msra.mxu0 0.0
        %753 = vmatprep.subr.mxu0 0.0
        %754 = vmatpush2.msra.mxu0 0.0
        %755 = vmatprep.subr.mxu0 0.0
        %756 = vmatpush2.msra.mxu0 0.0
        %757 = vmatprep.mubr.f32.mxu0 0.0
        %758 = vmatmul.mubr.f32.gmra.mxu0 %v676
        %v759 = vpop.f32.mrf.mxu0
        %v760 = vadd.f32 0.0, %v759
        %v761 = vpop.f32.mrf.mxu0
        %762 = vdwg.mxu0
        %v763 = vmul.f32 %v760, 0.001953125
        %v764 = vmul.f32 %v763, %v763
        %v766 = vrot.slane %v764, 7
        %v768 = vsub.f32 %v763, %v766
        %v769 = vmax.f32 %v768, 0.0
        %v770 = vld [vmem:[%s4] sm:$0x1]
        %v771 = vadd.f32 %v769, 1e-05
        %v772 = vrsqrt.pop %v771
        %v775 = vunpack.c.l.s4 1966171168
        %v776 = vunpack.c.0.s8 %v775
        %v777 = vlaneseq
        %v778 = vshrl.u32 %v777, 7
        %v779 = vsub.s32 %v776, %v778
        %v780 = vrot.slane %v772, %v779
        %v781 = vcombine.high %v780, %v780
        %v783 = vunpack.c.l.s4 1966171168
        %v784 = vunpack.c.0.s8 %v783
        %v785 = vlaneseq
        %v786 = vshrl.u32 %v785, 7
        %v787 = vsub.s32 %v784, %v786
        %v788 = vrot.slane %v781, %v787
        %v790 = vmul.f32 %v770, %v788
        %791 = vst [vmem:[#allocation3] sm:$0x1] %v790
        %v792 = vld [vmem:[%s5] sm:$0x1]
        %v793 = vmul.f32 %v763, %v790
        %v794 = vsub.f32 %v792, %v793
        %795 = vst [vmem:[#allocation4] sm:$0x1] %v794
      $region60: #{resblock_forward.5} parent=47 // pred_fallthru
        _
      // Predicated region
      $region61: #{resblock_forward.5} parent=47 // pred_check
        %p796 = pneg %p671
      $region62: #{resblock_forward.5} parent=47 // pred_check_branch
        %798 = sbr.rel (%p796) target = $region64
      $region63: #{resblock_forward.5} parent=47 // pred_region
        %v799 = vld [vmem:[%s310] sm:$0xff]
        %v800 = vld [vmem:[%s310 + $0x8] sm:$0xff]
        %v801 = vld [vmem:[%s310 + $0x10] sm:$0xff]
        %v802 = vld [vmem:[%s310 + $0x18] sm:$0xff]
        %v803 = vld [vmem:[%s310 + $0x20] sm:$0xf]
        %v804 = vld [vmem:[%s1] sm:$0xff]
        %v805 = vld [vmem:[%s1 + $0x8] sm:$0xff]
        %v806 = vld [vmem:[%s1 + $0x10] sm:$0xff]
        %v807 = vld [vmem:[%s1 + $0x18] sm:$0xff]
        %v808 = vld [vmem:[%s1 + $0x20] sm:$0xff]
        %v809 = vld [vmem:[%s1 + $0x28] sm:$0xff]
        %v810 = vld [vmem:[%s1 + $0x30] sm:$0xff]
        %v811 = vld [vmem:[%s1 + $0x38] sm:$0xff]
        %v812 = vld [vmem:[%s1 + $0x40] sm:$0xff]
        %v813 = vld [vmem:[%s1 + $0x48] sm:$0xff]
        %v814 = vld [vmem:[%s1 + $0x50] sm:$0xff]
        %v815 = vld [vmem:[%s1 + $0x58] sm:$0xff]
        %v816 = vld [vmem:[%s1 + $0x60] sm:$0xff]
        %v817 = vld [vmem:[%s1 + $0x68] sm:$0xff]
        %v818 = vld [vmem:[%s1 + $0x70] sm:$0xff]
        %v819 = vld [vmem:[%s1 + $0x78] sm:$0xff]
        %v820 = vld [vmem:[%s1 + $0x80] sm:$0xff]
        %v821 = vld [vmem:[%s1 + $0x88] sm:$0xff]
        %v822 = vld [vmem:[%s1 + $0x90] sm:$0xff]
        %v823 = vld [vmem:[%s1 + $0x98] sm:$0xff]
        %v824 = vld [vmem:[%s1 + $0xa0] sm:$0xff]
        %v825 = vld [vmem:[%s1 + $0xa8] sm:$0xff]
        %v826 = vld [vmem:[%s1 + $0xb0] sm:$0xff]
        %v827 = vld [vmem:[%s1 + $0xb8] sm:$0xff]
        %v828 = vld [vmem:[%s1 + $0xc0] sm:$0xff]
        %v829 = vld [vmem:[%s1 + $0xc8] sm:$0xff]
        %v830 = vld [vmem:[%s1 + $0xd0] sm:$0xff]
        %v831 = vld [vmem:[%s1 + $0xd8] sm:$0xff]
        %v832 = vld [vmem:[%s1 + $0xe0] sm:$0xff]
        %v833 = vld [vmem:[%s1 + $0xe8] sm:$0xff]
        %v834 = vld [vmem:[%s1 + $0xf0] sm:$0xff]
        %v835 = vld [vmem:[%s1 + $0xf8] sm:$0xff]
        %v836 = vld [vmem:[%s1 + $0x100] sm:$0xff]
        %v837 = vld [vmem:[%s1 + $0x108] sm:$0xff]
        %v838 = vld [vmem:[%s1 + $0x110] sm:$0xff]
        %v839 = vld [vmem:[%s1 + $0x118] sm:$0xff]
        %v840 = vld [vmem:[%s1 + $0x120] sm:$0xff]
        %v841 = vld [vmem:[%s1 + $0x128] sm:$0xff]
        %v842 = vld [vmem:[%s1 + $0x130] sm:$0xff]
        %v843 = vld [vmem:[%s1 + $0x138] sm:$0xff]
        %v844 = vld [vmem:[%s1 + $0x140] sm:$0xff]
        %v845 = vld [vmem:[%s1 + $0x148] sm:$0xff]
        %v846 = vld [vmem:[%s1 + $0x150] sm:$0xff]
        %v847 = vld [vmem:[%s1 + $0x158] sm:$0xff]
        %v848 = vld [vmem:[%s1 + $0x160] sm:$0xff]
        %v849 = vld [vmem:[%s1 + $0x168] sm:$0xff]
        %v850 = vld [vmem:[%s1 + $0x170] sm:$0xff]
        %v851 = vld [vmem:[%s1 + $0x178] sm:$0xff]
        %852 = vmatprep.subr.mxu0 %v850
        %853 = vmatpush1.msra.mxu0 %v849
        %854 = vmatprep.subr.mxu0 %v847
        %855 = vmatpush1.msra.mxu0 %v846
        %856 = vmatprep.subr.mxu0 %v844
        %857 = vmatpush1.msra.mxu0 %v843
        %858 = vmatprep.subr.mxu0 %v841
        %859 = vmatpush1.msra.mxu0 %v840
        %860 = vmatprep.subr.mxu0 %v838
        %861 = vmatpush1.msra.mxu0 %v837
        %862 = vmatprep.subr.mxu0 %v835
        %863 = vmatpush1.msra.mxu0 %v834
        %864 = vmatprep.subr.mxu0 %v832
        %865 = vmatpush1.msra.mxu0 %v831
        %866 = vmatprep.subr.mxu0 %v829
        %867 = vmatpush1.msra.mxu0 %v828
        %868 = vmatprep.subr.mxu0 %v826
        %869 = vmatpush1.msra.mxu0 %v825
        %870 = vmatprep.subr.mxu0 %v823
        %871 = vmatpush1.msra.mxu0 %v822
        %872 = vmatprep.subr.mxu0 %v820
        %873 = vmatpush1.msra.mxu0 %v819
        %874 = vmatprep.subr.mxu0 %v817
        %875 = vmatpush1.msra.mxu0 %v816
        %876 = vmatprep.subr.mxu0 %v814
        %877 = vmatpush1.msra.mxu0 %v813
        %878 = vmatprep.subr.mxu0 %v811
        %879 = vmatpush1.msra.mxu0 %v810
        %880 = vmatprep.subr.mxu0 %v808
        %881 = vmatpush1.msra.mxu0 %v807
        %882 = vmatprep.subr.mxu0 %v805
        %883 = vmatpush1.msra.mxu0 %v804
        %884 = vmatprep.subr.mxu0 0.0
        %885 = vmatpush2.msra.mxu0 0.0
        %886 = vmatprep.subr.mxu0 0.0
        %887 = vmatpush2.msra.mxu0 0.0
        %888 = vmatprep.subr.mxu0 0.0
        %889 = vmatpush2.msra.mxu0 0.0
        %890 = vmatprep.subr.mxu0 0.0
        %891 = vmatpush2.msra.mxu0 0.0
        %892 = vmatprep.subr.mxu0 0.0
        %893 = vmatpush2.msra.mxu0 0.0
        %894 = vmatprep.subr.mxu0 0.0
        %895 = vmatpush2.msra.mxu0 0.0
        %896 = vmatprep.subr.mxu0 0.0
        %897 = vmatpush2.msra.mxu0 0.0
        %898 = vmatprep.subr.mxu0 0.0
        %899 = vmatpush2.msra.mxu0 0.0
        %900 = vmatprep.subr.mxu0 0.0
        %901 = vmatpush2.msra.mxu0 0.0
        %902 = vmatprep.subr.mxu0 0.0
        %903 = vmatpush2.msra.mxu0 0.0
        %904 = vmatprep.subr.mxu0 0.0
        %905 = vmatpush2.msra.mxu0 0.0
        %906 = vmatprep.subr.mxu0 0.0
        %907 = vmatpush2.msra.mxu0 0.0
        %908 = vmatprep.subr.mxu0 0.0
        %909 = vmatpush2.msra.mxu0 0.0
        %910 = vmatprep.subr.mxu0 0.0
        %911 = vmatpush2.msra.mxu0 0.0
        %912 = vmatprep.subr.mxu0 0.0
        %913 = vmatpush2.msra.mxu0 0.0
        %914 = vmatprep.subr.mxu0 0.0
        %915 = vmatpush2.msra.mxu0 0.0
        %916 = vmatprep.mubr.f32.mxu0 0.0
        %917 = vmatmul.mubr.f32.gmra.mxu0 %v799
        %v918 = vpop.f32.mrf.mxu0
        %v919 = vadd.f32 0.0, %v918
        %v920 = vpop.f32.mrf.mxu0
        %v921 = vadd.f32 0.0, %v920
        %922 = vmatprep.mubr.f32.mxu0 0.0
        %923 = vmatmul.mubr.f32.gmra.mxu0 %v800
        %v924 = vpop.f32.mrf.mxu0
        %v925 = vadd.f32 0.0, %v924
        %v926 = vpop.f32.mrf.mxu0
        %v927 = vadd.f32 0.0, %v926
        %928 = vmatprep.mubr.f32.mxu0 0.0
        %929 = vmatmul.mubr.f32.gmra.mxu0 %v801
        %v930 = vpop.f32.mrf.mxu0
        %v931 = vadd.f32 0.0, %v930
        %v932 = vpop.f32.mrf.mxu0
        %v933 = vadd.f32 0.0, %v932
        %934 = vmatprep.mubr.f32.mxu0 0.0
        %935 = vmatmul.mubr.f32.gmra.mxu0 %v802
        %v936 = vpop.f32.mrf.mxu0
        %v937 = vadd.f32 0.0, %v936
        %v938 = vpop.f32.mrf.mxu0
        %v939 = vadd.f32 0.0, %v938
        %940 = vmatprep.mubr.f32.mxu0 0.0
        %941 = vmatmul.mubr.f32.gmra.mxu0 %v803
        %v942 = vpop.f32.mrf.mxu0
        %v943 = vadd.f32 0.0, %v942
        %v944 = vpop.f32.mrf.mxu0
        %v945 = vadd.f32 0.0, %v944
        %946 = vdwg.mxu0
        %947 = vmatprep.subr.mxu0 0.0
        %948 = vmatpush1.msra.mxu0 %v851
        %949 = vmatprep.subr.mxu0 0.0
        %950 = vmatpush1.msra.mxu0 %v848
        %951 = vmatprep.subr.mxu0 0.0
        %952 = vmatpush1.msra.mxu0 %v845
        %953 = vmatprep.subr.mxu0 0.0
        %954 = vmatpush1.msra.mxu0 %v842
        %955 = vmatprep.subr.mxu0 0.0
        %956 = vmatpush1.msra.mxu0 %v839
        %957 = vmatprep.subr.mxu0 0.0
        %958 = vmatpush1.msra.mxu0 %v836
        %959 = vmatprep.subr.mxu0 0.0
        %960 = vmatpush1.msra.mxu0 %v833
        %961 = vmatprep.subr.mxu0 0.0
        %962 = vmatpush1.msra.mxu0 %v830
        %963 = vmatprep.subr.mxu0 0.0
        %964 = vmatpush1.msra.mxu0 %v827
        %965 = vmatprep.subr.mxu0 0.0
        %966 = vmatpush1.msra.mxu0 %v824
        %967 = vmatprep.subr.mxu0 0.0
        %968 = vmatpush1.msra.mxu0 %v821
        %969 = vmatprep.subr.mxu0 0.0
        %970 = vmatpush1.msra.mxu0 %v818
        %971 = vmatprep.subr.mxu0 0.0
        %972 = vmatpush1.msra.mxu0 %v815
        %973 = vmatprep.subr.mxu0 0.0
        %974 = vmatpush1.msra.mxu0 %v812
        %975 = vmatprep.subr.mxu0 0.0
        %976 = vmatpush1.msra.mxu0 %v809
        %977 = vmatprep.subr.mxu0 0.0
        %978 = vmatpush1.msra.mxu0 %v806
        %979 = vmatprep.subr.mxu0 0.0
        %980 = vmatpush2.msra.mxu0 0.0
        %981 = vmatprep.subr.mxu0 0.0
        %982 = vmatpush2.msra.mxu0 0.0
        %983 = vmatprep.subr.mxu0 0.0
        %984 = vmatpush2.msra.mxu0 0.0
        %985 = vmatprep.subr.mxu0 0.0
        %986 = vmatpush2.msra.mxu0 0.0
        %987 = vmatprep.subr.mxu0 0.0
        %988 = vmatpush2.msra.mxu0 0.0
        %989 = vmatprep.subr.mxu0 0.0
        %990 = vmatpush2.msra.mxu0 0.0
        %991 = vmatprep.subr.mxu0 0.0
        %992 = vmatpush2.msra.mxu0 0.0
        %993 = vmatprep.subr.mxu0 0.0
        %994 = vmatpush2.msra.mxu0 0.0
        %995 = vmatprep.subr.mxu0 0.0
        %996 = vmatpush2.msra.mxu0 0.0
        %997 = vmatprep.subr.mxu0 0.0
        %998 = vmatpush2.msra.mxu0 0.0
        %999 = vmatprep.subr.mxu0 0.0
        %1000 = vmatpush2.msra.mxu0 0.0
        %1001 = vmatprep.subr.mxu0 0.0
        %1002 = vmatpush2.msra.mxu0 0.0
        %1003 = vmatprep.subr.mxu0 0.0
        %1004 = vmatpush2.msra.mxu0 0.0
        %1005 = vmatprep.subr.mxu0 0.0
        %1006 = vmatpush2.msra.mxu0 0.0
        %1007 = vmatprep.subr.mxu0 0.0
        %1008 = vmatpush2.msra.mxu0 0.0
        %1009 = vmatprep.subr.mxu0 0.0
        %1010 = vmatpush2.msra.mxu0 0.0
        %1011 = vmatprep.mubr.f32.mxu0 0.0
        %1012 = vmatmul.mubr.f32.gmra.mxu0 %v799
        %v1013 = vpop.f32.mrf.mxu0
        %v1014 = vadd.f32 0.0, %v1013
        %v1015 = vpop.f32.mrf.mxu0
        %1016 = vmatprep.mubr.f32.mxu0 0.0
        %1017 = vmatmul.mubr.f32.gmra.mxu0 %v800
        %v1018 = vpop.f32.mrf.mxu0
        %v1019 = vadd.f32 0.0, %v1018
        %v1020 = vpop.f32.mrf.mxu0
        %1021 = vmatprep.mubr.f32.mxu0 0.0
        %1022 = vmatmul.mubr.f32.gmra.mxu0 %v801
        %v1023 = vpop.f32.mrf.mxu0
        %v1024 = vadd.f32 0.0, %v1023
        %v1025 = vpop.f32.mrf.mxu0
        %1026 = vmatprep.mubr.f32.mxu0 0.0
        %1027 = vmatmul.mubr.f32.gmra.mxu0 %v802
        %v1028 = vpop.f32.mrf.mxu0
        %v1029 = vadd.f32 0.0, %v1028
        %v1030 = vpop.f32.mrf.mxu0
        %1031 = vmatprep.mubr.f32.mxu0 0.0
        %1032 = vmatmul.mubr.f32.gmra.mxu0 %v803
        %v1033 = vpop.f32.mrf.mxu0
        %v1034 = vadd.f32 0.0, %v1033
        %v1035 = vpop.f32.mrf.mxu0
        %1036 = vdwg.mxu0
        %vm1042 = vcmask 1040384
        %v1043 = vrot.slane %v919, 7
        %v1044 = vrot.slane %v925, 7
        %v1045 = vsel %vm1042, %v1043, %v1044
        %v1046 = vrot.slane %v931, 7
        %v1047 = vsel %vm1042, %v1044, %v1046
        %v1048 = vrot.slane %v937, 7
        %v1049 = vsel %vm1042, %v1046, %v1048
        %v1050 = vrot.slane %v943, 7
        %v1051 = vsel %vm1042, %v1048, %v1050
        %v1057 = vsel %vm1042, 0.0, %v1043
        %vm1063 = vcmask 1046528
        %v1064 = vrot.slane %v1014, 1
        %v1065 = vrot.slane %v1019, 1
        %v1066 = vsel %vm1063, %v1064, %v1065
        %v1067 = vrot.slane %v1024, 1
        %v1068 = vsel %vm1063, %v1065, %v1067
        %v1069 = vrot.slane %v1029, 1
        %v1070 = vsel %vm1063, %v1067, %v1069
        %v1071 = vrot.slane %v1034, 1
        %v1072 = vsel %vm1063, %v1069, %v1071
        %vm1078 = vcmask 1042432
        %v1079 = vsel %vm1078, %v1071, 0.0
        %v1080 = vadd.f32 %v1057, %v921
        %v1081 = vadd.f32 %v1045, %v927
        %v1082 = vadd.f32 %v1047, %v933
        %v1083 = vadd.f32 %v1049, %v939
        %v1084 = vadd.f32 %v1051, %v945
        %v1085 = vadd.f32 %v1080, %v1066
        %v1086 = vadd.f32 %v1081, %v1068
        %v1087 = vadd.f32 %v1082, %v1070
        %v1088 = vadd.f32 %v1083, %v1072
        %v1089 = vadd.f32 %v1084, %v1079
        %v1090 = vld [vmem:[#allocation3] sm:$0x1]
        %v1092 = vlaneseq
        %v1093 = vshrl.u32 %v1092, 7
        %v1094 = vsub.s32 0, %v1093
        %v1095 = vrot.slane %v1090, %v1094
        %v1097 = vmul.f32 %v1085, %v1095
        %v1098 = vmul.f32 %v1086, %v1095
        %v1099 = vmul.f32 %v1087, %v1095
        %v1100 = vmul.f32 %v1088, %v1095
        %v1101 = vmul.f32 %v1089, %v1095
        %v1102 = vld [vmem:[#allocation4] sm:$0x1]
        %v1104 = vlaneseq
        %v1105 = vshrl.u32 %v1104, 7
        %v1106 = vsub.s32 0, %v1105
        %v1107 = vrot.slane %v1102, %v1106
        %v1109 = vadd.f32 %v1097, %v1107
        %v1110 = vadd.f32 %v1098, %v1107
        %v1111 = vadd.f32 %v1099, %v1107
        %v1112 = vadd.f32 %v1100, %v1107
        %v1113 = vadd.f32 %v1101, %v1107
        %v1114 = vld [vmem:[%s317] sm:$0xff]
        %v1115 = vld [vmem:[%s317 + $0x8] sm:$0xff]
        %v1116 = vld [vmem:[%s317 + $0x10] sm:$0xff]
        %v1117 = vld [vmem:[%s317 + $0x18] sm:$0xff]
        %v1118 = vld [vmem:[%s317 + $0x20] sm:$0xf]
        %v1119 = vadd.f32 %v1109, %v1114
        %v1120 = vadd.f32 %v1110, %v1115
        %v1121 = vadd.f32 %v1111, %v1116
        %v1122 = vadd.f32 %v1112, %v1117
        %v1123 = vadd.f32 %v1113, %v1118
        %v1124 = vmax.f32 %v1119, 0.0
        %v1125 = vmax.f32 %v1120, 0.0
        %v1126 = vmax.f32 %v1121, 0.0
        %v1127 = vmax.f32 %v1122, 0.0
        %v1128 = vmax.f32 %v1123, 0.0
        %v1129 = vld [vmem:[%s3] sm:$0xff]
        %v1130 = vld [vmem:[%s3 + $0x8] sm:$0xff]
        %v1131 = vld [vmem:[%s3 + $0x10] sm:$0xff]
        %v1132 = vld [vmem:[%s3 + $0x18] sm:$0xff]
        %v1133 = vld [vmem:[%s3 + $0x20] sm:$0xf]
        %v1134 = vmul.f32 %v1124, %v1129
        %v1135 = vmul.f32 %v1125, %v1130
        %v1136 = vmul.f32 %v1126, %v1131
        %v1137 = vmul.f32 %v1127, %v1132
        %v1138 = vmul.f32 %v1128, %v1133
        %1139 = vst [vmem:[%s325] sm:$0xff] %v1134
        %1140 = vst [vmem:[%s325 + $0x8] sm:$0xff] %v1135
        %1141 = vst [vmem:[%s325 + $0x10] sm:$0xff] %v1136
        %1142 = vst [vmem:[%s325 + $0x18] sm:$0xff] %v1137
        %1143 = vst [vmem:[%s325 + $0x20] sm:$0xf] %v1138
      $region64: #{resblock_forward.5} parent=47 // pred_fallthru
        _
      %s1144 = smul.u32 %s23, %s22
      %s1145 = smul.u32 5, %s1144
      %p1146 = scmp.lt.s32.totalorder %s1145, 4
      %s1147 = scalar_select %p1146, %s1145, 4
      %s1148 = smul.addr %s1147, 8
      %s1149 = scalar_lea.vmem %s7, %s1148
      // Predicated region
      $region65: #{resblock_forward.5} parent=47 // pred_check
        %p1150 = pneg %p209
      $region66: #{resblock_forward.5} parent=47 // pred_check_branch
        %1152 = sbr.rel (%p1150) target = $region68
      $region67: #{resblock_forward.5} parent=47 // pred_region
        %s1153 = smul.u32 %s23, %s22
        %s1154 = smul.u32 5, %s1153
      $region68: #{resblock_forward.5} parent=47 // pred_fallthru
        _
    $region48: #{resblock_forward.5} parent=5 // pred_fallthru
      _
    %p1155 = scmp.le.s32.totalorder 2, %s13
    // Predicated region
    $region69: #{resblock_forward.5} parent=5 // pred_check
      %p1156 = pneg %p1155
    $region70: #{resblock_forward.5} parent=5 // pred_check_branch
      %1158 = sbr.rel (%p1156) target = $region72
    $region71: #{resblock_forward.5} parent=5 // pred_region
      %s1159 = ssub.s32 %s13, 2
      // Predicated region
      $region73: #{resblock_forward.5} parent=71 // pred_check
        %p1160 = pneg %p215
      $region74: #{resblock_forward.5} parent=71 // pred_check_branch
        %1162 = sbr.rel (%p1160) target = $region76
      $region75: #{resblock_forward.5} parent=71 // pred_region
        %s1163 = smul.u32 %s25, %s24
        %s1164 = smul.u32 5, %s1163
        %p1165 = scmp.lt.s32.totalorder %s1164, 4
        %s1166 = scalar_select %p1165, %s1164, 4
        %s1167 = smul.addr %s1166, 8
        %s1168 = scalar_lea.vmem %s7, %s1167
      $region76: #{resblock_forward.5} parent=71 // pred_fallthru
        _
    $region72: #{resblock_forward.5} parent=5 // pred_fallthru
      _
  $region6: #{resblock_forward.5} parent=0 // loop_footer
    %s17 = sadd.s32 1, %s13
  $region7: #{resblock_forward.5} parent=0 // loop_footer_branch
    %12 = sbr.rel target = $region3
  $region8: #{resblock_forward.5} parent=0 // loop_exit
    _

</llo_original>
